<compile_context>
chip_gen: v7x
topology: tpu7x:2x2x1
jax: 0.10.0
libtpu: 0.0.40
codegen_flags: <defaults>
</compile_context>

<pallas_src>
import functools
import math

import jax
import jax.numpy as jnp
from jax.experimental import pallas as pl
from jax.experimental.pallas import tpu as pltpu


def encoder_layer_kernel(xq_ref, xkv_ref, *rest, num_heads, has_mask, compute_dtype):
    """One fused encoder-layer step for grid point (batch b, query-tile qi)."""
    if has_mask:
        mask_ref, rest = rest[0], rest[1:]
    else:
        mask_ref = None
    (wq_ref, bq_ref, wk_ref, bk_ref, wv_ref, bv_ref, wo_ref, bo_ref,
     ln1_g_ref, ln1_b_ref, wff1_ref, bff1_ref, wff2_ref, bff2_ref,
     ln2_g_ref, ln2_b_ref,
     o_ref, q_scr, k_scr, v_scr) = rest

    qi = pl.program_id(1)

    # --- K/V projection once per batch element (reused across query tiles) ---
    @pl.when(qi == 0)
    def _():
        xkv = xkv_ref[0].astype(compute_dtype)                       # [S, D]
        for h in range(num_heads):                                   # static unroll
            k_h = jnp.dot(xkv, wk_ref[h],
                          preferred_element_type=jnp.float32) + bk_ref[h]
            v_h = jnp.dot(xkv, wv_ref[h],
                          preferred_element_type=jnp.float32) + bv_ref[h]
            k_scr[h] = k_h.astype(compute_dtype)                     # [S, hd]
            v_scr[h] = v_h.astype(compute_dtype)

    # --- Q projection for this query tile (scale folded into Wq/bq) ---
    xq_f32 = xq_ref[0].astype(jnp.float32)                           # [tq, D]
    xq = xq_f32.astype(compute_dtype)
    for h in range(num_heads):
        q_h = jnp.dot(xq, wq_ref[h],
                      preferred_element_type=jnp.float32) + bq_ref[h]
        q_scr[h] = q_h.astype(compute_dtype)                         # [tq, hd]

    q3 = q_scr[...]                                                  # [H, tq, hd] bf16
    k3 = k_scr[...]                                                  # [H, S,  hd] bf16
    v3 = v_scr[...]                                                  # [H, S,  hd] bf16

    # --- batched scaled-dot-product attention (f32 softmax) ---
    s = jnp.einsum('hqd,hkd->hqk', q3, k3,
                   preferred_element_type=jnp.float32)               # [H, tq, S]
    if has_mask:
        s = s + mask_ref[...]                                        # [tq, S] broadcast
    s = s - jnp.max(s, axis=-1, keepdims=True)
    p = jnp.exp(s)
    denom = jnp.sum(p, axis=-1, keepdims=True)
    p = (p * pl.reciprocal(denom, approx=True)).astype(compute_dtype)

    attn3 = jnp.einsum('hqk,hkd->hqd', p, v3,
                       preferred_element_type=jnp.float32)           # [H, tq, hd]
    proj3 = jnp.einsum('hqd,hde->hqe', attn3.astype(compute_dtype), wo_ref[...],
                       preferred_element_type=jnp.float32)           # [H, tq, D]
    attn_out = jnp.sum(proj3, axis=0) + bo_ref[...]                  # [tq, D]

    # --- residual + LayerNorm 1 (post-norm, eps=1e-5, f32 epilogue) ---
    y = xq_f32 + attn_out
    mu = jnp.mean(y, axis=-1, keepdims=True)
    var = jnp.mean(jnp.square(y - mu), axis=-1, keepdims=True)
    y = (y - mu) * jax.lax.rsqrt(var + 1e-5) * ln1_g_ref[...] + ln1_b_ref[...]

    # --- feed-forward (ReLU, PyTorch default activation) ---
    h1 = jnp.dot(y.astype(compute_dtype), wff1_ref[...],
                 preferred_element_type=jnp.float32) + bff1_ref[...]
    h1 = jnp.maximum(h1, 0.0)
    h2 = jnp.dot(h1.astype(compute_dtype), wff2_ref[...],
                 preferred_element_type=jnp.float32) + bff2_ref[...]

    # --- residual + LayerNorm 2 ---
    z = y + h2
    mu2 = jnp.mean(z, axis=-1, keepdims=True)
    var2 = jnp.mean(jnp.square(z - mu2), axis=-1, keepdims=True)
    z = (z - mu2) * jax.lax.rsqrt(var2 + 1e-5) * ln2_g_ref[...] + ln2_b_ref[...]

    o_ref[0] = z.astype(o_ref.dtype)


def _const_spec(shape):
    """Whole-array block, same block for every (b, qi) grid step (stays resident)."""
    zeros = (0,) * len(shape)
    return pl.BlockSpec(shape, lambda b, qi, _z=zeros: _z)


def _pick_q_tile(S):
    if S <= 512:
        return S
    for t in (512, 256, 128, 64, 32, 16, 8):
        if S % t == 0:
            return t
    return S


def encoder_layer(x, mask, params, num_heads, *, compute_dtype=jnp.bfloat16,
                  q_tile=None):
    B, S, D = x.shape
    F = params["wff1"].shape[1]
    assert D % num_heads == 0, "d_model must be divisible by num_heads"
    H = num_heads
    hd = D // H
    inv_scale = 1.0 / math.sqrt(hd)

    tq = _pick_q_tile(S) if q_tile is None else q_tile
    assert S % tq == 0
    nq = S // tq

    f32 = jnp.float32
    # Trace-time per-head weight layouts (free under jit); matmul operands in bf16.
    wq3 = (params["wq"].astype(f32) * inv_scale).reshape(D, H, hd).transpose(1, 0, 2).astype(compute_dtype)
    wk3 = params["wk"].reshape(D, H, hd).transpose(1, 0, 2).astype(compute_dtype)
    wv3 = params["wv"].reshape(D, H, hd).transpose(1, 0, 2).astype(compute_dtype)
    wo3 = params["wo"].reshape(H, hd, D).astype(compute_dtype)
    bq3 = (params["bq"].astype(f32) * inv_scale).reshape(H, 1, hd)
    bk3 = params["bk"].astype(f32).reshape(H, 1, hd)
    bv3 = params["bv"].astype(f32).reshape(H, 1, hd)
    bo = params["bo"].astype(f32).reshape(1, D)
    ln1_g = params["ln1_g"].astype(f32).reshape(1, D)
    ln1_b = params["ln1_b"].astype(f32).reshape(1, D)
    wff1 = params["wff1"].astype(compute_dtype)
    bff1 = params["bff1"].astype(f32).reshape(1, F)
    wff2 = params["wff2"].astype(compute_dtype)
    bff2 = params["bff2"].astype(f32).reshape(1, D)
    ln2_g = params["ln2_g"].astype(f32).reshape(1, D)
    ln2_b = params["ln2_b"].astype(f32).reshape(1, D)

    has_mask = mask is not None
    kernel = functools.partial(encoder_layer_kernel, num_heads=H,
                               has_mask=has_mask, compute_dtype=compute_dtype)

    in_specs = [
        pl.BlockSpec((1, tq, D), lambda b, qi: (b, qi, 0)),   # x: query tile
        pl.BlockSpec((1, S, D), lambda b, qi: (b, 0, 0)),     # x: full seq (K/V proj)
    ]
    args = [x, x]
    if has_mask:
        in_specs.append(pl.BlockSpec((tq, S), lambda b, qi: (qi, 0)))
        args.append(mask)
    in_specs += [
        _const_spec((H, D, hd)), _const_spec((H, 1, hd)),     # Wq, bq (pre-scaled)
        _const_spec((H, D, hd)), _const_spec((H, 1, hd)),     # Wk, bk
        _const_spec((H, D, hd)), _const_spec((H, 1, hd)),     # Wv, bv
        _const_spec((H, hd, D)), _const_spec((1, D)),         # Wo, bo
        _const_spec((1, D)), _const_spec((1, D)),             # LN1 gamma/beta
        _const_spec((D, F)), _const_spec((1, F)),             # FFN1
        _const_spec((F, D)), _const_spec((1, D)),             # FFN2
        _const_spec((1, D)), _const_spec((1, D)),             # LN2 gamma/beta
    ]
    args += [wq3, bq3, wk3, bk3, wv3, bv3, wo3, bo,
             ln1_g, ln1_b, wff1, bff1, wff2, bff2, ln2_g, ln2_b]

    return pl.pallas_call(
        kernel,
        out_shape=jax.ShapeDtypeStruct((B, S, D), x.dtype),
        grid=(B, nq),
        in_specs=in_specs,
        out_specs=pl.BlockSpec((1, tq, D), lambda b, qi: (b, qi, 0)),
        scratch_shapes=[
            pltpu.VMEM((H, tq, hd), compute_dtype),   # Q tile (head-major)
            pltpu.VMEM((H, S, hd), compute_dtype),    # K (persists across q tiles)
            pltpu.VMEM((H, S, hd), compute_dtype),    # V
        ],
        compiler_params=pltpu.CompilerParams(
            dimension_semantics=("parallel", "arbitrary"),
            vmem_limit_bytes=64 * 1024 * 1024),
    )(*args)


def transformer_encoder(src, layer_params_list, src_mask=None, num_heads=4):
    """Mirrors TransformerEncoder.forward: sequential application of cloned layers."""
    mask = None
    if src_mask is not None:
        if src_mask.dtype == jnp.bool_:
            # PyTorch bool mask: True = position is NOT allowed to attend.
            mask = jnp.where(src_mask, -jnp.inf, 0.0).astype(jnp.float32)
        else:
            mask = src_mask.astype(jnp.float32)   # additive float mask
    output = src
    for params in layer_params_list:
        output = encoder_layer(output, mask, params, num_heads)
    return output
    # TODO(synk): dropout (PyTorch default p=0.1) is not implemented; this matches eval() mode.


def init_layer_params(key, d_model, dim_ff):
    ks = jax.random.split(key, 6)
    scale = 0.02
    return {
        "wq": scale * jax.random.normal(ks[0], (d_model, d_model), jnp.float32),
        "wk": scale * jax.random.normal(ks[1], (d_model, d_model), jnp.float32),
        "wv": scale * jax.random.normal(ks[2], (d_model, d_model), jnp.float32),
        "bq": jnp.zeros((d_model,), jnp.float32),
        "bk": jnp.zeros((d_model,), jnp.float32),
        "bv": jnp.zeros((d_model,), jnp.float32),
        "wo": scale * jax.random.normal(ks[3], (d_model, d_model), jnp.float32),
        "bo": jnp.zeros((d_model,), jnp.float32),
        "ln1_g": jnp.ones((d_model,), jnp.float32),
        "ln1_b": jnp.zeros((d_model,), jnp.float32),
        "wff1": scale * jax.random.normal(ks[4], (d_model, dim_ff), jnp.float32),
        "bff1": jnp.zeros((dim_ff,), jnp.float32),
        "wff2": scale * jax.random.normal(ks[5], (dim_ff, d_model), jnp.float32),
        "bff2": jnp.zeros((d_model,), jnp.float32),
        "ln2_g": jnp.ones((d_model,), jnp.float32),
        "ln2_b": jnp.zeros((d_model,), jnp.float32),
    }


if __name__ == "__main__":
    B, S, D, H, F = 2, 8, 32, 4, 64
    NUM_LAYERS = 2

    key = jax.random.PRNGKey(0)
    kx, *layer_keys = jax.random.split(key, NUM_LAYERS + 1)

    src = jax.random.normal(kx, (B, S, D), jnp.float32)
    # _get_clones deep-copies the layer; params are initialized per-layer here.
    layer_params = [init_layer_params(k, D, F) for k in layer_keys]

    fwd = jax.jit(functools.partial(transformer_encoder, num_heads=H))
    out = fwd(src, layer_params)
    out = jax.block_until_ready(out)
    assert out.shape == (B, S, D)
    assert bool(jnp.all(jnp.isfinite(out)))
    print("KERNEL_OK")
</pallas_src>

<mosaic_0001>
module attributes {stable_mosaic.version = 11 : i64} {
  func.func @encoder_layer_kernel(%arg0: i32, %arg1: i32, %arg2: memref<1x8x32xf32, #tpu.memory_space<vmem>>, %arg3: memref<1x8x32xf32, #tpu.memory_space<vmem>>, %arg4: memref<4x32x8xbf16, #tpu.memory_space<vmem>>, %arg5: memref<4x1x8xf32, #tpu.memory_space<vmem>>, %arg6: memref<4x32x8xbf16, #tpu.memory_space<vmem>>, %arg7: memref<4x1x8xf32, #tpu.memory_space<vmem>>, %arg8: memref<4x32x8xbf16, #tpu.memory_space<vmem>>, %arg9: memref<4x1x8xf32, #tpu.memory_space<vmem>>, %arg10: memref<4x8x32xbf16, #tpu.memory_space<vmem>>, %arg11: memref<1x32xf32, #tpu.memory_space<vmem>>, %arg12: memref<1x32xf32, #tpu.memory_space<vmem>>, %arg13: memref<1x32xf32, #tpu.memory_space<vmem>>, %arg14: memref<32x64xbf16, #tpu.memory_space<vmem>>, %arg15: memref<1x64xf32, #tpu.memory_space<vmem>>, %arg16: memref<64x32xbf16, #tpu.memory_space<vmem>>, %arg17: memref<1x32xf32, #tpu.memory_space<vmem>>, %arg18: memref<1x32xf32, #tpu.memory_space<vmem>>, %arg19: memref<1x32xf32, #tpu.memory_space<vmem>>, %arg20: memref<1x8x32xf32, #tpu.memory_space<vmem>>, %arg21: memref<4x8x8xbf16, #tpu.memory_space<vmem>>, %arg22: memref<4x8x8xbf16, #tpu.memory_space<vmem>>, %arg23: memref<4x8x8xbf16, #tpu.memory_space<vmem>>) attributes {dimension_semantics = [#tpu.dimension_semantics<parallel>, #tpu.dimension_semantics<arbitrary>], iteration_bounds = array<i64: 2, 1>, scalar_prefetch = 0 : i64, scratch_operands = 3 : i64, tpu.core_type = #tpu.core_type<tc>, window_params = [{transform_indices = @transform_0, window_bounds = array<i64: 1, 8, 32>}, {transform_indices = @transform_1, window_bounds = array<i64: 1, 8, 32>}, {pipeline_mode = #tpu.pipeline_mode<synchronous>, transform_indices = @transform_2, window_bounds = array<i64: 4, 32, 8>}, {pipeline_mode = #tpu.pipeline_mode<synchronous>, transform_indices = @transform_3, window_bounds = array<i64: 4, 1, 8>}, {pipeline_mode = #tpu.pipeline_mode<synchronous>, transform_indices = @transform_4, window_bounds = array<i64: 4, 32, 8>}, {pipeline_mode = #tpu.pipeline_mode<synchronous>, transform_indices = @transform_5, window_bounds = array<i64: 4, 1, 8>}, {pipeline_mode = #tpu.pipeline_mode<synchronous>, transform_indices = @transform_6, window_bounds = array<i64: 4, 32, 8>}, {pipeline_mode = #tpu.pipeline_mode<synchronous>, transform_indices = @transform_7, window_bounds = array<i64: 4, 1, 8>}, {pipeline_mode = #tpu.pipeline_mode<synchronous>, transform_indices = @transform_8, window_bounds = array<i64: 4, 8, 32>}, {pipeline_mode = #tpu.pipeline_mode<synchronous>, transform_indices = @transform_9, window_bounds = array<i64: 1, 32>}, {pipeline_mode = #tpu.pipeline_mode<synchronous>, transform_indices = @transform_10, window_bounds = array<i64: 1, 32>}, {pipeline_mode = #tpu.pipeline_mode<synchronous>, transform_indices = @transform_11, window_bounds = array<i64: 1, 32>}, {pipeline_mode = #tpu.pipeline_mode<synchronous>, transform_indices = @transform_12, window_bounds = array<i64: 32, 64>}, {pipeline_mode = #tpu.pipeline_mode<synchronous>, transform_indices = @transform_13, window_bounds = array<i64: 1, 64>}, {pipeline_mode = #tpu.pipeline_mode<synchronous>, transform_indices = @transform_14, window_bounds = array<i64: 64, 32>}, {pipeline_mode = #tpu.pipeline_mode<synchronous>, transform_indices = @transform_15, window_bounds = array<i64: 1, 32>}, {pipeline_mode = #tpu.pipeline_mode<synchronous>, transform_indices = @transform_16, window_bounds = array<i64: 1, 32>}, {pipeline_mode = #tpu.pipeline_mode<synchronous>, transform_indices = @transform_17, window_bounds = array<i64: 1, 32>}, {transform_indices = @transform_18, window_bounds = array<i64: 1, 8, 32>}]} {
    %c0_i32 = arith.constant 0 : i32
    %0 = arith.cmpi eq, %arg1, %c0_i32 : i32
    %1 = arith.extui %0 : i1 to i32
    %c0_i32_0 = arith.constant 0 : i32
    %2 = arith.cmpi ne, %1, %c0_i32_0 : i32
    scf.if %2 {
      %c0_91 = arith.constant 0 : index
      %c0_92 = arith.constant 0 : index
      %c0_93 = arith.constant 0 : index
      %140 = vector.load %arg3[%c0_91, %c0_92, %c0_93] : memref<1x8x32xf32, #tpu.memory_space<vmem>>, vector<1x8x32xf32>
      %141 = vector.shape_cast %140 : vector<1x8x32xf32> to vector<8x32xf32>
      %142 = arith.truncf %141 : vector<8x32xf32> to vector<8x32xbf16>
      %c0_94 = arith.constant 0 : index
      %c0_95 = arith.constant 0 : index
      %c0_96 = arith.constant 0 : index
      %143 = vector.load %arg6[%c0_94, %c0_95, %c0_96] : memref<4x32x8xbf16, #tpu.memory_space<vmem>>, vector<1x32x8xbf16>
      %144 = vector.shape_cast %143 : vector<1x32x8xbf16> to vector<32x8xbf16>
      %cst_97 = arith.constant dense<0.000000e+00> : vector<8x8xf32>
      %145 = tpu.matmul %142, %144, %cst_97 {dimension_numbers = #tpu.dot_dimension_numbers<[1], [0], [0], [1], [0, 0, 1, 1], [], []>} : vector<8x32xbf16>, vector<32x8xbf16>, vector<8x8xf32> -> vector<8x8xf32>
      %c0_98 = arith.constant 0 : index
      %c0_99 = arith.constant 0 : index
      %c0_100 = arith.constant 0 : index
      %146 = vector.load %arg7[%c0_98, %c0_99, %c0_100] : memref<4x1x8xf32, #tpu.memory_space<vmem>>, vector<1x1x8xf32>
      %147 = vector.shape_cast %146 : vector<1x1x8xf32> to vector<1x8xf32>
      %148 = vector.broadcast %147 : vector<1x8xf32> to vector<8x8xf32>
      %149 = arith.addf %145, %148 : vector<8x8xf32>
      %c0_101 = arith.constant 0 : index
      %c0_102 = arith.constant 0 : index
      %c0_103 = arith.constant 0 : index
      %150 = vector.load %arg8[%c0_101, %c0_102, %c0_103] : memref<4x32x8xbf16, #tpu.memory_space<vmem>>, vector<1x32x8xbf16>
      %151 = vector.shape_cast %150 : vector<1x32x8xbf16> to vector<32x8xbf16>
      %cst_104 = arith.constant dense<0.000000e+00> : vector<8x8xf32>
      %152 = tpu.matmul %142, %151, %cst_104 {dimension_numbers = #tpu.dot_dimension_numbers<[1], [0], [0], [1], [0, 0, 1, 1], [], []>} : vector<8x32xbf16>, vector<32x8xbf16>, vector<8x8xf32> -> vector<8x8xf32>
      %c0_105 = arith.constant 0 : index
      %c0_106 = arith.constant 0 : index
      %c0_107 = arith.constant 0 : index
      %153 = vector.load %arg9[%c0_105, %c0_106, %c0_107] : memref<4x1x8xf32, #tpu.memory_space<vmem>>, vector<1x1x8xf32>
      %154 = vector.shape_cast %153 : vector<1x1x8xf32> to vector<1x8xf32>
      %155 = vector.broadcast %154 : vector<1x8xf32> to vector<8x8xf32>
      %156 = arith.addf %152, %155 : vector<8x8xf32>
      %157 = arith.truncf %149 : vector<8x8xf32> to vector<8x8xbf16>
      %c0_108 = arith.constant 0 : index
      %c0_109 = arith.constant 0 : index
      %c0_110 = arith.constant 0 : index
      %158 = vector.load %arg22[%c0_108, %c0_109, %c0_110] : memref<4x8x8xbf16, #tpu.memory_space<vmem>>, vector<1x8x8xbf16>
      %159 = vector.shape_cast %158 : vector<1x8x8xbf16> to vector<8x8xbf16>
      %160 = vector.shape_cast %157 : vector<8x8xbf16> to vector<1x8x8xbf16>
      tpu.vector_store %arg22[%c0_108, %c0_109, %c0_110], %160 {strides = array<i32>} : memref<4x8x8xbf16, #tpu.memory_space<vmem>>, vector<1x8x8xbf16>,
      %161 = arith.truncf %156 : vector<8x8xf32> to vector<8x8xbf16>
      %c0_111 = arith.constant 0 : index
      %c0_112 = arith.constant 0 : index
      %c0_113 = arith.constant 0 : index
      %162 = vector.load %arg23[%c0_111, %c0_112, %c0_113] : memref<4x8x8xbf16, #tpu.memory_space<vmem>>, vector<1x8x8xbf16>
      %163 = vector.shape_cast %162 : vector<1x8x8xbf16> to vector<8x8xbf16>
      %164 = vector.shape_cast %161 : vector<8x8xbf16> to vector<1x8x8xbf16>
      tpu.vector_store %arg23[%c0_111, %c0_112, %c0_113], %164 {strides = array<i32>} : memref<4x8x8xbf16, #tpu.memory_space<vmem>>, vector<1x8x8xbf16>,
      %c1_114 = arith.constant 1 : index
      %c0_115 = arith.constant 0 : index
      %c0_116 = arith.constant 0 : index
      %165 = vector.load %arg6[%c1_114, %c0_115, %c0_116] : memref<4x32x8xbf16, #tpu.memory_space<vmem>>, vector<1x32x8xbf16>
      %166 = vector.shape_cast %165 : vector<1x32x8xbf16> to vector<32x8xbf16>
      %cst_117 = arith.constant dense<0.000000e+00> : vector<8x8xf32>
      %167 = tpu.matmul %142, %166, %cst_117 {dimension_numbers = #tpu.dot_dimension_numbers<[1], [0], [0], [1], [0, 0, 1, 1], [], []>} : vector<8x32xbf16>, vector<32x8xbf16>, vector<8x8xf32> -> vector<8x8xf32>
      %c1_118 = arith.constant 1 : index
      %c0_119 = arith.constant 0 : index
      %c0_120 = arith.constant 0 : index
      %168 = vector.load %arg7[%c1_118, %c0_119, %c0_120] : memref<4x1x8xf32, #tpu.memory_space<vmem>>, vector<1x1x8xf32>
      %169 = vector.shape_cast %168 : vector<1x1x8xf32> to vector<1x8xf32>
      %170 = vector.broadcast %169 : vector<1x8xf32> to vector<8x8xf32>
      %171 = arith.addf %167, %170 : vector<8x8xf32>
      %c1_121 = arith.constant 1 : index
      %c0_122 = arith.constant 0 : index
      %c0_123 = arith.constant 0 : index
      %172 = vector.load %arg8[%c1_121, %c0_122, %c0_123] : memref<4x32x8xbf16, #tpu.memory_space<vmem>>, vector<1x32x8xbf16>
      %173 = vector.shape_cast %172 : vector<1x32x8xbf16> to vector<32x8xbf16>
      %cst_124 = arith.constant dense<0.000000e+00> : vector<8x8xf32>
      %174 = tpu.matmul %142, %173, %cst_124 {dimension_numbers = #tpu.dot_dimension_numbers<[1], [0], [0], [1], [0, 0, 1, 1], [], []>} : vector<8x32xbf16>, vector<32x8xbf16>, vector<8x8xf32> -> vector<8x8xf32>
      %c1_125 = arith.constant 1 : index
      %c0_126 = arith.constant 0 : index
      %c0_127 = arith.constant 0 : index
      %175 = vector.load %arg9[%c1_125, %c0_126, %c0_127] : memref<4x1x8xf32, #tpu.memory_space<vmem>>, vector<1x1x8xf32>
      %176 = vector.shape_cast %175 : vector<1x1x8xf32> to vector<1x8xf32>
      %177 = vector.broadcast %176 : vector<1x8xf32> to vector<8x8xf32>
      %178 = arith.addf %174, %177 : vector<8x8xf32>
      %179 = arith.truncf %171 : vector<8x8xf32> to vector<8x8xbf16>
      %c1_128 = arith.constant 1 : index
      %c0_129 = arith.constant 0 : index
      %c0_130 = arith.constant 0 : index
      %180 = vector.load %arg22[%c1_128, %c0_129, %c0_130] : memref<4x8x8xbf16, #tpu.memory_space<vmem>>, vector<1x8x8xbf16>
      %181 = vector.shape_cast %180 : vector<1x8x8xbf16> to vector<8x8xbf16>
      %182 = vector.shape_cast %179 : vector<8x8xbf16> to vector<1x8x8xbf16>
      tpu.vector_store %arg22[%c1_128, %c0_129, %c0_130], %182 {strides = array<i32>} : memref<4x8x8xbf16, #tpu.memory_space<vmem>>, vector<1x8x8xbf16>,
      %183 = arith.truncf %178 : vector<8x8xf32> to vector<8x8xbf16>
      %c1_131 = arith.constant 1 : index
      %c0_132 = arith.constant 0 : index
      %c0_133 = arith.constant 0 : index
      %184 = vector.load %arg23[%c1_131, %c0_132, %c0_133] : memref<4x8x8xbf16, #tpu.memory_space<vmem>>, vector<1x8x8xbf16>
      %185 = vector.shape_cast %184 : vector<1x8x8xbf16> to vector<8x8xbf16>
      %186 = vector.shape_cast %183 : vector<8x8xbf16> to vector<1x8x8xbf16>
      tpu.vector_store %arg23[%c1_131, %c0_132, %c0_133], %186 {strides = array<i32>} : memref<4x8x8xbf16, #tpu.memory_space<vmem>>, vector<1x8x8xbf16>,
      %c2_134 = arith.constant 2 : index
      %c0_135 = arith.constant 0 : index
      %c0_136 = arith.constant 0 : index
      %187 = vector.load %arg6[%c2_134, %c0_135, %c0_136] : memref<4x32x8xbf16, #tpu.memory_space<vmem>>, vector<1x32x8xbf16>
      %188 = vector.shape_cast %187 : vector<1x32x8xbf16> to vector<32x8xbf16>
      %cst_137 = arith.constant dense<0.000000e+00> : vector<8x8xf32>
      %189 = tpu.matmul %142, %188, %cst_137 {dimension_numbers = #tpu.dot_dimension_numbers<[1], [0], [0], [1], [0, 0, 1, 1], [], []>} : vector<8x32xbf16>, vector<32x8xbf16>, vector<8x8xf32> -> vector<8x8xf32>
      %c2_138 = arith.constant 2 : index
      %c0_139 = arith.constant 0 : index
      %c0_140 = arith.constant 0 : index
      %190 = vector.load %arg7[%c2_138, %c0_139, %c0_140] : memref<4x1x8xf32, #tpu.memory_space<vmem>>, vector<1x1x8xf32>
      %191 = vector.shape_cast %190 : vector<1x1x8xf32> to vector<1x8xf32>
      %192 = vector.broadcast %191 : vector<1x8xf32> to vector<8x8xf32>
      %193 = arith.addf %189, %192 : vector<8x8xf32>
      %c2_141 = arith.constant 2 : index
      %c0_142 = arith.constant 0 : index
      %c0_143 = arith.constant 0 : index
      %194 = vector.load %arg8[%c2_141, %c0_142, %c0_143] : memref<4x32x8xbf16, #tpu.memory_space<vmem>>, vector<1x32x8xbf16>
      %195 = vector.shape_cast %194 : vector<1x32x8xbf16> to vector<32x8xbf16>
      %cst_144 = arith.constant dense<0.000000e+00> : vector<8x8xf32>
      %196 = tpu.matmul %142, %195, %cst_144 {dimension_numbers = #tpu.dot_dimension_numbers<[1], [0], [0], [1], [0, 0, 1, 1], [], []>} : vector<8x32xbf16>, vector<32x8xbf16>, vector<8x8xf32> -> vector<8x8xf32>
      %c2_145 = arith.constant 2 : index
      %c0_146 = arith.constant 0 : index
      %c0_147 = arith.constant 0 : index
      %197 = vector.load %arg9[%c2_145, %c0_146, %c0_147] : memref<4x1x8xf32, #tpu.memory_space<vmem>>, vector<1x1x8xf32>
      %198 = vector.shape_cast %197 : vector<1x1x8xf32> to vector<1x8xf32>
      %199 = vector.broadcast %198 : vector<1x8xf32> to vector<8x8xf32>
      %200 = arith.addf %196, %199 : vector<8x8xf32>
      %201 = arith.truncf %193 : vector<8x8xf32> to vector<8x8xbf16>
      %c2_148 = arith.constant 2 : index
      %c0_149 = arith.constant 0 : index
      %c0_150 = arith.constant 0 : index
      %202 = vector.load %arg22[%c2_148, %c0_149, %c0_150] : memref<4x8x8xbf16, #tpu.memory_space<vmem>>, vector<1x8x8xbf16>
      %203 = vector.shape_cast %202 : vector<1x8x8xbf16> to vector<8x8xbf16>
      %204 = vector.shape_cast %201 : vector<8x8xbf16> to vector<1x8x8xbf16>
      tpu.vector_store %arg22[%c2_148, %c0_149, %c0_150], %204 {strides = array<i32>} : memref<4x8x8xbf16, #tpu.memory_space<vmem>>, vector<1x8x8xbf16>,
      %205 = arith.truncf %200 : vector<8x8xf32> to vector<8x8xbf16>
      %c2_151 = arith.constant 2 : index
      %c0_152 = arith.constant 0 : index
      %c0_153 = arith.constant 0 : index
      %206 = vector.load %arg23[%c2_151, %c0_152, %c0_153] : memref<4x8x8xbf16, #tpu.memory_space<vmem>>, vector<1x8x8xbf16>
      %207 = vector.shape_cast %206 : vector<1x8x8xbf16> to vector<8x8xbf16>
      %208 = vector.shape_cast %205 : vector<8x8xbf16> to vector<1x8x8xbf16>
      tpu.vector_store %arg23[%c2_151, %c0_152, %c0_153], %208 {strides = array<i32>} : memref<4x8x8xbf16, #tpu.memory_space<vmem>>, vector<1x8x8xbf16>,
      %c3_154 = arith.constant 3 : index
      %c0_155 = arith.constant 0 : index
      %c0_156 = arith.constant 0 : index
      %209 = vector.load %arg6[%c3_154, %c0_155, %c0_156] : memref<4x32x8xbf16, #tpu.memory_space<vmem>>, vector<1x32x8xbf16>
      %210 = vector.shape_cast %209 : vector<1x32x8xbf16> to vector<32x8xbf16>
      %cst_157 = arith.constant dense<0.000000e+00> : vector<8x8xf32>
      %211 = tpu.matmul %142, %210, %cst_157 {dimension_numbers = #tpu.dot_dimension_numbers<[1], [0], [0], [1], [0, 0, 1, 1], [], []>} : vector<8x32xbf16>, vector<32x8xbf16>, vector<8x8xf32> -> vector<8x8xf32>
      %c3_158 = arith.constant 3 : index
      %c0_159 = arith.constant 0 : index
      %c0_160 = arith.constant 0 : index
      %212 = vector.load %arg7[%c3_158, %c0_159, %c0_160] : memref<4x1x8xf32, #tpu.memory_space<vmem>>, vector<1x1x8xf32>
      %213 = vector.shape_cast %212 : vector<1x1x8xf32> to vector<1x8xf32>
      %214 = vector.broadcast %213 : vector<1x8xf32> to vector<8x8xf32>
      %215 = arith.addf %211, %214 : vector<8x8xf32>
      %c3_161 = arith.constant 3 : index
      %c0_162 = arith.constant 0 : index
      %c0_163 = arith.constant 0 : index
      %216 = vector.load %arg8[%c3_161, %c0_162, %c0_163] : memref<4x32x8xbf16, #tpu.memory_space<vmem>>, vector<1x32x8xbf16>
      %217 = vector.shape_cast %216 : vector<1x32x8xbf16> to vector<32x8xbf16>
      %cst_164 = arith.constant dense<0.000000e+00> : vector<8x8xf32>
      %218 = tpu.matmul %142, %217, %cst_164 {dimension_numbers = #tpu.dot_dimension_numbers<[1], [0], [0], [1], [0, 0, 1, 1], [], []>} : vector<8x32xbf16>, vector<32x8xbf16>, vector<8x8xf32> -> vector<8x8xf32>
      %c3_165 = arith.constant 3 : index
      %c0_166 = arith.constant 0 : index
      %c0_167 = arith.constant 0 : index
      %219 = vector.load %arg9[%c3_165, %c0_166, %c0_167] : memref<4x1x8xf32, #tpu.memory_space<vmem>>, vector<1x1x8xf32>
      %220 = vector.shape_cast %219 : vector<1x1x8xf32> to vector<1x8xf32>
      %221 = vector.broadcast %220 : vector<1x8xf32> to vector<8x8xf32>
      %222 = arith.addf %218, %221 : vector<8x8xf32>
      %223 = arith.truncf %215 : vector<8x8xf32> to vector<8x8xbf16>
      %c3_168 = arith.constant 3 : index
      %c0_169 = arith.constant 0 : index
      %c0_170 = arith.constant 0 : index
      %224 = vector.load %arg22[%c3_168, %c0_169, %c0_170] : memref<4x8x8xbf16, #tpu.memory_space<vmem>>, vector<1x8x8xbf16>
      %225 = vector.shape_cast %224 : vector<1x8x8xbf16> to vector<8x8xbf16>
      %226 = vector.shape_cast %223 : vector<8x8xbf16> to vector<1x8x8xbf16>
      tpu.vector_store %arg22[%c3_168, %c0_169, %c0_170], %226 {strides = array<i32>} : memref<4x8x8xbf16, #tpu.memory_space<vmem>>, vector<1x8x8xbf16>,
      %227 = arith.truncf %222 : vector<8x8xf32> to vector<8x8xbf16>
      %c3_171 = arith.constant 3 : index
      %c0_172 = arith.constant 0 : index
      %c0_173 = arith.constant 0 : index
      %228 = vector.load %arg23[%c3_171, %c0_172, %c0_173] : memref<4x8x8xbf16, #tpu.memory_space<vmem>>, vector<1x8x8xbf16>
      %229 = vector.shape_cast %228 : vector<1x8x8xbf16> to vector<8x8xbf16>
      %230 = vector.shape_cast %227 : vector<8x8xbf16> to vector<1x8x8xbf16>
      tpu.vector_store %arg23[%c3_171, %c0_172, %c0_173], %230 {strides = array<i32>} : memref<4x8x8xbf16, #tpu.memory_space<vmem>>, vector<1x8x8xbf16>,
    } else {
    }
    %c0 = arith.constant 0 : index
    %c0_1 = arith.constant 0 : index
    %c0_2 = arith.constant 0 : index
    %3 = vector.load %arg2[%c0, %c0_1, %c0_2] : memref<1x8x32xf32, #tpu.memory_space<vmem>>, vector<1x8x32xf32>
    %4 = vector.shape_cast %3 : vector<1x8x32xf32> to vector<8x32xf32>
    %5 = arith.truncf %4 : vector<8x32xf32> to vector<8x32xbf16>
    %c0_3 = arith.constant 0 : index
    %c0_4 = arith.constant 0 : index
    %c0_5 = arith.constant 0 : index
    %6 = vector.load %arg4[%c0_3, %c0_4, %c0_5] : memref<4x32x8xbf16, #tpu.memory_space<vmem>>, vector<1x32x8xbf16>
    %7 = vector.shape_cast %6 : vector<1x32x8xbf16> to vector<32x8xbf16>
    %cst = arith.constant dense<0.000000e+00> : vector<8x8xf32>
    %8 = tpu.matmul %5, %7, %cst {dimension_numbers = #tpu.dot_dimension_numbers<[1], [0], [0], [1], [0, 0, 1, 1], [], []>} : vector<8x32xbf16>, vector<32x8xbf16>, vector<8x8xf32> -> vector<8x8xf32>
    %c0_6 = arith.constant 0 : index
    %c0_7 = arith.constant 0 : index
    %c0_8 = arith.constant 0 : index
    %9 = vector.load %arg5[%c0_6, %c0_7, %c0_8] : memref<4x1x8xf32, #tpu.memory_space<vmem>>, vector<1x1x8xf32>
    %10 = vector.shape_cast %9 : vector<1x1x8xf32> to vector<1x8xf32>
    %11 = vector.broadcast %10 : vector<1x8xf32> to vector<8x8xf32>
    %12 = arith.addf %8, %11 : vector<8x8xf32>
    %13 = arith.truncf %12 : vector<8x8xf32> to vector<8x8xbf16>
    %c0_9 = arith.constant 0 : index
    %c0_10 = arith.constant 0 : index
    %c0_11 = arith.constant 0 : index
    %14 = vector.load %arg21[%c0_9, %c0_10, %c0_11] : memref<4x8x8xbf16, #tpu.memory_space<vmem>>, vector<1x8x8xbf16>
    %15 = vector.shape_cast %14 : vector<1x8x8xbf16> to vector<8x8xbf16>
    %16 = vector.shape_cast %13 : vector<8x8xbf16> to vector<1x8x8xbf16>
    tpu.vector_store %arg21[%c0_9, %c0_10, %c0_11], %16 {strides = array<i32>} : memref<4x8x8xbf16, #tpu.memory_space<vmem>>, vector<1x8x8xbf16>,
    %c1 = arith.constant 1 : index
    %c0_12 = arith.constant 0 : index
    %c0_13 = arith.constant 0 : index
    %17 = vector.load %arg4[%c1, %c0_12, %c0_13] : memref<4x32x8xbf16, #tpu.memory_space<vmem>>, vector<1x32x8xbf16>
    %18 = vector.shape_cast %17 : vector<1x32x8xbf16> to vector<32x8xbf16>
    %cst_14 = arith.constant dense<0.000000e+00> : vector<8x8xf32>
    %19 = tpu.matmul %5, %18, %cst_14 {dimension_numbers = #tpu.dot_dimension_numbers<[1], [0], [0], [1], [0, 0, 1, 1], [], []>} : vector<8x32xbf16>, vector<32x8xbf16>, vector<8x8xf32> -> vector<8x8xf32>
    %c1_15 = arith.constant 1 : index
    %c0_16 = arith.constant 0 : index
    %c0_17 = arith.constant 0 : index
    %20 = vector.load %arg5[%c1_15, %c0_16, %c0_17] : memref<4x1x8xf32, #tpu.memory_space<vmem>>, vector<1x1x8xf32>
    %21 = vector.shape_cast %20 : vector<1x1x8xf32> to vector<1x8xf32>
    %22 = vector.broadcast %21 : vector<1x8xf32> to vector<8x8xf32>
    %23 = arith.addf %19, %22 : vector<8x8xf32>
    %24 = arith.truncf %23 : vector<8x8xf32> to vector<8x8xbf16>
    %c1_18 = arith.constant 1 : index
    %c0_19 = arith.constant 0 : index
    %c0_20 = arith.constant 0 : index
    %25 = vector.load %arg21[%c1_18, %c0_19, %c0_20] : memref<4x8x8xbf16, #tpu.memory_space<vmem>>, vector<1x8x8xbf16>
    %26 = vector.shape_cast %25 : vector<1x8x8xbf16> to vector<8x8xbf16>
    %27 = vector.shape_cast %24 : vector<8x8xbf16> to vector<1x8x8xbf16>
    tpu.vector_store %arg21[%c1_18, %c0_19, %c0_20], %27 {strides = array<i32>} : memref<4x8x8xbf16, #tpu.memory_space<vmem>>, vector<1x8x8xbf16>,
    %c2 = arith.constant 2 : index
    %c0_21 = arith.constant 0 : index
    %c0_22 = arith.constant 0 : index
    %28 = vector.load %arg4[%c2, %c0_21, %c0_22] : memref<4x32x8xbf16, #tpu.memory_space<vmem>>, vector<1x32x8xbf16>
    %29 = vector.shape_cast %28 : vector<1x32x8xbf16> to vector<32x8xbf16>
    %cst_23 = arith.constant dense<0.000000e+00> : vector<8x8xf32>
    %30 = tpu.matmul %5, %29, %cst_23 {dimension_numbers = #tpu.dot_dimension_numbers<[1], [0], [0], [1], [0, 0, 1, 1], [], []>} : vector<8x32xbf16>, vector<32x8xbf16>, vector<8x8xf32> -> vector<8x8xf32>
    %c2_24 = arith.constant 2 : index
    %c0_25 = arith.constant 0 : index
    %c0_26 = arith.constant 0 : index
    %31 = vector.load %arg5[%c2_24, %c0_25, %c0_26] : memref<4x1x8xf32, #tpu.memory_space<vmem>>, vector<1x1x8xf32>
    %32 = vector.shape_cast %31 : vector<1x1x8xf32> to vector<1x8xf32>
    %33 = vector.broadcast %32 : vector<1x8xf32> to vector<8x8xf32>
    %34 = arith.addf %30, %33 : vector<8x8xf32>
    %35 = arith.truncf %34 : vector<8x8xf32> to vector<8x8xbf16>
    %c2_27 = arith.constant 2 : index
    %c0_28 = arith.constant 0 : index
    %c0_29 = arith.constant 0 : index
    %36 = vector.load %arg21[%c2_27, %c0_28, %c0_29] : memref<4x8x8xbf16, #tpu.memory_space<vmem>>, vector<1x8x8xbf16>
    %37 = vector.shape_cast %36 : vector<1x8x8xbf16> to vector<8x8xbf16>
    %38 = vector.shape_cast %35 : vector<8x8xbf16> to vector<1x8x8xbf16>
    tpu.vector_store %arg21[%c2_27, %c0_28, %c0_29], %38 {strides = array<i32>} : memref<4x8x8xbf16, #tpu.memory_space<vmem>>, vector<1x8x8xbf16>,
    %c3 = arith.constant 3 : index
    %c0_30 = arith.constant 0 : index
    %c0_31 = arith.constant 0 : index
    %39 = vector.load %arg4[%c3, %c0_30, %c0_31] : memref<4x32x8xbf16, #tpu.memory_space<vmem>>, vector<1x32x8xbf16>
    %40 = vector.shape_cast %39 : vector<1x32x8xbf16> to vector<32x8xbf16>
    %cst_32 = arith.constant dense<0.000000e+00> : vector<8x8xf32>
    %41 = tpu.matmul %5, %40, %cst_32 {dimension_numbers = #tpu.dot_dimension_numbers<[1], [0], [0], [1], [0, 0, 1, 1], [], []>} : vector<8x32xbf16>, vector<32x8xbf16>, vector<8x8xf32> -> vector<8x8xf32>
    %c3_33 = arith.constant 3 : index
    %c0_34 = arith.constant 0 : index
    %c0_35 = arith.constant 0 : index
    %42 = vector.load %arg5[%c3_33, %c0_34, %c0_35] : memref<4x1x8xf32, #tpu.memory_space<vmem>>, vector<1x1x8xf32>
    %43 = vector.shape_cast %42 : vector<1x1x8xf32> to vector<1x8xf32>
    %44 = vector.broadcast %43 : vector<1x8xf32> to vector<8x8xf32>
    %45 = arith.addf %41, %44 : vector<8x8xf32>
    %46 = arith.truncf %45 : vector<8x8xf32> to vector<8x8xbf16>
    %c3_36 = arith.constant 3 : index
    %c0_37 = arith.constant 0 : index
    %c0_38 = arith.constant 0 : index
    %47 = vector.load %arg21[%c3_36, %c0_37, %c0_38] : memref<4x8x8xbf16, #tpu.memory_space<vmem>>, vector<1x8x8xbf16>
    %48 = vector.shape_cast %47 : vector<1x8x8xbf16> to vector<8x8xbf16>
    %49 = vector.shape_cast %46 : vector<8x8xbf16> to vector<1x8x8xbf16>
    tpu.vector_store %arg21[%c3_36, %c0_37, %c0_38], %49 {strides = array<i32>} : memref<4x8x8xbf16, #tpu.memory_space<vmem>>, vector<1x8x8xbf16>,
    %c0_39 = arith.constant 0 : index
    %c0_40 = arith.constant 0 : index
    %c0_41 = arith.constant 0 : index
    %50 = vector.load %arg21[%c0_39, %c0_40, %c0_41] : memref<4x8x8xbf16, #tpu.memory_space<vmem>>, vector<4x8x8xbf16>
    %c0_42 = arith.constant 0 : index
    %c0_43 = arith.constant 0 : index
    %c0_44 = arith.constant 0 : index
    %51 = vector.load %arg22[%c0_42, %c0_43, %c0_44] : memref<4x8x8xbf16, #tpu.memory_space<vmem>>, vector<4x8x8xbf16>
    %c0_45 = arith.constant 0 : index
    %c0_46 = arith.constant 0 : index
    %c0_47 = arith.constant 0 : index
    %52 = vector.load %arg23[%c0_45, %c0_46, %c0_47] : memref<4x8x8xbf16, #tpu.memory_space<vmem>>, vector<4x8x8xbf16>
    "tpu.trace_start"() <{level = 10 : i32, message = "hqd,hkd->hqk"}> : () -> ()
    %cst_48 = arith.constant dense<0.000000e+00> : vector<4x8x8xf32>
    %53 = tpu.matmul %50, %51, %cst_48 {dimension_numbers = #tpu.dot_dimension_numbers<[2], [2], [1], [1], [0, 0, 0, 1, 1, 1], [0], [0]>} : vector<4x8x8xbf16>, vector<4x8x8xbf16>, vector<4x8x8xf32> -> vector<4x8x8xf32>
    "tpu.trace_stop"() : () -> ()
    %cst_49 = arith.constant dense<0xFF800000> : vector<4x8xf32>
    %54 = vector.multi_reduction <maximumf>, %53, %cst_49 [2] : vector<4x8x8xf32> to vector<4x8xf32>
    %55 = vector.shape_cast %54 : vector<4x8xf32> to vector<4x8x1xf32>
    %56 = vector.broadcast %55 : vector<4x8x1xf32> to vector<4x8x8xf32>
    %57 = arith.subf %53, %56 : vector<4x8x8xf32>
    %58 = math.exp %57 : vector<4x8x8xf32>
    %cst_50 = arith.constant dense<0.000000e+00> : vector<4x8xf32>
    %59 = vector.multi_reduction <add>, %58, %cst_50 [2] : vector<4x8x8xf32> to vector<4x8xf32>
    %60 = vector.shape_cast %59 : vector<4x8xf32> to vector<4x8x1xf32>
    %61 = tpu.reciprocal %60 {approx = true} : vector<4x8x1xf32> -> vector<4x8x1xf32>
    %62 = vector.broadcast %61 : vector<4x8x1xf32> to vector<4x8x8xf32>
    %63 = arith.mulf %58, %62 : vector<4x8x8xf32>
    %64 = arith.truncf %63 : vector<4x8x8xf32> to vector<4x8x8xbf16>
    "tpu.trace_start"() <{level = 10 : i32, message = "hqk,hkd->hqd"}> : () -> ()
    %cst_51 = arith.constant dense<0.000000e+00> : vector<4x8x8xf32>
    %65 = tpu.matmul %64, %52, %cst_51 {dimension_numbers = #tpu.dot_dimension_numbers<[2], [1], [1], [2], [0, 0, 0, 1, 1, 2], [0], [0]>} : vector<4x8x8xbf16>, vector<4x8x8xbf16>, vector<4x8x8xf32> -> vector<4x8x8xf32>
    "tpu.trace_stop"() : () -> ()
    %66 = arith.truncf %65 : vector<4x8x8xf32> to vector<4x8x8xbf16>
    %c0_52 = arith.constant 0 : index
    %c0_53 = arith.constant 0 : index
    %c0_54 = arith.constant 0 : index
    %67 = vector.load %arg10[%c0_52, %c0_53, %c0_54] : memref<4x8x32xbf16, #tpu.memory_space<vmem>>, vector<4x8x32xbf16>
    "tpu.trace_start"() <{level = 10 : i32, message = "hqd,hde->hqe"}> : () -> ()
    %cst_55 = arith.constant dense<0.000000e+00> : vector<4x8x32xf32>
    %68 = tpu.matmul %66, %67, %cst_55 {dimension_numbers = #tpu.dot_dimension_numbers<[2], [1], [1], [2], [0, 0, 0, 1, 1, 2], [0], [0]>} : vector<4x8x8xbf16>, vector<4x8x32xbf16>, vector<4x8x32xf32> -> vector<4x8x32xf32>
    "tpu.trace_stop"() : () -> ()
    %cst_56 = arith.constant dense<0.000000e+00> : vector<8x32xf32>
    %69 = vector.multi_reduction <add>, %68, %cst_56 [0] : vector<4x8x32xf32> to vector<8x32xf32>
    %c0_57 = arith.constant 0 : index
    %c0_58 = arith.constant 0 : index
    %70 = vector.load %arg11[%c0_57, %c0_58] : memref<1x32xf32, #tpu.memory_space<vmem>>, vector<1x32xf32>
    %71 = vector.broadcast %70 : vector<1x32xf32> to vector<8x32xf32>
    %72 = arith.addf %69, %71 : vector<8x32xf32>
    %73 = arith.addf %4, %72 : vector<8x32xf32>
    %cst_59 = arith.constant dense<0.000000e+00> : vector<8xf32>
    %74 = vector.multi_reduction <add>, %73, %cst_59 [1] : vector<8x32xf32> to vector<8xf32>
    %75 = vector.shape_cast %74 : vector<8xf32> to vector<8x1xf32>
    %cst_60 = arith.constant 3.200000e+01 : f32
    %76 = vector.broadcast %cst_60 : f32 to vector<8x1xf32>
    %77 = arith.divf %75, %76 : vector<8x1xf32>
    %78 = vector.broadcast %77 : vector<8x1xf32> to vector<8x32xf32>
    %79 = arith.subf %73, %78 : vector<8x32xf32>
    %80 = arith.mulf %79, %79 : vector<8x32xf32>
    %cst_61 = arith.constant dense<0.000000e+00> : vector<8xf32>
    %81 = vector.multi_reduction <add>, %80, %cst_61 [1] : vector<8x32xf32> to vector<8xf32>
    %82 = vector.shape_cast %81 : vector<8xf32> to vector<8x1xf32>
    %cst_62 = arith.constant 3.200000e+01 : f32
    %83 = vector.broadcast %cst_62 : f32 to vector<8x1xf32>
    %84 = arith.divf %82, %83 : vector<8x1xf32>
    %85 = vector.broadcast %77 : vector<8x1xf32> to vector<8x32xf32>
    %86 = arith.subf %73, %85 : vector<8x32xf32>
    %cst_63 = arith.constant 9.99999974E-6 : f32
    %87 = vector.broadcast %cst_63 : f32 to vector<8x1xf32>
    %88 = arith.addf %84, %87 : vector<8x1xf32>
    %89 = math.rsqrt %88 : vector<8x1xf32>
    %90 = vector.broadcast %89 : vector<8x1xf32> to vector<8x32xf32>
    %91 = arith.mulf %86, %90 : vector<8x32xf32>
    %c0_64 = arith.constant 0 : index
    %c0_65 = arith.constant 0 : index
    %92 = vector.load %arg12[%c0_64, %c0_65] : memref<1x32xf32, #tpu.memory_space<vmem>>, vector<1x32xf32>
    %93 = vector.broadcast %92 : vector<1x32xf32> to vector<8x32xf32>
    %94 = arith.mulf %91, %93 : vector<8x32xf32>
    %c0_66 = arith.constant 0 : index
    %c0_67 = arith.constant 0 : index
    %95 = vector.load %arg13[%c0_66, %c0_67] : memref<1x32xf32, #tpu.memory_space<vmem>>, vector<1x32xf32>
    %96 = vector.broadcast %95 : vector<1x32xf32> to vector<8x32xf32>
    %97 = arith.addf %94, %96 : vector<8x32xf32>
    %98 = arith.truncf %97 : vector<8x32xf32> to vector<8x32xbf16>
    %c0_68 = arith.constant 0 : index
    %c0_69 = arith.constant 0 : index
    %99 = vector.load %arg14[%c0_68, %c0_69] : memref<32x64xbf16, #tpu.memory_space<vmem>>, vector<32x64xbf16>
    %cst_70 = arith.constant dense<0.000000e+00> : vector<8x64xf32>
    %100 = tpu.matmul %98, %99, %cst_70 {dimension_numbers = #tpu.dot_dimension_numbers<[1], [0], [0], [1], [0, 0, 1, 1], [], []>} : vector<8x32xbf16>, vector<32x64xbf16>, vector<8x64xf32> -> vector<8x64xf32>
    %c0_71 = arith.constant 0 : index
    %c0_72 = arith.constant 0 : index
    %101 = vector.load %arg15[%c0_71, %c0_72] : memref<1x64xf32, #tpu.memory_space<vmem>>, vector<1x64xf32>
    %102 = vector.broadcast %101 : vector<1x64xf32> to vector<8x64xf32>
    %103 = arith.addf %100, %102 : vector<8x64xf32>
    %cst_73 = arith.constant 0.000000e+00 : f32
    %104 = vector.broadcast %cst_73 : f32 to vector<8x64xf32>
    %105 = arith.maximumf %103, %104 : vector<8x64xf32>
    %106 = arith.truncf %105 : vector<8x64xf32> to vector<8x64xbf16>
    %c0_74 = arith.constant 0 : index
    %c0_75 = arith.constant 0 : index
    %107 = vector.load %arg16[%c0_74, %c0_75] : memref<64x32xbf16, #tpu.memory_space<vmem>>, vector<64x32xbf16>
    %cst_76 = arith.constant dense<0.000000e+00> : vector<8x32xf32>
    %108 = tpu.matmul %106, %107, %cst_76 {dimension_numbers = #tpu.dot_dimension_numbers<[1], [0], [0], [1], [0, 0, 1, 1], [], []>} : vector<8x64xbf16>, vector<64x32xbf16>, vector<8x32xf32> -> vector<8x32xf32>
    %c0_77 = arith.constant 0 : index
    %c0_78 = arith.constant 0 : index
    %109 = vector.load %arg17[%c0_77, %c0_78] : memref<1x32xf32, #tpu.memory_space<vmem>>, vector<1x32xf32>
    %110 = vector.broadcast %109 : vector<1x32xf32> to vector<8x32xf32>
    %111 = arith.addf %108, %110 : vector<8x32xf32>
    %112 = arith.addf %97, %111 : vector<8x32xf32>
    %cst_79 = arith.constant dense<0.000000e+00> : vector<8xf32>
    %113 = vector.multi_reduction <add>, %112, %cst_79 [1] : vector<8x32xf32> to vector<8xf32>
    %114 = vector.shape_cast %113 : vector<8xf32> to vector<8x1xf32>
    %cst_80 = arith.constant 3.200000e+01 : f32
    %115 = vector.broadcast %cst_80 : f32 to vector<8x1xf32>
    %116 = arith.divf %114, %115 : vector<8x1xf32>
    %117 = vector.broadcast %116 : vector<8x1xf32> to vector<8x32xf32>
    %118 = arith.subf %112, %117 : vector<8x32xf32>
    %119 = arith.mulf %118, %118 : vector<8x32xf32>
    %cst_81 = arith.constant dense<0.000000e+00> : vector<8xf32>
    %120 = vector.multi_reduction <add>, %119, %cst_81 [1] : vector<8x32xf32> to vector<8xf32>
    %121 = vector.shape_cast %120 : vector<8xf32> to vector<8x1xf32>
    %cst_82 = arith.constant 3.200000e+01 : f32
    %122 = vector.broadcast %cst_82 : f32 to vector<8x1xf32>
    %123 = arith.divf %121, %122 : vector<8x1xf32>
    %124 = vector.broadcast %116 : vector<8x1xf32> to vector<8x32xf32>
    %125 = arith.subf %112, %124 : vector<8x32xf32>
    %cst_83 = arith.constant 9.99999974E-6 : f32
    %126 = vector.broadcast %cst_83 : f32 to vector<8x1xf32>
    %127 = arith.addf %123, %126 : vector<8x1xf32>
    %128 = math.rsqrt %127 : vector<8x1xf32>
    %129 = vector.broadcast %128 : vector<8x1xf32> to vector<8x32xf32>
    %130 = arith.mulf %125, %129 : vector<8x32xf32>
    %c0_84 = arith.constant 0 : index
    %c0_85 = arith.constant 0 : index
    %131 = vector.load %arg18[%c0_84, %c0_85] : memref<1x32xf32, #tpu.memory_space<vmem>>, vector<1x32xf32>
    %132 = vector.broadcast %131 : vector<1x32xf32> to vector<8x32xf32>
    %133 = arith.mulf %130, %132 : vector<8x32xf32>
    %c0_86 = arith.constant 0 : index
    %c0_87 = arith.constant 0 : index
    %134 = vector.load %arg19[%c0_86, %c0_87] : memref<1x32xf32, #tpu.memory_space<vmem>>, vector<1x32xf32>
    %135 = vector.broadcast %134 : vector<1x32xf32> to vector<8x32xf32>
    %136 = arith.addf %133, %135 : vector<8x32xf32>
    %c0_88 = arith.constant 0 : index
    %c0_89 = arith.constant 0 : index
    %c0_90 = arith.constant 0 : index
    %137 = vector.load %arg20[%c0_88, %c0_89, %c0_90] : memref<1x8x32xf32, #tpu.memory_space<vmem>>, vector<1x8x32xf32>
    %138 = vector.shape_cast %137 : vector<1x8x32xf32> to vector<8x32xf32>
    %139 = vector.shape_cast %136 : vector<8x32xf32> to vector<1x8x32xf32>
    tpu.vector_store %arg20[%c0_88, %c0_89, %c0_90], %139 {strides = array<i32>} : memref<1x8x32xf32, #tpu.memory_space<vmem>>, vector<1x8x32xf32>,
    return
  }
  func.func @transform_0(%arg0: i32, %arg1: i32) -> (i32, i32, i32) {
    %c0_i32 = arith.constant 0 : i32
    %c0_i32_0 = arith.constant 0 : i32
    return %arg0, %arg1, %c0_i32 : i32, i32, i32
  }
  func.func @transform_1(%arg0: i32, %arg1: i32) -> (i32, i32, i32) {
    %c0_i32 = arith.constant 0 : i32
    %c0_i32_0 = arith.constant 0 : i32
    %c0_i32_1 = arith.constant 0 : i32
    return %arg0, %c0_i32, %c0_i32_0 : i32, i32, i32
  }
  func.func @transform_2(%arg0: i32, %arg1: i32) -> (i32, i32, i32) {
    %c0_i32 = arith.constant 0 : i32
    %c0_i32_0 = arith.constant 0 : i32
    %c0_i32_1 = arith.constant 0 : i32
    %c0_i32_2 = arith.constant 0 : i32
    return %c0_i32, %c0_i32_0, %c0_i32_1 : i32, i32, i32
  }
  func.func @transform_3(%arg0: i32, %arg1: i32) -> (i32, i32, i32) {
    %c0_i32 = arith.constant 0 : i32
    %c0_i32_0 = arith.constant 0 : i32
    %c0_i32_1 = arith.constant 0 : i32
    %c0_i32_2 = arith.constant 0 : i32
    return %c0_i32, %c0_i32_0, %c0_i32_1 : i32, i32, i32
  }
  func.func @transform_4(%arg0: i32, %arg1: i32) -> (i32, i32, i32) {
    %c0_i32 = arith.constant 0 : i32
    %c0_i32_0 = arith.constant 0 : i32
    %c0_i32_1 = arith.constant 0 : i32
    %c0_i32_2 = arith.constant 0 : i32
    return %c0_i32, %c0_i32_0, %c0_i32_1 : i32, i32, i32
  }
  func.func @transform_5(%arg0: i32, %arg1: i32) -> (i32, i32, i32) {
    %c0_i32 = arith.constant 0 : i32
    %c0_i32_0 = arith.constant 0 : i32
    %c0_i32_1 = arith.constant 0 : i32
    %c0_i32_2 = arith.constant 0 : i32
    return %c0_i32, %c0_i32_0, %c0_i32_1 : i32, i32, i32
  }
  func.func @transform_6(%arg0: i32, %arg1: i32) -> (i32, i32, i32) {
    %c0_i32 = arith.constant 0 : i32
    %c0_i32_0 = arith.constant 0 : i32
    %c0_i32_1 = arith.constant 0 : i32
    %c0_i32_2 = arith.constant 0 : i32
    return %c0_i32, %c0_i32_0, %c0_i32_1 : i32, i32, i32
  }
  func.func @transform_7(%arg0: i32, %arg1: i32) -> (i32, i32, i32) {
    %c0_i32 = arith.constant 0 : i32
    %c0_i32_0 = arith.constant 0 : i32
    %c0_i32_1 = arith.constant 0 : i32
    %c0_i32_2 = arith.constant 0 : i32
    return %c0_i32, %c0_i32_0, %c0_i32_1 : i32, i32, i32
  }
  func.func @transform_8(%arg0: i32, %arg1: i32) -> (i32, i32, i32) {
    %c0_i32 = arith.constant 0 : i32
    %c0_i32_0 = arith.constant 0 : i32
    %c0_i32_1 = arith.constant 0 : i32
    %c0_i32_2 = arith.constant 0 : i32
    return %c0_i32, %c0_i32_0, %c0_i32_1 : i32, i32, i32
  }
  func.func @transform_9(%arg0: i32, %arg1: i32) -> (i32, i32) {
    %c0_i32 = arith.constant 0 : i32
    %c0_i32_0 = arith.constant 0 : i32
    %c0_i32_1 = arith.constant 0 : i32
    return %c0_i32, %c0_i32_0 : i32, i32
  }
  func.func @transform_10(%arg0: i32, %arg1: i32) -> (i32, i32) {
    %c0_i32 = arith.constant 0 : i32
    %c0_i32_0 = arith.constant 0 : i32
    %c0_i32_1 = arith.constant 0 : i32
    return %c0_i32, %c0_i32_0 : i32, i32
  }
  func.func @transform_11(%arg0: i32, %arg1: i32) -> (i32, i32) {
    %c0_i32 = arith.constant 0 : i32
    %c0_i32_0 = arith.constant 0 : i32
    %c0_i32_1 = arith.constant 0 : i32
    return %c0_i32, %c0_i32_0 : i32, i32
  }
  func.func @transform_12(%arg0: i32, %arg1: i32) -> (i32, i32) {
    %c0_i32 = arith.constant 0 : i32
    %c0_i32_0 = arith.constant 0 : i32
    %c0_i32_1 = arith.constant 0 : i32
    return %c0_i32, %c0_i32_0 : i32, i32
  }
  func.func @transform_13(%arg0: i32, %arg1: i32) -> (i32, i32) {
    %c0_i32 = arith.constant 0 : i32
    %c0_i32_0 = arith.constant 0 : i32
    %c0_i32_1 = arith.constant 0 : i32
    return %c0_i32, %c0_i32_0 : i32, i32
  }
  func.func @transform_14(%arg0: i32, %arg1: i32) -> (i32, i32) {
    %c0_i32 = arith.constant 0 : i32
    %c0_i32_0 = arith.constant 0 : i32
    %c0_i32_1 = arith.constant 0 : i32
    return %c0_i32, %c0_i32_0 : i32, i32
  }
  func.func @transform_15(%arg0: i32, %arg1: i32) -> (i32, i32) {
    %c0_i32 = arith.constant 0 : i32
    %c0_i32_0 = arith.constant 0 : i32
    %c0_i32_1 = arith.constant 0 : i32
    return %c0_i32, %c0_i32_0 : i32, i32
  }
  func.func @transform_16(%arg0: i32, %arg1: i32) -> (i32, i32) {
    %c0_i32 = arith.constant 0 : i32
    %c0_i32_0 = arith.constant 0 : i32
    %c0_i32_1 = arith.constant 0 : i32
    return %c0_i32, %c0_i32_0 : i32, i32
  }
  func.func @transform_17(%arg0: i32, %arg1: i32) -> (i32, i32) {
    %c0_i32 = arith.constant 0 : i32
    %c0_i32_0 = arith.constant 0 : i32
    %c0_i32_1 = arith.constant 0 : i32
    return %c0_i32, %c0_i32_0 : i32, i32
  }
  func.func @transform_18(%arg0: i32, %arg1: i32) -> (i32, i32, i32) {
    %c0_i32 = arith.constant 0 : i32
    %c0_i32_0 = arith.constant 0 : i32
    return %arg0, %arg1, %c0_i32 : i32, i32, i32
  }
}

</mosaic_0001>

<llo_original>
// kernel: transformer_encoder.2
$region0: #{transformer_encoder.2}
  #allocation0 [shape = 'u32[]', space=smem, size = 0x4, offset = 0x4, fixed_abs, tag = 'smem constant byte address 0x4 - core index']
  #allocation1 [shape = 'u32[144,128]{1,0:T(1,128)}', space=vmem, size = 0x12000, scoped, tag = 'internal scratch']
  #allocation2 [shape = 'bf16[4,8,8]{2,1,0:T(8,128)(2,1)}', space=vmem, size = 0x2000, scoped, tag = 'scratch operand']
  #allocation3 [shape = 'bf16[4,8,8]{2,1,0:T(8,128)(2,1)}', space=vmem, size = 0x2000, scoped, tag = 'scratch operand']
  #allocation4 [shape = 'bf16[4,8,8]{2,1,0:T(8,128)(2,1)}', space=vmem, size = 0x2000, scoped, tag = 'scratch operand']
  %s0 = inlined_call_operand.hbm [shape: f32[2,8,32], index: 0, kind: input, shape index: {}, may-alias: {0,1}]
  %s1 = inlined_call_operand.hbm [shape: f32[2,8,32], index: 1, kind: input, shape index: {}, may-alias: {0,1}]
  %s2 = inlined_call_operand.hbm [shape: bf16[4,32,8], index: 2, kind: input, shape index: {}]
  %s3 = inlined_call_operand.hbm [shape: f32[4,1,8], index: 3, kind: input, shape index: {}]
  %s4 = inlined_call_operand.hbm [shape: bf16[4,32,8], index: 4, kind: input, shape index: {}]
  %s5 = inlined_call_operand.hbm [shape: f32[4,1,8], index: 5, kind: input, shape index: {}]
  %s6 = inlined_call_operand.hbm [shape: bf16[4,32,8], index: 6, kind: input, shape index: {}]
  %s7 = inlined_call_operand.hbm [shape: f32[4,1,8], index: 7, kind: input, shape index: {}]
  %s8 = inlined_call_operand.hbm [shape: bf16[4,8,32], index: 8, kind: input, shape index: {}]
  %s9 = inlined_call_operand.hbm [shape: f32[1,32], index: 9, kind: input, shape index: {}]
  %s10 = inlined_call_operand.hbm [shape: f32[1,32], index: 10, kind: input, shape index: {}]
  %s11 = inlined_call_operand.hbm [shape: f32[1,32], index: 11, kind: input, shape index: {}]
  %s12 = inlined_call_operand.hbm [shape: bf16[32,64], index: 12, kind: input, shape index: {}]
  %s13 = inlined_call_operand.hbm [shape: f32[1,64], index: 13, kind: input, shape index: {}]
  %s14 = inlined_call_operand.hbm [shape: bf16[64,32], index: 14, kind: input, shape index: {}]
  %s15 = inlined_call_operand.hbm [shape: f32[1,32], index: 15, kind: input, shape index: {}]
  %s16 = inlined_call_operand.hbm [shape: f32[1,32], index: 16, kind: input, shape index: {}]
  %s17 = inlined_call_operand.hbm [shape: f32[1,32], index: 17, kind: input, shape index: {}]
  %s18 = inlined_call_operand.hbm [shape: f32[2,8,32], index: 18, kind: output, shape index: {}]
  %s19 = sld [smem:[#allocation0]]
  $region181: #{transformer_encoder.2} parent=0
    _
  %s21 = ssub.s32 1, %s19
  %s22 = scalar_select 0, %s21, %s19
  $region1: #{transformer_encoder.2} parent=0
    #allocation5 [shape = 'u8[8192]{0}', space=vmem, size = 0x2000, scoped, tag = 'input window, operand 0']
    #allocation6 [shape = 's32[2]{0}', space=sflag, size = 0x8, scoped, tag = 'scoped memory for transformer_encoder.2']
    #allocation7 [shape = 's32[2]{0}', space=sflag, size = 0x8, scoped, tag = 'scoped memory for transformer_encoder.2']
    #allocation8 [shape = 'u8[8192]{0}', space=vmem, size = 0x2000, scoped, tag = 'input window, operand 1']
    #allocation9 [shape = 's32[2]{0}', space=sflag, size = 0x8, scoped, tag = 'scoped memory for transformer_encoder.2']
    #allocation10 [shape = 'u8[32768]{0}', space=vmem, size = 0x8000, scoped, tag = 'input window, operand 2, single buffered']
    #allocation11 [shape = 'u8[2048]{0}', space=vmem, size = 0x800, scoped, tag = 'input window, operand 3, single buffered']
    #allocation12 [shape = 's32[1]{0}', space=sflag, size = 0x4, scoped, tag = 'scoped memory for transformer_encoder.2']
    #allocation13 [shape = 'u8[32768]{0}', space=vmem, size = 0x8000, scoped, tag = 'input window, operand 4, single buffered']
    #allocation14 [shape = 'u8[2048]{0}', space=vmem, size = 0x800, scoped, tag = 'input window, operand 5, single buffered']
    #allocation15 [shape = 's32[1]{0}', space=sflag, size = 0x4, scoped, tag = 'scoped memory for transformer_encoder.2']
    #allocation16 [shape = 'u8[32768]{0}', space=vmem, size = 0x8000, scoped, tag = 'input window, operand 6, single buffered']
    #allocation17 [shape = 'u8[2048]{0}', space=vmem, size = 0x800, scoped, tag = 'input window, operand 7, single buffered']
    #allocation18 [shape = 's32[1]{0}', space=sflag, size = 0x4, scoped, tag = 'scoped memory for transformer_encoder.2']
    #allocation19 [shape = 'u8[8192]{0}', space=vmem, size = 0x2000, scoped, tag = 'input window, operand 8, single buffered']
    #allocation20 [shape = 'u8[512]{0}', space=vmem, size = 0x400, scoped, tag = 'input window, operand 9, single buffered']
    #allocation21 [shape = 's32[1]{0}', space=sflag, size = 0x4, scoped, tag = 'scoped memory for transformer_encoder.2']
    #allocation22 [shape = 'u8[512]{0}', space=vmem, size = 0x400, scoped, tag = 'input window, operand 10, single buffered']
    #allocation23 [shape = 'u8[512]{0}', space=vmem, size = 0x400, scoped, tag = 'input window, operand 11, single buffered']
    #allocation24 [shape = 's32[1]{0}', space=sflag, size = 0x4, scoped, tag = 'scoped memory for transformer_encoder.2']
    #allocation25 [shape = 'u8[8192]{0}', space=vmem, size = 0x2000, scoped, tag = 'input window, operand 12, single buffered']
    #allocation26 [shape = 'u8[512]{0}', space=vmem, size = 0x400, scoped, tag = 'input window, operand 13, single buffered']
    #allocation27 [shape = 's32[1]{0}', space=sflag, size = 0x4, scoped, tag = 'scoped memory for transformer_encoder.2']
    #allocation28 [shape = 'u8[16384]{0}', space=vmem, size = 0x4000, scoped, tag = 'input window, operand 14, single buffered']
    #allocation29 [shape = 'u8[512]{0}', space=vmem, size = 0x400, scoped, tag = 'input window, operand 15, single buffered']
    #allocation30 [shape = 's32[1]{0}', space=sflag, size = 0x4, scoped, tag = 'scoped memory for transformer_encoder.2']
    #allocation31 [shape = 'u8[512]{0}', space=vmem, size = 0x400, scoped, tag = 'input window, operand 16, single buffered']
    #allocation32 [shape = 'u8[512]{0}', space=vmem, size = 0x400, scoped, tag = 'input window, operand 17, single buffered']
    #allocation33 [shape = 's32[1]{0}', space=sflag, size = 0x4, scoped, tag = 'scoped memory for transformer_encoder.2']
    #allocation34 [shape = 'u8[8192]{0}', space=vmem, size = 0x2000, scoped, tag = 'output window, operand 0']
    %23 = vsyncpa [#allocation6], 0
    %s24 = scalar_lea.sflag [#allocation6], 1
    %25 = vsyncpa %s24, 0
    %26 = vsyncpa [#allocation9], 0
    %s27 = scalar_lea.sflag [#allocation9], 1
    %28 = vsyncpa %s27, 0
    %29 = vsyncpa [#allocation12], 0
    %30 = vsyncpa [#allocation15], 0
    %31 = vsyncpa [#allocation18], 0
    %32 = vsyncpa [#allocation21], 0
    %33 = vsyncpa [#allocation24], 0
    %34 = vsyncpa [#allocation27], 0
    %35 = vsyncpa [#allocation30], 0
    %36 = vsyncpa [#allocation33], 0
    %37 = vsyncpa [#allocation7], 0
    %s38 = scalar_lea.sflag [#allocation7], 1
    %39 = vsyncpa %s38, 0
    loop: start=0, step=1, limit=4
    $region2: #{transformer_encoder.2} parent=1 // loop_pre_header
      _
    $region3: #{transformer_encoder.2} parent=1 // loop_header
      %s41 = sphi 0, %s45
      %p42 = scmp.ge.s32.totalorder %s41, 4
      %s48 = sphi 0, %s60
      %s49 = sphi 0, %s56
      %s50 = sphi 0, %s48
      %s51 = sphi 0, %s49
      %s52 = sphi 0, %s50
      %s53 = sphi 0, %s51
      %s65 = sphi 0, %s67
      %s68 = sphi 0, %s65
      %s69 = sphi 0, %s68
      %s85 = sphi 0, %s69
      %s91 = sphi 0, %s93
      %s94 = sphi 0, %s91
      %s95 = sphi 0, %s94
      %s111 = sphi 0, %s95
      %s115 = sphi 0, %s115
      %s117 = sphi 0, %s115
      %s118 = sphi 0, %s117
      %s132 = sphi 0, %s118
      %s136 = sphi 0, %s136
      %s138 = sphi 0, %s136
      %s139 = sphi 0, %s138
      %s153 = sphi 0, %s139
      %s157 = sphi 0, %s157
      %s159 = sphi 0, %s157
      %s160 = sphi 0, %s159
      %s174 = sphi 0, %s160
      %s178 = sphi 0, %s178
      %s180 = sphi 0, %s178
      %s181 = sphi 0, %s180
      %s195 = sphi 0, %s181
      %s199 = sphi 0, %s199
      %s201 = sphi 0, %s199
      %s202 = sphi 0, %s201
      %s216 = sphi 0, %s202
      %s220 = sphi 0, %s220
      %s222 = sphi 0, %s220
      %s223 = sphi 0, %s222
      %s237 = sphi 0, %s223
      %s241 = sphi 0, %s241
      %s243 = sphi 0, %s241
      %s244 = sphi 0, %s243
      %s258 = sphi 0, %s244
      %s262 = sphi 0, %s262
      %s264 = sphi 0, %s262
      %s265 = sphi 0, %s264
      %s279 = sphi 0, %s265
      %s283 = sphi 0, %s283
      %s285 = sphi 0, %s283
      %s286 = sphi 0, %s285
      %s300 = sphi 0, %s286
      %s304 = sphi 0, %s304
      %s306 = sphi 0, %s304
      %s307 = sphi 0, %s306
      %s321 = sphi 0, %s307
      %s325 = sphi 0, %s325
      %s327 = sphi 0, %s325
      %s328 = sphi 0, %s327
      %s342 = sphi 0, %s328
      %s346 = sphi 0, %s346
      %s348 = sphi 0, %s346
      %s349 = sphi 0, %s348
      %s363 = sphi 0, %s349
      %s367 = sphi 0, %s367
      %s369 = sphi 0, %s367
      %s370 = sphi 0, %s369
      %s384 = sphi 0, %s370
      %s388 = sphi 0, %s388
      %s390 = sphi 0, %s388
      %s391 = sphi 0, %s390
      %s405 = sphi 0, %s391
      %s409 = sphi 0, %s409
      %s411 = sphi 0, %s409
      %s412 = sphi 0, %s411
      %s426 = sphi 0, %s412
      %s430 = sphi 0, %s430
      %s432 = sphi 0, %s430
      %s433 = sphi 0, %s432
      %s447 = sphi 0, %s433
      %s455 = sphi 0, %s457
      %s458 = sphi 0, %s455
      %s459 = sphi 0, %s458
      %s475 = sphi 0, %s459
    $region4: #{transformer_encoder.2} parent=1 // loop_header_branch
      %44 = sbr.rel (%p42) target = $region8
    $region5: #{transformer_encoder.2} parent=1 // loop_body
      %s46 = ssub.s32 %s41, 1
      %s47 = ssub.s32 %s41, 2
      %s54 = sadd.s32 1, %s49
      %p55 = scmp.ge.s32.totalorder %s54, 1
      %s56 = scalar_select %p55, 0, %s54
      %s57 = sadd.s32 1, %s48
      %s58 = scalar_select %p55, %s57, %s48
      %p59 = scmp.ge.s32.totalorder %s58, 2
      %s60 = scalar_select %p59, 0, %s58
      %s61 = ssub.s32 %s48, %s60
      %s62 = ssub.s32 %s49, %s56
      %s63 = sor.u32 %s61, %s62
      %p64 = scmp.eq.s32.totalorder %s63, 0
      %s66 = sadd.s32 %s65, 1
      %s67 = scalar_select %p64, %s65, %s66
      %p70 = pneg %p64
      %p71 = scmp.eq.s32.totalorder %s41, 1
      %p72 = por %p70, %p71
      %p73 = scmp.ne.s32.totalorder %s65, %s68
      %p74 = scmp.eq.s32.totalorder %s41, 0
      %p75 = por %p73, %p74
      %p76 = scmp.ne.s32.totalorder %s65, %s68
      %p77 = scmp.eq.s32.totalorder %s46, 1
      %p78 = por %p76, %p77
      %p79 = scmp.ne.s32.totalorder %s68, %s69
      %p80 = scmp.eq.s32.totalorder %s46, 0
      %p81 = por %p79, %p80
      %p82 = scmp.ne.s32.totalorder %s68, %s69
      %p83 = scmp.eq.s32.totalorder %s47, 1
      %p84 = por %p82, %p83
      %p86 = scmp.ne.s32.totalorder %s69, %s85
      %p87 = scmp.eq.s32.totalorder %s47, 0
      %p88 = por %p86, %p87
      %s89 = ssub.s32 %s48, %s60
      %p90 = scmp.eq.s32.totalorder %s89, 0
      %s92 = sadd.s32 %s91, 1
      %s93 = scalar_select %p90, %s91, %s92
      %p96 = pneg %p90
      %p97 = scmp.eq.s32.totalorder %s41, 1
      %p98 = por %p96, %p97
      %p99 = scmp.ne.s32.totalorder %s91, %s94
      %p100 = scmp.eq.s32.totalorder %s41, 0
      %p101 = por %p99, %p100
      %p102 = scmp.ne.s32.totalorder %s91, %s94
      %p103 = scmp.eq.s32.totalorder %s46, 1
      %p104 = por %p102, %p103
      %p105 = scmp.ne.s32.totalorder %s94, %s95
      %p106 = scmp.eq.s32.totalorder %s46, 0
      %p107 = por %p105, %p106
      %p108 = scmp.ne.s32.totalorder %s94, %s95
      %p109 = scmp.eq.s32.totalorder %s47, 1
      %p110 = por %p108, %p109
      %p112 = scmp.ne.s32.totalorder %s95, %s111
      %p113 = scmp.eq.s32.totalorder %s47, 0
      %p114 = por %p112, %p113
      %s116 = sadd.s32 %s115, 1
      %p119 = scmp.eq.s32.totalorder %s41, 1
      %p120 = scmp.ne.s32.totalorder %s115, %s117
      %p121 = scmp.eq.s32.totalorder %s41, 0
      %p122 = por %p120, %p121
      %p123 = scmp.ne.s32.totalorder %s115, %s117
      %p124 = scmp.eq.s32.totalorder %s46, 1
      %p125 = por %p123, %p124
      %p126 = scmp.ne.s32.totalorder %s117, %s118
      %p127 = scmp.eq.s32.totalorder %s46, 0
      %p128 = por %p126, %p127
      %p129 = scmp.ne.s32.totalorder %s117, %s118
      %p130 = scmp.eq.s32.totalorder %s47, 1
      %p131 = por %p129, %p130
      %p133 = scmp.ne.s32.totalorder %s118, %s132
      %p134 = scmp.eq.s32.totalorder %s47, 0
      %p135 = por %p133, %p134
      %s137 = sadd.s32 %s136, 1
      %p140 = scmp.eq.s32.totalorder %s41, 1
      %p141 = scmp.ne.s32.totalorder %s136, %s138
      %p142 = scmp.eq.s32.totalorder %s41, 0
      %p143 = por %p141, %p142
      %p144 = scmp.ne.s32.totalorder %s136, %s138
      %p145 = scmp.eq.s32.totalorder %s46, 1
      %p146 = por %p144, %p145
      %p147 = scmp.ne.s32.totalorder %s138, %s139
      %p148 = scmp.eq.s32.totalorder %s46, 0
      %p149 = por %p147, %p148
      %p150 = scmp.ne.s32.totalorder %s138, %s139
      %p151 = scmp.eq.s32.totalorder %s47, 1
      %p152 = por %p150, %p151
      %p154 = scmp.ne.s32.totalorder %s139, %s153
      %p155 = scmp.eq.s32.totalorder %s47, 0
      %p156 = por %p154, %p155
      %s158 = sadd.s32 %s157, 1
      %p161 = scmp.eq.s32.totalorder %s41, 1
      %p162 = scmp.ne.s32.totalorder %s157, %s159
      %p163 = scmp.eq.s32.totalorder %s41, 0
      %p164 = por %p162, %p163
      %p165 = scmp.ne.s32.totalorder %s157, %s159
      %p166 = scmp.eq.s32.totalorder %s46, 1
      %p167 = por %p165, %p166
      %p168 = scmp.ne.s32.totalorder %s159, %s160
      %p169 = scmp.eq.s32.totalorder %s46, 0
      %p170 = por %p168, %p169
      %p171 = scmp.ne.s32.totalorder %s159, %s160
      %p172 = scmp.eq.s32.totalorder %s47, 1
      %p173 = por %p171, %p172
      %p175 = scmp.ne.s32.totalorder %s160, %s174
      %p176 = scmp.eq.s32.totalorder %s47, 0
      %p177 = por %p175, %p176
      %s179 = sadd.s32 %s178, 1
      %p182 = scmp.eq.s32.totalorder %s41, 1
      %p183 = scmp.ne.s32.totalorder %s178, %s180
      %p184 = scmp.eq.s32.totalorder %s41, 0
      %p185 = por %p183, %p184
      %p186 = scmp.ne.s32.totalorder %s178, %s180
      %p187 = scmp.eq.s32.totalorder %s46, 1
      %p188 = por %p186, %p187
      %p189 = scmp.ne.s32.totalorder %s180, %s181
      %p190 = scmp.eq.s32.totalorder %s46, 0
      %p191 = por %p189, %p190
      %p192 = scmp.ne.s32.totalorder %s180, %s181
      %p193 = scmp.eq.s32.totalorder %s47, 1
      %p194 = por %p192, %p193
      %p196 = scmp.ne.s32.totalorder %s181, %s195
      %p197 = scmp.eq.s32.totalorder %s47, 0
      %p198 = por %p196, %p197
      %s200 = sadd.s32 %s199, 1
      %p203 = scmp.eq.s32.totalorder %s41, 1
      %p204 = scmp.ne.s32.totalorder %s199, %s201
      %p205 = scmp.eq.s32.totalorder %s41, 0
      %p206 = por %p204, %p205
      %p207 = scmp.ne.s32.totalorder %s199, %s201
      %p208 = scmp.eq.s32.totalorder %s46, 1
      %p209 = por %p207, %p208
      %p210 = scmp.ne.s32.totalorder %s201, %s202
      %p211 = scmp.eq.s32.totalorder %s46, 0
      %p212 = por %p210, %p211
      %p213 = scmp.ne.s32.totalorder %s201, %s202
      %p214 = scmp.eq.s32.totalorder %s47, 1
      %p215 = por %p213, %p214
      %p217 = scmp.ne.s32.totalorder %s202, %s216
      %p218 = scmp.eq.s32.totalorder %s47, 0
      %p219 = por %p217, %p218
      %s221 = sadd.s32 %s220, 1
      %p224 = scmp.eq.s32.totalorder %s41, 1
      %p225 = scmp.ne.s32.totalorder %s220, %s222
      %p226 = scmp.eq.s32.totalorder %s41, 0
      %p227 = por %p225, %p226
      %p228 = scmp.ne.s32.totalorder %s220, %s222
      %p229 = scmp.eq.s32.totalorder %s46, 1
      %p230 = por %p228, %p229
      %p231 = scmp.ne.s32.totalorder %s222, %s223
      %p232 = scmp.eq.s32.totalorder %s46, 0
      %p233 = por %p231, %p232
      %p234 = scmp.ne.s32.totalorder %s222, %s223
      %p235 = scmp.eq.s32.totalorder %s47, 1
      %p236 = por %p234, %p235
      %p238 = scmp.ne.s32.totalorder %s223, %s237
      %p239 = scmp.eq.s32.totalorder %s47, 0
      %p240 = por %p238, %p239
      %s242 = sadd.s32 %s241, 1
      %p245 = scmp.eq.s32.totalorder %s41, 1
      %p246 = scmp.ne.s32.totalorder %s241, %s243
      %p247 = scmp.eq.s32.totalorder %s41, 0
      %p248 = por %p246, %p247
      %p249 = scmp.ne.s32.totalorder %s241, %s243
      %p250 = scmp.eq.s32.totalorder %s46, 1
      %p251 = por %p249, %p250
      %p252 = scmp.ne.s32.totalorder %s243, %s244
      %p253 = scmp.eq.s32.totalorder %s46, 0
      %p254 = por %p252, %p253
      %p255 = scmp.ne.s32.totalorder %s243, %s244
      %p256 = scmp.eq.s32.totalorder %s47, 1
      %p257 = por %p255, %p256
      %p259 = scmp.ne.s32.totalorder %s244, %s258
      %p260 = scmp.eq.s32.totalorder %s47, 0
      %p261 = por %p259, %p260
      %s263 = sadd.s32 %s262, 1
      %p266 = scmp.eq.s32.totalorder %s41, 1
      %p267 = scmp.ne.s32.totalorder %s262, %s264
      %p268 = scmp.eq.s32.totalorder %s41, 0
      %p269 = por %p267, %p268
      %p270 = scmp.ne.s32.totalorder %s262, %s264
      %p271 = scmp.eq.s32.totalorder %s46, 1
      %p272 = por %p270, %p271
      %p273 = scmp.ne.s32.totalorder %s264, %s265
      %p274 = scmp.eq.s32.totalorder %s46, 0
      %p275 = por %p273, %p274
      %p276 = scmp.ne.s32.totalorder %s264, %s265
      %p277 = scmp.eq.s32.totalorder %s47, 1
      %p278 = por %p276, %p277
      %p280 = scmp.ne.s32.totalorder %s265, %s279
      %p281 = scmp.eq.s32.totalorder %s47, 0
      %p282 = por %p280, %p281
      %s284 = sadd.s32 %s283, 1
      %p287 = scmp.eq.s32.totalorder %s41, 1
      %p288 = scmp.ne.s32.totalorder %s283, %s285
      %p289 = scmp.eq.s32.totalorder %s41, 0
      %p290 = por %p288, %p289
      %p291 = scmp.ne.s32.totalorder %s283, %s285
      %p292 = scmp.eq.s32.totalorder %s46, 1
      %p293 = por %p291, %p292
      %p294 = scmp.ne.s32.totalorder %s285, %s286
      %p295 = scmp.eq.s32.totalorder %s46, 0
      %p296 = por %p294, %p295
      %p297 = scmp.ne.s32.totalorder %s285, %s286
      %p298 = scmp.eq.s32.totalorder %s47, 1
      %p299 = por %p297, %p298
      %p301 = scmp.ne.s32.totalorder %s286, %s300
      %p302 = scmp.eq.s32.totalorder %s47, 0
      %p303 = por %p301, %p302
      %s305 = sadd.s32 %s304, 1
      %p308 = scmp.eq.s32.totalorder %s41, 1
      %p309 = scmp.ne.s32.totalorder %s304, %s306
      %p310 = scmp.eq.s32.totalorder %s41, 0
      %p311 = por %p309, %p310
      %p312 = scmp.ne.s32.totalorder %s304, %s306
      %p313 = scmp.eq.s32.totalorder %s46, 1
      %p314 = por %p312, %p313
      %p315 = scmp.ne.s32.totalorder %s306, %s307
      %p316 = scmp.eq.s32.totalorder %s46, 0
      %p317 = por %p315, %p316
      %p318 = scmp.ne.s32.totalorder %s306, %s307
      %p319 = scmp.eq.s32.totalorder %s47, 1
      %p320 = por %p318, %p319
      %p322 = scmp.ne.s32.totalorder %s307, %s321
      %p323 = scmp.eq.s32.totalorder %s47, 0
      %p324 = por %p322, %p323
      %s326 = sadd.s32 %s325, 1
      %p329 = scmp.eq.s32.totalorder %s41, 1
      %p330 = scmp.ne.s32.totalorder %s325, %s327
      %p331 = scmp.eq.s32.totalorder %s41, 0
      %p332 = por %p330, %p331
      %p333 = scmp.ne.s32.totalorder %s325, %s327
      %p334 = scmp.eq.s32.totalorder %s46, 1
      %p335 = por %p333, %p334
      %p336 = scmp.ne.s32.totalorder %s327, %s328
      %p337 = scmp.eq.s32.totalorder %s46, 0
      %p338 = por %p336, %p337
      %p339 = scmp.ne.s32.totalorder %s327, %s328
      %p340 = scmp.eq.s32.totalorder %s47, 1
      %p341 = por %p339, %p340
      %p343 = scmp.ne.s32.totalorder %s328, %s342
      %p344 = scmp.eq.s32.totalorder %s47, 0
      %p345 = por %p343, %p344
      %s347 = sadd.s32 %s346, 1
      %p350 = scmp.eq.s32.totalorder %s41, 1
      %p351 = scmp.ne.s32.totalorder %s346, %s348
      %p352 = scmp.eq.s32.totalorder %s41, 0
      %p353 = por %p351, %p352
      %p354 = scmp.ne.s32.totalorder %s346, %s348
      %p355 = scmp.eq.s32.totalorder %s46, 1
      %p356 = por %p354, %p355
      %p357 = scmp.ne.s32.totalorder %s348, %s349
      %p358 = scmp.eq.s32.totalorder %s46, 0
      %p359 = por %p357, %p358
      %p360 = scmp.ne.s32.totalorder %s348, %s349
      %p361 = scmp.eq.s32.totalorder %s47, 1
      %p362 = por %p360, %p361
      %p364 = scmp.ne.s32.totalorder %s349, %s363
      %p365 = scmp.eq.s32.totalorder %s47, 0
      %p366 = por %p364, %p365
      %s368 = sadd.s32 %s367, 1
      %p371 = scmp.eq.s32.totalorder %s41, 1
      %p372 = scmp.ne.s32.totalorder %s367, %s369
      %p373 = scmp.eq.s32.totalorder %s41, 0
      %p374 = por %p372, %p373
      %p375 = scmp.ne.s32.totalorder %s367, %s369
      %p376 = scmp.eq.s32.totalorder %s46, 1
      %p377 = por %p375, %p376
      %p378 = scmp.ne.s32.totalorder %s369, %s370
      %p379 = scmp.eq.s32.totalorder %s46, 0
      %p380 = por %p378, %p379
      %p381 = scmp.ne.s32.totalorder %s369, %s370
      %p382 = scmp.eq.s32.totalorder %s47, 1
      %p383 = por %p381, %p382
      %p385 = scmp.ne.s32.totalorder %s370, %s384
      %p386 = scmp.eq.s32.totalorder %s47, 0
      %p387 = por %p385, %p386
      %s389 = sadd.s32 %s388, 1
      %p392 = scmp.eq.s32.totalorder %s41, 1
      %p393 = scmp.ne.s32.totalorder %s388, %s390
      %p394 = scmp.eq.s32.totalorder %s41, 0
      %p395 = por %p393, %p394
      %p396 = scmp.ne.s32.totalorder %s388, %s390
      %p397 = scmp.eq.s32.totalorder %s46, 1
      %p398 = por %p396, %p397
      %p399 = scmp.ne.s32.totalorder %s390, %s391
      %p400 = scmp.eq.s32.totalorder %s46, 0
      %p401 = por %p399, %p400
      %p402 = scmp.ne.s32.totalorder %s390, %s391
      %p403 = scmp.eq.s32.totalorder %s47, 1
      %p404 = por %p402, %p403
      %p406 = scmp.ne.s32.totalorder %s391, %s405
      %p407 = scmp.eq.s32.totalorder %s47, 0
      %p408 = por %p406, %p407
      %s410 = sadd.s32 %s409, 1
      %p413 = scmp.eq.s32.totalorder %s41, 1
      %p414 = scmp.ne.s32.totalorder %s409, %s411
      %p415 = scmp.eq.s32.totalorder %s41, 0
      %p416 = por %p414, %p415
      %p417 = scmp.ne.s32.totalorder %s409, %s411
      %p418 = scmp.eq.s32.totalorder %s46, 1
      %p419 = por %p417, %p418
      %p420 = scmp.ne.s32.totalorder %s411, %s412
      %p421 = scmp.eq.s32.totalorder %s46, 0
      %p422 = por %p420, %p421
      %p423 = scmp.ne.s32.totalorder %s411, %s412
      %p424 = scmp.eq.s32.totalorder %s47, 1
      %p425 = por %p423, %p424
      %p427 = scmp.ne.s32.totalorder %s412, %s426
      %p428 = scmp.eq.s32.totalorder %s47, 0
      %p429 = por %p427, %p428
      %s431 = sadd.s32 %s430, 1
      %p434 = scmp.eq.s32.totalorder %s41, 1
      %p435 = scmp.ne.s32.totalorder %s430, %s432
      %p436 = scmp.eq.s32.totalorder %s41, 0
      %p437 = por %p435, %p436
      %p438 = scmp.ne.s32.totalorder %s430, %s432
      %p439 = scmp.eq.s32.totalorder %s46, 1
      %p440 = por %p438, %p439
      %p441 = scmp.ne.s32.totalorder %s432, %s433
      %p442 = scmp.eq.s32.totalorder %s46, 0
      %p443 = por %p441, %p442
      %p444 = scmp.ne.s32.totalorder %s432, %s433
      %p445 = scmp.eq.s32.totalorder %s47, 1
      %p446 = por %p444, %p445
      %p448 = scmp.ne.s32.totalorder %s433, %s447
      %p449 = scmp.eq.s32.totalorder %s47, 0
      %p450 = por %p448, %p449
      %s451 = ssub.s32 %s48, %s60
      %s452 = ssub.s32 %s49, %s56
      %s453 = sor.u32 %s451, %s452
      %p454 = scmp.eq.s32.totalorder %s453, 0
      %s456 = sadd.s32 %s455, 1
      %s457 = scalar_select %p454, %s455, %s456
      %p460 = pneg %p454
      %p461 = scmp.eq.s32.totalorder %s41, 1
      %p462 = por %p460, %p461
      %p463 = scmp.ne.s32.totalorder %s455, %s458
      %p464 = scmp.eq.s32.totalorder %s41, 0
      %p465 = por %p463, %p464
      %p466 = scmp.ne.s32.totalorder %s455, %s458
      %p467 = scmp.eq.s32.totalorder %s46, 1
      %p468 = por %p466, %p467
      %p469 = scmp.ne.s32.totalorder %s458, %s459
      %p470 = scmp.eq.s32.totalorder %s46, 0
      %p471 = por %p469, %p470
      %p472 = scmp.ne.s32.totalorder %s458, %s459
      %p473 = scmp.eq.s32.totalorder %s47, 1
      %p474 = por %p472, %p473
      %p476 = scmp.ne.s32.totalorder %s459, %s475
      %p477 = scmp.eq.s32.totalorder %s47, 0
      %p478 = por %p476, %p477
      %p479 = scmp.le.s32.totalorder 1, %s41
      %p480 = scmp.lt.s32.totalorder %s41, 3
      %p481 = pnand %p479, %p480
      %p482 = pneg %p481
      // Predicated region
      $region9: #{transformer_encoder.2} parent=5 // pred_check
        _
      $region10: #{transformer_encoder.2} parent=5 // pred_check_branch
        %484 = sbr.rel (%p481) target = $region12
      $region11: #{transformer_encoder.2} parent=5 // pred_region
        %s485 = ssub.s32 %s41, 1
        // Predicated region
        $region13: #{transformer_encoder.2} parent=11 // pred_check
          %p486 = pneg %p128
        $region14: #{transformer_encoder.2} parent=11 // pred_check_branch
          %488 = sbr.rel (%p486) target = $region16
        $region15: #{transformer_encoder.2} parent=11 // pred_region
          %s490 = ssub.s32 1024, 1024
          %491 = vsyncadd [#allocation9], %s490
          %s492 = sshll.u32 [#allocation10], 4
          %s493 = int_to_ptr.vmem [resolvable:$true] %s492
          %498 = dma.hbm_to_vmem [thread:$0]  %s2, 1024, %s493, [#allocation9], 64, 64, 4
        $region16: #{transformer_encoder.2} parent=11 // pred_fallthru
          _
        // Predicated region
        $region17: #{transformer_encoder.2} parent=11 // pred_check
          %p499 = pneg %p149
        $region18: #{transformer_encoder.2} parent=11 // pred_check_branch
          %501 = sbr.rel (%p499) target = $region20
        $region19: #{transformer_encoder.2} parent=11 // pred_region
          %s503 = ssub.s32 64, 64
          %504 = vsyncadd [#allocation12], %s503
          %s505 = sshll.u32 [#allocation11], 4
          %s506 = int_to_ptr.vmem [resolvable:$true] %s505
          %511 = dma.hbm_to_vmem [thread:$0]  %s3, 64, %s506, [#allocation12], 16, 16, 1
        $region20: #{transformer_encoder.2} parent=11 // pred_fallthru
          _
        // Predicated region
        $region21: #{transformer_encoder.2} parent=11 // pred_check
          %p512 = pneg %p170
        $region22: #{transformer_encoder.2} parent=11 // pred_check_branch
          %514 = sbr.rel (%p512) target = $region24
        $region23: #{transformer_encoder.2} parent=11 // pred_region
          %s516 = ssub.s32 1024, 1024
          %517 = vsyncadd [#allocation12], %s516
          %s518 = sshll.u32 [#allocation13], 4
          %s519 = int_to_ptr.vmem [resolvable:$true] %s518
          %524 = dma.hbm_to_vmem [thread:$0]  %s4, 1024, %s519, [#allocation12], 64, 64, 4
        $region24: #{transformer_encoder.2} parent=11 // pred_fallthru
          _
        // Predicated region
        $region25: #{transformer_encoder.2} parent=11 // pred_check
          %p525 = pneg %p191
        $region26: #{transformer_encoder.2} parent=11 // pred_check_branch
          %527 = sbr.rel (%p525) target = $region28
        $region27: #{transformer_encoder.2} parent=11 // pred_region
          %s529 = ssub.s32 64, 64
          %530 = vsyncadd [#allocation15], %s529
          %s531 = sshll.u32 [#allocation14], 4
          %s532 = int_to_ptr.vmem [resolvable:$true] %s531
          %537 = dma.hbm_to_vmem [thread:$0]  %s5, 64, %s532, [#allocation15], 16, 16, 1
        $region28: #{transformer_encoder.2} parent=11 // pred_fallthru
          _
        // Predicated region
        $region29: #{transformer_encoder.2} parent=11 // pred_check
          %p538 = pneg %p212
        $region30: #{transformer_encoder.2} parent=11 // pred_check_branch
          %540 = sbr.rel (%p538) target = $region32
        $region31: #{transformer_encoder.2} parent=11 // pred_region
          %s542 = ssub.s32 1024, 1024
          %543 = vsyncadd [#allocation15], %s542
          %s544 = sshll.u32 [#allocation16], 4
          %s545 = int_to_ptr.vmem [resolvable:$true] %s544
          %550 = dma.hbm_to_vmem [thread:$0]  %s6, 1024, %s545, [#allocation15], 64, 64, 4
        $region32: #{transformer_encoder.2} parent=11 // pred_fallthru
          _
        // Predicated region
        $region33: #{transformer_encoder.2} parent=11 // pred_check
          %p551 = pneg %p233
        $region34: #{transformer_encoder.2} parent=11 // pred_check_branch
          %553 = sbr.rel (%p551) target = $region36
        $region35: #{transformer_encoder.2} parent=11 // pred_region
          %s555 = ssub.s32 64, 64
          %556 = vsyncadd [#allocation18], %s555
          %s557 = sshll.u32 [#allocation17], 4
          %s558 = int_to_ptr.vmem [resolvable:$true] %s557
          %563 = dma.hbm_to_vmem [thread:$0]  %s7, 64, %s558, [#allocation18], 16, 16, 1
        $region36: #{transformer_encoder.2} parent=11 // pred_fallthru
          _
        // Predicated region
        $region37: #{transformer_encoder.2} parent=11 // pred_check
          %p564 = pneg %p254
        $region38: #{transformer_encoder.2} parent=11 // pred_check_branch
          %566 = sbr.rel (%p564) target = $region40
        $region39: #{transformer_encoder.2} parent=11 // pred_region
          %s568 = ssub.s32 256, 256
          %569 = vsyncadd [#allocation18], %s568
          %s570 = sshll.u32 [#allocation19], 4
          %s571 = int_to_ptr.vmem [resolvable:$true] %s570
          %576 = dma.hbm_to_vmem [thread:$0]  %s8, 256, %s571, [#allocation18], 64, 64, 4
        $region40: #{transformer_encoder.2} parent=11 // pred_fallthru
          _
        // Predicated region
        $region41: #{transformer_encoder.2} parent=11 // pred_check
          %p577 = pneg %p275
        $region42: #{transformer_encoder.2} parent=11 // pred_check_branch
          %579 = sbr.rel (%p577) target = $region44
        $region43: #{transformer_encoder.2} parent=11 // pred_region
          %s581 = ssub.s32 16, 16
          %582 = vsyncadd [#allocation21], %s581
          %s584 = sshll.u32 [#allocation20], 4
          %s585 = int_to_ptr.vmem [resolvable:$true] %s584
          %587 = dma.hbm_to_vmem [thread:$0]  %s9, 16, %s585, [#allocation21]
        $region44: #{transformer_encoder.2} parent=11 // pred_fallthru
          _
        // Predicated region
        $region45: #{transformer_encoder.2} parent=11 // pred_check
          %p588 = pneg %p296
        $region46: #{transformer_encoder.2} parent=11 // pred_check_branch
          %590 = sbr.rel (%p588) target = $region48
        $region47: #{transformer_encoder.2} parent=11 // pred_region
          %s592 = ssub.s32 16, 16
          %593 = vsyncadd [#allocation21], %s592
          %s595 = sshll.u32 [#allocation22], 4
          %s596 = int_to_ptr.vmem [resolvable:$true] %s595
          %598 = dma.hbm_to_vmem [thread:$0]  %s10, 16, %s596, [#allocation21]
        $region48: #{transformer_encoder.2} parent=11 // pred_fallthru
          _
        // Predicated region
        $region49: #{transformer_encoder.2} parent=11 // pred_check
          %p599 = pneg %p317
        $region50: #{transformer_encoder.2} parent=11 // pred_check_branch
          %601 = sbr.rel (%p599) target = $region52
        $region51: #{transformer_encoder.2} parent=11 // pred_region
          %s603 = ssub.s32 16, 16
          %604 = vsyncadd [#allocation24], %s603
          %s606 = sshll.u32 [#allocation23], 4
          %s607 = int_to_ptr.vmem [resolvable:$true] %s606
          %609 = dma.hbm_to_vmem [thread:$0]  %s11, 16, %s607, [#allocation24]
        $region52: #{transformer_encoder.2} parent=11 // pred_fallthru
          _
        // Predicated region
        $region53: #{transformer_encoder.2} parent=11 // pred_check
          %p610 = pneg %p338
        $region54: #{transformer_encoder.2} parent=11 // pred_check_branch
          %612 = sbr.rel (%p610) target = $region56
        $region55: #{transformer_encoder.2} parent=11 // pred_region
          %s614 = ssub.s32 256, 256
          %615 = vsyncadd [#allocation24], %s614
          %s616 = sshll.u32 [#allocation25], 4
          %s617 = int_to_ptr.vmem [resolvable:$true] %s616
          %622 = dma.hbm_to_vmem [thread:$0]  %s12, 256, %s617, [#allocation24], 64, 64, 4
        $region56: #{transformer_encoder.2} parent=11 // pred_fallthru
          _
        // Predicated region
        $region57: #{transformer_encoder.2} parent=11 // pred_check
          %p623 = pneg %p359
        $region58: #{transformer_encoder.2} parent=11 // pred_check_branch
          %625 = sbr.rel (%p623) target = $region60
        $region59: #{transformer_encoder.2} parent=11 // pred_region
          %s627 = ssub.s32 16, 16
          %628 = vsyncadd [#allocation27], %s627
          %s630 = sshll.u32 [#allocation26], 4
          %s631 = int_to_ptr.vmem [resolvable:$true] %s630
          %633 = dma.hbm_to_vmem [thread:$0]  %s13, 16, %s631, [#allocation27]
        $region60: #{transformer_encoder.2} parent=11 // pred_fallthru
          _
        // Predicated region
        $region61: #{transformer_encoder.2} parent=11 // pred_check
          %p634 = pneg %p380
        $region62: #{transformer_encoder.2} parent=11 // pred_check_branch
          %636 = sbr.rel (%p634) target = $region64
        $region63: #{transformer_encoder.2} parent=11 // pred_region
          %s638 = ssub.s32 512, 512
          %639 = vsyncadd [#allocation27], %s638
          %s640 = sshll.u32 [#allocation28], 4
          %s641 = int_to_ptr.vmem [resolvable:$true] %s640
          %646 = dma.hbm_to_vmem [thread:$0]  %s14, 512, %s641, [#allocation27], 64, 64, 4
        $region64: #{transformer_encoder.2} parent=11 // pred_fallthru
          _
        // Predicated region
        $region65: #{transformer_encoder.2} parent=11 // pred_check
          %p647 = pneg %p401
        $region66: #{transformer_encoder.2} parent=11 // pred_check_branch
          %649 = sbr.rel (%p647) target = $region68
        $region67: #{transformer_encoder.2} parent=11 // pred_region
          %s651 = ssub.s32 16, 16
          %652 = vsyncadd [#allocation30], %s651
          %s654 = sshll.u32 [#allocation29], 4
          %s655 = int_to_ptr.vmem [resolvable:$true] %s654
          %657 = dma.hbm_to_vmem [thread:$0]  %s15, 16, %s655, [#allocation30]
        $region68: #{transformer_encoder.2} parent=11 // pred_fallthru
          _
        // Predicated region
        $region69: #{transformer_encoder.2} parent=11 // pred_check
          %p658 = pneg %p422
        $region70: #{transformer_encoder.2} parent=11 // pred_check_branch
          %660 = sbr.rel (%p658) target = $region72
        $region71: #{transformer_encoder.2} parent=11 // pred_region
          %s662 = ssub.s32 16, 16
          %663 = vsyncadd [#allocation30], %s662
          %s665 = sshll.u32 [#allocation31], 4
          %s666 = int_to_ptr.vmem [resolvable:$true] %s665
          %668 = dma.hbm_to_vmem [thread:$0]  %s16, 16, %s666, [#allocation30]
        $region72: #{transformer_encoder.2} parent=11 // pred_fallthru
          _
        // Predicated region
        $region73: #{transformer_encoder.2} parent=11 // pred_check
          %p669 = pneg %p443
        $region74: #{transformer_encoder.2} parent=11 // pred_check_branch
          %671 = sbr.rel (%p669) target = $region76
        $region75: #{transformer_encoder.2} parent=11 // pred_region
          %s673 = ssub.s32 16, 16
          %674 = vsyncadd [#allocation33], %s673
          %s676 = sshll.u32 [#allocation32], 4
          %s677 = int_to_ptr.vmem [resolvable:$true] %s676
          %679 = dma.hbm_to_vmem [thread:$0]  %s17, 16, %s677, [#allocation33]
        $region76: #{transformer_encoder.2} parent=11 // pred_fallthru
          _
      $region12: #{transformer_encoder.2} parent=5 // pred_fallthru
        _
      %p680 = scmp.lt.s32.totalorder %s41, 2
      // Predicated region
      $region77: #{transformer_encoder.2} parent=5 // pred_check
        %p681 = pneg %p680
      $region78: #{transformer_encoder.2} parent=5 // pred_check_branch
        %683 = sbr.rel (%p681) target = $region80
      $region79: #{transformer_encoder.2} parent=5 // pred_region
        // Predicated region
        $region81: #{transformer_encoder.2} parent=79 // pred_check
          %p684 = pneg %p75
        $region82: #{transformer_encoder.2} parent=79 // pred_check_branch
          %686 = sbr.rel (%p684) target = $region84
        $region83: #{transformer_encoder.2} parent=79 // pred_region
          %s687 = sand.u32 %s65, 1
          %s688 = scalar_lea.sflag [#allocation6], %s687
          %s689 = sand.u32 %s65, 1
          %s690 = smul.addr %s689, 8
          %s691 = scalar_lea.vmem [#allocation5], %s690
          %s693 = ssub.s32 128, 128
          %694 = vsyncadd %s688, %s693
          %s695 = sadd.s32 %s49, %s48
          %s696 = smul.addr %s695, 128
          %s697 = scalar_lea.hbm %s0, %s696
          %s699 = sshll.u32 %s691, 4
          %s700 = int_to_ptr.vmem [resolvable:$true] %s699
          %702 = dma.hbm_to_vmem [thread:$0]  %s697, 128, %s700, %s688
        $region84: #{transformer_encoder.2} parent=79 // pred_fallthru
          _
        // Predicated region
        $region85: #{transformer_encoder.2} parent=79 // pred_check
          %p703 = pneg %p101
        $region86: #{transformer_encoder.2} parent=79 // pred_check_branch
          %705 = sbr.rel (%p703) target = $region88
        $region87: #{transformer_encoder.2} parent=79 // pred_region
          %s706 = sand.u32 %s41, 1
          %s707 = scalar_lea.sflag [#allocation9], %s706
          %s708 = sand.u32 %s91, 1
          %s709 = smul.addr %s708, 8
          %s710 = scalar_lea.vmem [#allocation8], %s709
          %s712 = ssub.s32 128, 128
          %713 = vsyncadd %s707, %s712
          %s714 = smul.addr %s48, 128
          %s715 = scalar_lea.hbm %s1, %s714
          %s717 = sshll.u32 %s710, 4
          %s718 = int_to_ptr.vmem [resolvable:$true] %s717
          %720 = dma.hbm_to_vmem [thread:$0]  %s715, 128, %s718, %s707
        $region88: #{transformer_encoder.2} parent=79 // pred_fallthru
          _
      $region80: #{transformer_encoder.2} parent=5 // pred_fallthru
        _
      %p721 = scmp.le.s32.totalorder 1, %s41
      %p722 = scmp.lt.s32.totalorder %s41, 3
      %p723 = pnand %p721, %p722
      %p724 = pneg %p723
      // Predicated region
      $region89: #{transformer_encoder.2} parent=5 // pred_check
        _
      $region90: #{transformer_encoder.2} parent=5 // pred_check_branch
        %726 = sbr.rel (%p723) target = $region92
      $region91: #{transformer_encoder.2} parent=5 // pred_region
        %s727 = ssub.s32 %s41, 1
        %s728 = sand.u32 %s68, 1
        %s729 = scalar_lea.sflag [#allocation6], %s728
        %s730 = sand.u32 %s68, 1
        %s731 = smul.addr %s730, 8
        %s732 = scalar_lea.vmem [#allocation5], %s731
        // Predicated region
        $region93: #{transformer_encoder.2} parent=91 // pred_check
          %p733 = pneg %p81
        $region94: #{transformer_encoder.2} parent=91 // pred_check_branch
          %735 = sbr.rel (%p733) target = $region96
        $region95: #{transformer_encoder.2} parent=91 // pred_region
          %736 = dma.done %s729, 128
        $region96: #{transformer_encoder.2} parent=91 // pred_fallthru
          _
        %s737 = sand.u32 %s46, 1
        %s738 = scalar_lea.sflag [#allocation9], %s737
        %s739 = sand.u32 %s94, 1
        %s740 = smul.addr %s739, 8
        %s741 = scalar_lea.vmem [#allocation8], %s740
        // Predicated region
        $region97: #{transformer_encoder.2} parent=91 // pred_check
          %p742 = pneg %p107
        $region98: #{transformer_encoder.2} parent=91 // pred_check_branch
          %744 = sbr.rel (%p742) target = $region100
        $region99: #{transformer_encoder.2} parent=91 // pred_region
          %745 = dma.done %s738, 128
        $region100: #{transformer_encoder.2} parent=91 // pred_fallthru
          _
        // Predicated region
        $region101: #{transformer_encoder.2} parent=91 // pred_check
          %p746 = pneg %p128
        $region102: #{transformer_encoder.2} parent=91 // pred_check_branch
          %748 = sbr.rel (%p746) target = $region104
        $region103: #{transformer_encoder.2} parent=91 // pred_region
          %749 = dma.done [#allocation9], 1024
        $region104: #{transformer_encoder.2} parent=91 // pred_fallthru
          _
        // Predicated region
        $region105: #{transformer_encoder.2} parent=91 // pred_check
          %p750 = pneg %p149
        $region106: #{transformer_encoder.2} parent=91 // pred_check_branch
          %752 = sbr.rel (%p750) target = $region108
        $region107: #{transformer_encoder.2} parent=91 // pred_region
          %753 = dma.done [#allocation12], 64
        $region108: #{transformer_encoder.2} parent=91 // pred_fallthru
          _
        // Predicated region
        $region109: #{transformer_encoder.2} parent=91 // pred_check
          %p754 = pneg %p170
        $region110: #{transformer_encoder.2} parent=91 // pred_check_branch
          %756 = sbr.rel (%p754) target = $region112
        $region111: #{transformer_encoder.2} parent=91 // pred_region
          %757 = dma.done [#allocation12], 1024
        $region112: #{transformer_encoder.2} parent=91 // pred_fallthru
          _
        // Predicated region
        $region113: #{transformer_encoder.2} parent=91 // pred_check
          %p758 = pneg %p191
        $region114: #{transformer_encoder.2} parent=91 // pred_check_branch
          %760 = sbr.rel (%p758) target = $region116
        $region115: #{transformer_encoder.2} parent=91 // pred_region
          %761 = dma.done [#allocation15], 64
        $region116: #{transformer_encoder.2} parent=91 // pred_fallthru
          _
        // Predicated region
        $region117: #{transformer_encoder.2} parent=91 // pred_check
          %p762 = pneg %p212
        $region118: #{transformer_encoder.2} parent=91 // pred_check_branch
          %764 = sbr.rel (%p762) target = $region120
        $region119: #{transformer_encoder.2} parent=91 // pred_region
          %765 = dma.done [#allocation15], 1024
        $region120: #{transformer_encoder.2} parent=91 // pred_fallthru
          _
        // Predicated region
        $region121: #{transformer_encoder.2} parent=91 // pred_check
          %p766 = pneg %p233
        $region122: #{transformer_encoder.2} parent=91 // pred_check_branch
          %768 = sbr.rel (%p766) target = $region124
        $region123: #{transformer_encoder.2} parent=91 // pred_region
          %769 = dma.done [#allocation18], 64
        $region124: #{transformer_encoder.2} parent=91 // pred_fallthru
          _
        // Predicated region
        $region125: #{transformer_encoder.2} parent=91 // pred_check
          %p770 = pneg %p254
        $region126: #{transformer_encoder.2} parent=91 // pred_check_branch
          %772 = sbr.rel (%p770) target = $region128
        $region127: #{transformer_encoder.2} parent=91 // pred_region
          %773 = dma.done [#allocation18], 256
        $region128: #{transformer_encoder.2} parent=91 // pred_fallthru
          _
        // Predicated region
        $region129: #{transformer_encoder.2} parent=91 // pred_check
          %p774 = pneg %p275
        $region130: #{transformer_encoder.2} parent=91 // pred_check_branch
          %776 = sbr.rel (%p774) target = $region132
        $region131: #{transformer_encoder.2} parent=91 // pred_region
          %777 = dma.done [#allocation21], 16
        $region132: #{transformer_encoder.2} parent=91 // pred_fallthru
          _
        // Predicated region
        $region133: #{transformer_encoder.2} parent=91 // pred_check
          %p778 = pneg %p296
        $region134: #{transformer_encoder.2} parent=91 // pred_check_branch
          %780 = sbr.rel (%p778) target = $region136
        $region135: #{transformer_encoder.2} parent=91 // pred_region
          %781 = dma.done [#allocation21], 16
        $region136: #{transformer_encoder.2} parent=91 // pred_fallthru
          _
        // Predicated region
        $region137: #{transformer_encoder.2} parent=91 // pred_check
          %p782 = pneg %p317
        $region138: #{transformer_encoder.2} parent=91 // pred_check_branch
          %784 = sbr.rel (%p782) target = $region140
        $region139: #{transformer_encoder.2} parent=91 // pred_region
          %785 = dma.done [#allocation24], 16
        $region140: #{transformer_encoder.2} parent=91 // pred_fallthru
          _
        // Predicated region
        $region141: #{transformer_encoder.2} parent=91 // pred_check
          %p786 = pneg %p338
        $region142: #{transformer_encoder.2} parent=91 // pred_check_branch
          %788 = sbr.rel (%p786) target = $region144
        $region143: #{transformer_encoder.2} parent=91 // pred_region
          %789 = dma.done [#allocation24], 256
        $region144: #{transformer_encoder.2} parent=91 // pred_fallthru
          _
        // Predicated region
        $region145: #{transformer_encoder.2} parent=91 // pred_check
          %p790 = pneg %p359
        $region146: #{transformer_encoder.2} parent=91 // pred_check_branch
          %792 = sbr.rel (%p790) target = $region148
        $region147: #{transformer_encoder.2} parent=91 // pred_region
          %793 = dma.done [#allocation27], 16
        $region148: #{transformer_encoder.2} parent=91 // pred_fallthru
          _
        // Predicated region
        $region149: #{transformer_encoder.2} parent=91 // pred_check
          %p794 = pneg %p380
        $region150: #{transformer_encoder.2} parent=91 // pred_check_branch
          %796 = sbr.rel (%p794) target = $region152
        $region151: #{transformer_encoder.2} parent=91 // pred_region
          %797 = dma.done [#allocation27], 512
        $region152: #{transformer_encoder.2} parent=91 // pred_fallthru
          _
        // Predicated region
        $region153: #{transformer_encoder.2} parent=91 // pred_check
          %p798 = pneg %p401
        $region154: #{transformer_encoder.2} parent=91 // pred_check_branch
          %800 = sbr.rel (%p798) target = $region156
        $region155: #{transformer_encoder.2} parent=91 // pred_region
          %801 = dma.done [#allocation30], 16
        $region156: #{transformer_encoder.2} parent=91 // pred_fallthru
          _
        // Predicated region
        $region157: #{transformer_encoder.2} parent=91 // pred_check
          %p802 = pneg %p422
        $region158: #{transformer_encoder.2} parent=91 // pred_check_branch
          %804 = sbr.rel (%p802) target = $region160
        $region159: #{transformer_encoder.2} parent=91 // pred_region
          %805 = dma.done [#allocation30], 16
        $region160: #{transformer_encoder.2} parent=91 // pred_fallthru
          _
        // Predicated region
        $region161: #{transformer_encoder.2} parent=91 // pred_check
          %p806 = pneg %p443
        $region162: #{transformer_encoder.2} parent=91 // pred_check_branch
          %808 = sbr.rel (%p806) target = $region164
        $region163: #{transformer_encoder.2} parent=91 // pred_region
          %809 = dma.done [#allocation33], 16
        $region164: #{transformer_encoder.2} parent=91 // pred_fallthru
          _
        %s810 = sand.u32 %s68, 1
        %s811 = scalar_lea.sflag [#allocation6], %s810
        %s812 = sand.u32 %s68, 1
        %s813 = smul.addr %s812, 8
        %s814 = scalar_lea.vmem [#allocation5], %s813
        %p815 = pneg %p81
        %p816 = pneg %p78
        %s817 = sand.u32 %s46, 1
        %s818 = scalar_lea.sflag [#allocation9], %s817
        %s819 = sand.u32 %s94, 1
        %s820 = smul.addr %s819, 8
        %s821 = scalar_lea.vmem [#allocation8], %s820
        %p822 = pneg %p107
        %p823 = pneg %p104
        %p824 = pneg %p128
        %p825 = pneg %p125
        %p826 = pneg %p149
        %p827 = pneg %p146
        %p828 = pneg %p170
        %p829 = pneg %p167
        %p830 = pneg %p191
        %p831 = pneg %p188
        %p832 = pneg %p212
        %p833 = pneg %p209
        %p834 = pneg %p233
        %p835 = pneg %p230
        %p836 = pneg %p254
        %p837 = pneg %p251
        %p838 = pneg %p275
        %p839 = pneg %p272
        %p840 = pneg %p296
        %p841 = pneg %p293
        %p842 = pneg %p317
        %p843 = pneg %p314
        %p844 = pneg %p338
        %p845 = pneg %p335
        %p846 = pneg %p359
        %p847 = pneg %p356
        %p848 = pneg %p380
        %p849 = pneg %p377
        %p850 = pneg %p401
        %p851 = pneg %p398
        %p852 = pneg %p422
        %p853 = pneg %p419
        %p854 = pneg %p443
        %p855 = pneg %p440
        %p856 = pneg %p471
        %p857 = pneg %p468
        %s858 = sand.u32 %s458, 1
        %s859 = scalar_lea.sflag [#allocation7], %s858
        %s860 = sand.u32 %s458, 1
        %s861 = smul.addr %s860, 8
        %s862 = scalar_lea.vmem [#allocation34], %s861
        %p864 = scmp.eq.s32.totalorder %s51, 0
        // Predicated region
        $region165: #{transformer_encoder.2} parent=91 // pred_check
          %p865 = pneg %p864
        $region166: #{transformer_encoder.2} parent=91 // pred_check_branch
          %867 = sbr.rel (%p865) target = $region168
        $region167: #{transformer_encoder.2} parent=91 // pred_region
          %v868 = vld [vmem:[%s741] sm:$0xff]
          %v869 = vpack.c.bf16 %v868, %v868
          %v870 = vld [vmem:[#allocation13] sm:$0xf]
          %v871 = vld [vmem:[#allocation13 + $0x4] sm:$0xf]
          %v872 = vld [vmem:[#allocation13 + $0x8] sm:$0xf]
          %v873 = vld [vmem:[#allocation13 + $0xc] sm:$0xf]
          %v874 = vld [vmem:[#allocation14] sm:$0x1]
          %v876 = vlaneseq
          %v877 = vshrl.u32 %v876, 7
          %v878 = vsub.s32 0, %v877
          %v879 = vrot.slane %v874, %v878
          %v885 = vunpack.c.l.b16 %v870
          %v886 = vunpack.c.l.b16 %v871
          %v887 = vunpack.c.l.b16 %v872
          %v888 = vunpack.c.l.b16 %v873
          %v889 = vpack.c.b16 %v886, %v885
          %v890 = vpack.c.b16 %v888, %v887
          %vm893 = vcmask 261120
          %v895 = vsel %vm893, %v869, 0
          %897 = vmatprep.subr.bf16.mxu0 0
          %898 = vmatpush1.bf16.msra.mxu0 %v889
          %899 = vmatprep.subr.bf16.mxu0 0
          %900 = vmatpush1.bf16.msra.mxu0 %v890
          %901 = vmatprep.subr.bf16.mxu0 0
          %902 = vmatpush1.bf16.msra.mxu0 0
          %903 = vmatprep.subr.bf16.mxu0 0
          %904 = vmatpush1.bf16.msra.mxu0 0
          %905 = vmatprep.subr.bf16.mxu0 0
          %906 = vmatpush1.bf16.msra.mxu0 0
          %907 = vmatprep.subr.bf16.mxu0 0
          %908 = vmatpush1.bf16.msra.mxu0 0
          %909 = vmatprep.subr.bf16.mxu0 0
          %910 = vmatpush1.bf16.msra.mxu0 0
          %911 = vmatprep.subr.bf16.mxu0 0
          %912 = vmatpush1.bf16.msra.mxu0 0
          %913 = vmatprep.subr.bf16.mxu0 0
          %914 = vmatpush1.bf16.msra.mxu0 0
          %915 = vmatprep.subr.bf16.mxu0 0
          %916 = vmatpush1.bf16.msra.mxu0 0
          %917 = vmatprep.subr.bf16.mxu0 0
          %918 = vmatpush1.bf16.msra.mxu0 0
          %919 = vmatprep.subr.bf16.mxu0 0
          %920 = vmatpush1.bf16.msra.mxu0 0
          %921 = vmatprep.subr.bf16.mxu0 0
          %922 = vmatpush1.bf16.msra.mxu0 0
          %923 = vmatprep.subr.bf16.mxu0 0
          %924 = vmatpush1.bf16.msra.mxu0 0
          %925 = vmatprep.subr.bf16.mxu0 0
          %926 = vmatpush1.bf16.msra.mxu0 0
          %927 = vmatprep.subr.bf16.mxu0 0
          %928 = vmatpush1.bf16.msra.mxu0 0
          %929 = vmatprep.mubr.bf16.mxu0 0
          %930 = vmatmul.mubr.bf16.gmra.mrb[0].mxu0 %v895
          %v931 = vpop.f32.mrb[0].mxu0
          %v932 = vadd.f32 %v879, %v931
          %v933 = vpop.f32.mrb[0].mxu0
          %v934 = vpop.f32.mrb[0].mxu0
          %v935 = vpop.f32.mrb[0].mxu0
          %936 = vdwg.mxu0
          %v937 = vld [vmem:[#allocation16] sm:$0xf]
          %v938 = vld [vmem:[#allocation16 + $0x4] sm:$0xf]
          %v939 = vld [vmem:[#allocation16 + $0x8] sm:$0xf]
          %v940 = vld [vmem:[#allocation16 + $0xc] sm:$0xf]
          %v941 = vld [vmem:[#allocation17] sm:$0x1]
          %v943 = vlaneseq
          %v944 = vshrl.u32 %v943, 7
          %v945 = vsub.s32 0, %v944
          %v946 = vrot.slane %v941, %v945
          %v952 = vunpack.c.l.b16 %v937
          %v953 = vunpack.c.l.b16 %v938
          %v954 = vunpack.c.l.b16 %v939
          %v955 = vunpack.c.l.b16 %v940
          %v956 = vpack.c.b16 %v953, %v952
          %v957 = vpack.c.b16 %v955, %v954
          %960 = vmatprep.subr.bf16.mxu0 0
          %961 = vmatpush1.bf16.msra.mxu0 %v956
          %962 = vmatprep.subr.bf16.mxu0 0
          %963 = vmatpush1.bf16.msra.mxu0 %v957
          %964 = vmatprep.subr.bf16.mxu0 0
          %965 = vmatpush1.bf16.msra.mxu0 0
          %966 = vmatprep.subr.bf16.mxu0 0
          %967 = vmatpush1.bf16.msra.mxu0 0
          %968 = vmatprep.subr.bf16.mxu0 0
          %969 = vmatpush1.bf16.msra.mxu0 0
          %970 = vmatprep.subr.bf16.mxu0 0
          %971 = vmatpush1.bf16.msra.mxu0 0
          %972 = vmatprep.subr.bf16.mxu0 0
          %973 = vmatpush1.bf16.msra.mxu0 0
          %974 = vmatprep.subr.bf16.mxu0 0
          %975 = vmatpush1.bf16.msra.mxu0 0
          %976 = vmatprep.subr.bf16.mxu0 0
          %977 = vmatpush1.bf16.msra.mxu0 0
          %978 = vmatprep.subr.bf16.mxu0 0
          %979 = vmatpush1.bf16.msra.mxu0 0
          %980 = vmatprep.subr.bf16.mxu0 0
          %981 = vmatpush1.bf16.msra.mxu0 0
          %982 = vmatprep.subr.bf16.mxu0 0
          %983 = vmatpush1.bf16.msra.mxu0 0
          %984 = vmatprep.subr.bf16.mxu0 0
          %985 = vmatpush1.bf16.msra.mxu0 0
          %986 = vmatprep.subr.bf16.mxu0 0
          %987 = vmatpush1.bf16.msra.mxu0 0
          %988 = vmatprep.subr.bf16.mxu0 0
          %989 = vmatpush1.bf16.msra.mxu0 0
          %990 = vmatprep.subr.bf16.mxu0 0
          %991 = vmatpush1.bf16.msra.mxu0 0
          %992 = vmatprep.mubr.bf16.mxu0 0
          %993 = vmatmul.mubr.bf16.gmra.mrb[0].mxu0 %v895
          %v994 = vpop.f32.mrb[0].mxu0
          %v995 = vadd.f32 %v946, %v994
          %v996 = vpop.f32.mrb[0].mxu0
          %v997 = vpop.f32.mrb[0].mxu0
          %v998 = vpop.f32.mrb[0].mxu0
          %999 = vdwg.mxu0
          %v1000 = vpack.c.bf16 %v932, %v932
          %vm1001 = vcmask 60416
          %1002 = vst.msk [vmem:[#allocation3] sm:$0xf] %vm1001, %v1000
          %v1003 = vpack.c.bf16 %v995, %v995
          %1004 = vst.msk [vmem:[#allocation4] sm:$0xf] %vm1001, %v1003
          %s1005 = scalar_lea.vmem [#allocation13], 16
          %v1006 = vld [vmem:[%s1005] sm:$0xf]
          %v1007 = vld [vmem:[%s1005 + $0x4] sm:$0xf]
          %v1008 = vld [vmem:[%s1005 + $0x8] sm:$0xf]
          %v1009 = vld [vmem:[%s1005 + $0xc] sm:$0xf]
          %s1010 = scalar_lea.vmem [#allocation14], 1
          %v1011 = vld [vmem:[%s1010] sm:$0x1]
          %v1013 = vlaneseq
          %v1014 = vshrl.u32 %v1013, 7
          %v1015 = vsub.s32 0, %v1014
          %v1016 = vrot.slane %v1011, %v1015
          %v1022 = vunpack.c.l.b16 %v1006
          %v1023 = vunpack.c.l.b16 %v1007
          %v1024 = vunpack.c.l.b16 %v1008
          %v1025 = vunpack.c.l.b16 %v1009
          %v1026 = vpack.c.b16 %v1023, %v1022
          %v1027 = vpack.c.b16 %v1025, %v1024
          %1030 = vmatprep.subr.bf16.mxu0 0
          %1031 = vmatpush1.bf16.msra.mxu0 %v1026
          %1032 = vmatprep.subr.bf16.mxu0 0
          %1033 = vmatpush1.bf16.msra.mxu0 %v1027
          %1034 = vmatprep.subr.bf16.mxu0 0
          %1035 = vmatpush1.bf16.msra.mxu0 0
          %1036 = vmatprep.subr.bf16.mxu0 0
          %1037 = vmatpush1.bf16.msra.mxu0 0
          %1038 = vmatprep.subr.bf16.mxu0 0
          %1039 = vmatpush1.bf16.msra.mxu0 0
          %1040 = vmatprep.subr.bf16.mxu0 0
          %1041 = vmatpush1.bf16.msra.mxu0 0
          %1042 = vmatprep.subr.bf16.mxu0 0
          %1043 = vmatpush1.bf16.msra.mxu0 0
          %1044 = vmatprep.subr.bf16.mxu0 0
          %1045 = vmatpush1.bf16.msra.mxu0 0
          %1046 = vmatprep.subr.bf16.mxu0 0
          %1047 = vmatpush1.bf16.msra.mxu0 0
          %1048 = vmatprep.subr.bf16.mxu0 0
          %1049 = vmatpush1.bf16.msra.mxu0 0
          %1050 = vmatprep.subr.bf16.mxu0 0
          %1051 = vmatpush1.bf16.msra.mxu0 0
          %1052 = vmatprep.subr.bf16.mxu0 0
          %1053 = vmatpush1.bf16.msra.mxu0 0
          %1054 = vmatprep.subr.bf16.mxu0 0
          %1055 = vmatpush1.bf16.msra.mxu0 0
          %1056 = vmatprep.subr.bf16.mxu0 0
          %1057 = vmatpush1.bf16.msra.mxu0 0
          %1058 = vmatprep.subr.bf16.mxu0 0
          %1059 = vmatpush1.bf16.msra.mxu0 0
          %1060 = vmatprep.subr.bf16.mxu0 0
          %1061 = vmatpush1.bf16.msra.mxu0 0
          %1062 = vmatprep.mubr.bf16.mxu0 0
          %1063 = vmatmul.mubr.bf16.gmra.mrb[0].mxu0 %v895
          %v1064 = vpop.f32.mrb[0].mxu0
          %v1065 = vadd.f32 %v1016, %v1064
          %v1066 = vpop.f32.mrb[0].mxu0
          %v1067 = vpop.f32.mrb[0].mxu0
          %v1068 = vpop.f32.mrb[0].mxu0
          %1069 = vdwg.mxu0
          %s1070 = scalar_lea.vmem [#allocation16], 16
          %v1071 = vld [vmem:[%s1070] sm:$0xf]
          %v1072 = vld [vmem:[%s1070 + $0x4] sm:$0xf]
          %v1073 = vld [vmem:[%s1070 + $0x8] sm:$0xf]
          %v1074 = vld [vmem:[%s1070 + $0xc] sm:$0xf]
          %s1075 = scalar_lea.vmem [#allocation17], 1
          %v1076 = vld [vmem:[%s1075] sm:$0x1]
          %v1078 = vlaneseq
          %v1079 = vshrl.u32 %v1078, 7
          %v1080 = vsub.s32 0, %v1079
          %v1081 = vrot.slane %v1076, %v1080
          %v1087 = vunpack.c.l.b16 %v1071
          %v1088 = vunpack.c.l.b16 %v1072
          %v1089 = vunpack.c.l.b16 %v1073
          %v1090 = vunpack.c.l.b16 %v1074
          %v1091 = vpack.c.b16 %v1088, %v1087
          %v1092 = vpack.c.b16 %v1090, %v1089
          %1095 = vmatprep.subr.bf16.mxu0 0
          %1096 = vmatpush1.bf16.msra.mxu0 %v1091
          %1097 = vmatprep.subr.bf16.mxu0 0
          %1098 = vmatpush1.bf16.msra.mxu0 %v1092
          %1099 = vmatprep.subr.bf16.mxu0 0
          %1100 = vmatpush1.bf16.msra.mxu0 0
          %1101 = vmatprep.subr.bf16.mxu0 0
          %1102 = vmatpush1.bf16.msra.mxu0 0
          %1103 = vmatprep.subr.bf16.mxu0 0
          %1104 = vmatpush1.bf16.msra.mxu0 0
          %1105 = vmatprep.subr.bf16.mxu0 0
          %1106 = vmatpush1.bf16.msra.mxu0 0
          %1107 = vmatprep.subr.bf16.mxu0 0
          %1108 = vmatpush1.bf16.msra.mxu0 0
          %1109 = vmatprep.subr.bf16.mxu0 0
          %1110 = vmatpush1.bf16.msra.mxu0 0
          %1111 = vmatprep.subr.bf16.mxu0 0
          %1112 = vmatpush1.bf16.msra.mxu0 0
          %1113 = vmatprep.subr.bf16.mxu0 0
          %1114 = vmatpush1.bf16.msra.mxu0 0
          %1115 = vmatprep.subr.bf16.mxu0 0
          %1116 = vmatpush1.bf16.msra.mxu0 0
          %1117 = vmatprep.subr.bf16.mxu0 0
          %1118 = vmatpush1.bf16.msra.mxu0 0
          %1119 = vmatprep.subr.bf16.mxu0 0
          %1120 = vmatpush1.bf16.msra.mxu0 0
          %1121 = vmatprep.subr.bf16.mxu0 0
          %1122 = vmatpush1.bf16.msra.mxu0 0
          %1123 = vmatprep.subr.bf16.mxu0 0
          %1124 = vmatpush1.bf16.msra.mxu0 0
          %1125 = vmatprep.subr.bf16.mxu0 0
          %1126 = vmatpush1.bf16.msra.mxu0 0
          %1127 = vmatprep.mubr.bf16.mxu0 0
          %1128 = vmatmul.mubr.bf16.gmra.mrb[0].mxu0 %v895
          %v1129 = vpop.f32.mrb[0].mxu0
          %v1130 = vadd.f32 %v1081, %v1129
          %v1131 = vpop.f32.mrb[0].mxu0
          %v1132 = vpop.f32.mrb[0].mxu0
          %v1133 = vpop.f32.mrb[0].mxu0
          %1134 = vdwg.mxu0
          %v1135 = vpack.c.bf16 %v1065, %v1065
          %s1136 = scalar_lea.vmem [#allocation3], 4
          %1137 = vst.msk [vmem:[%s1136] sm:$0xf] %vm1001, %v1135
          %v1138 = vpack.c.bf16 %v1130, %v1130
          %s1139 = scalar_lea.vmem [#allocation4], 4
          %1140 = vst.msk [vmem:[%s1139] sm:$0xf] %vm1001, %v1138
          %s1141 = scalar_lea.vmem [#allocation13], 32
          %v1142 = vld [vmem:[%s1141] sm:$0xf]
          %v1143 = vld [vmem:[%s1141 + $0x4] sm:$0xf]
          %v1144 = vld [vmem:[%s1141 + $0x8] sm:$0xf]
          %v1145 = vld [vmem:[%s1141 + $0xc] sm:$0xf]
          %s1146 = scalar_lea.vmem [#allocation14], 2
          %v1147 = vld [vmem:[%s1146] sm:$0x1]
          %v1149 = vlaneseq
          %v1150 = vshrl.u32 %v1149, 7
          %v1151 = vsub.s32 0, %v1150
          %v1152 = vrot.slane %v1147, %v1151
          %v1158 = vunpack.c.l.b16 %v1142
          %v1159 = vunpack.c.l.b16 %v1143
          %v1160 = vunpack.c.l.b16 %v1144
          %v1161 = vunpack.c.l.b16 %v1145
          %v1162 = vpack.c.b16 %v1159, %v1158
          %v1163 = vpack.c.b16 %v1161, %v1160
          %1166 = vmatprep.subr.bf16.mxu0 0
          %1167 = vmatpush1.bf16.msra.mxu0 %v1162
          %1168 = vmatprep.subr.bf16.mxu0 0
          %1169 = vmatpush1.bf16.msra.mxu0 %v1163
          %1170 = vmatprep.subr.bf16.mxu0 0
          %1171 = vmatpush1.bf16.msra.mxu0 0
          %1172 = vmatprep.subr.bf16.mxu0 0
          %1173 = vmatpush1.bf16.msra.mxu0 0
          %1174 = vmatprep.subr.bf16.mxu0 0
          %1175 = vmatpush1.bf16.msra.mxu0 0
          %1176 = vmatprep.subr.bf16.mxu0 0
          %1177 = vmatpush1.bf16.msra.mxu0 0
          %1178 = vmatprep.subr.bf16.mxu0 0
          %1179 = vmatpush1.bf16.msra.mxu0 0
          %1180 = vmatprep.subr.bf16.mxu0 0
          %1181 = vmatpush1.bf16.msra.mxu0 0
          %1182 = vmatprep.subr.bf16.mxu0 0
          %1183 = vmatpush1.bf16.msra.mxu0 0
          %1184 = vmatprep.subr.bf16.mxu0 0
          %1185 = vmatpush1.bf16.msra.mxu0 0
          %1186 = vmatprep.subr.bf16.mxu0 0
          %1187 = vmatpush1.bf16.msra.mxu0 0
          %1188 = vmatprep.subr.bf16.mxu0 0
          %1189 = vmatpush1.bf16.msra.mxu0 0
          %1190 = vmatprep.subr.bf16.mxu0 0
          %1191 = vmatpush1.bf16.msra.mxu0 0
          %1192 = vmatprep.subr.bf16.mxu0 0
          %1193 = vmatpush1.bf16.msra.mxu0 0
          %1194 = vmatprep.subr.bf16.mxu0 0
          %1195 = vmatpush1.bf16.msra.mxu0 0
          %1196 = vmatprep.subr.bf16.mxu0 0
          %1197 = vmatpush1.bf16.msra.mxu0 0
          %1198 = vmatprep.mubr.bf16.mxu0 0
          %1199 = vmatmul.mubr.bf16.gmra.mrb[0].mxu0 %v895
          %v1200 = vpop.f32.mrb[0].mxu0
          %v1201 = vadd.f32 %v1152, %v1200
          %v1202 = vpop.f32.mrb[0].mxu0
          %v1203 = vpop.f32.mrb[0].mxu0
          %v1204 = vpop.f32.mrb[0].mxu0
          %1205 = vdwg.mxu0
          %s1206 = scalar_lea.vmem [#allocation16], 32
          %v1207 = vld [vmem:[%s1206] sm:$0xf]
          %v1208 = vld [vmem:[%s1206 + $0x4] sm:$0xf]
          %v1209 = vld [vmem:[%s1206 + $0x8] sm:$0xf]
          %v1210 = vld [vmem:[%s1206 + $0xc] sm:$0xf]
          %s1211 = scalar_lea.vmem [#allocation17], 2
          %v1212 = vld [vmem:[%s1211] sm:$0x1]
          %v1214 = vlaneseq
          %v1215 = vshrl.u32 %v1214, 7
          %v1216 = vsub.s32 0, %v1215
          %v1217 = vrot.slane %v1212, %v1216
          %v1223 = vunpack.c.l.b16 %v1207
          %v1224 = vunpack.c.l.b16 %v1208
          %v1225 = vunpack.c.l.b16 %v1209
          %v1226 = vunpack.c.l.b16 %v1210
          %v1227 = vpack.c.b16 %v1224, %v1223
          %v1228 = vpack.c.b16 %v1226, %v1225
          %1231 = vmatprep.subr.bf16.mxu0 0
          %1232 = vmatpush1.bf16.msra.mxu0 %v1227
          %1233 = vmatprep.subr.bf16.mxu0 0
          %1234 = vmatpush1.bf16.msra.mxu0 %v1228
          %1235 = vmatprep.subr.bf16.mxu0 0
          %1236 = vmatpush1.bf16.msra.mxu0 0
          %1237 = vmatprep.subr.bf16.mxu0 0
          %1238 = vmatpush1.bf16.msra.mxu0 0
          %1239 = vmatprep.subr.bf16.mxu0 0
          %1240 = vmatpush1.bf16.msra.mxu0 0
          %1241 = vmatprep.subr.bf16.mxu0 0
          %1242 = vmatpush1.bf16.msra.mxu0 0
          %1243 = vmatprep.subr.bf16.mxu0 0
          %1244 = vmatpush1.bf16.msra.mxu0 0
          %1245 = vmatprep.subr.bf16.mxu0 0
          %1246 = vmatpush1.bf16.msra.mxu0 0
          %1247 = vmatprep.subr.bf16.mxu0 0
          %1248 = vmatpush1.bf16.msra.mxu0 0
          %1249 = vmatprep.subr.bf16.mxu0 0
          %1250 = vmatpush1.bf16.msra.mxu0 0
          %1251 = vmatprep.subr.bf16.mxu0 0
          %1252 = vmatpush1.bf16.msra.mxu0 0
          %1253 = vmatprep.subr.bf16.mxu0 0
          %1254 = vmatpush1.bf16.msra.mxu0 0
          %1255 = vmatprep.subr.bf16.mxu0 0
          %1256 = vmatpush1.bf16.msra.mxu0 0
          %1257 = vmatprep.subr.bf16.mxu0 0
          %1258 = vmatpush1.bf16.msra.mxu0 0
          %1259 = vmatprep.subr.bf16.mxu0 0
          %1260 = vmatpush1.bf16.msra.mxu0 0
          %1261 = vmatprep.subr.bf16.mxu0 0
          %1262 = vmatpush1.bf16.msra.mxu0 0
          %1263 = vmatprep.mubr.bf16.mxu0 0
          %1264 = vmatmul.mubr.bf16.gmra.mrb[0].mxu0 %v895
          %v1265 = vpop.f32.mrb[0].mxu0
          %v1266 = vadd.f32 %v1217, %v1265
          %v1267 = vpop.f32.mrb[0].mxu0
          %v1268 = vpop.f32.mrb[0].mxu0
          %v1269 = vpop.f32.mrb[0].mxu0
          %1270 = vdwg.mxu0
          %v1271 = vpack.c.bf16 %v1201, %v1201
          %s1272 = scalar_lea.vmem [#allocation3], 8
          %1273 = vst.msk [vmem:[%s1272] sm:$0xf] %vm1001, %v1271
          %v1274 = vpack.c.bf16 %v1266, %v1266
          %s1275 = scalar_lea.vmem [#allocation4], 8
          %1276 = vst.msk [vmem:[%s1275] sm:$0xf] %vm1001, %v1274
          %s1277 = scalar_lea.vmem [#allocation13], 48
          %v1278 = vld [vmem:[%s1277] sm:$0xf]
          %v1279 = vld [vmem:[%s1277 + $0x4] sm:$0xf]
          %v1280 = vld [vmem:[%s1277 + $0x8] sm:$0xf]
          %v1281 = vld [vmem:[%s1277 + $0xc] sm:$0xf]
          %s1282 = scalar_lea.vmem [#allocation14], 3
          %v1283 = vld [vmem:[%s1282] sm:$0x1]
          %v1285 = vlaneseq
          %v1286 = vshrl.u32 %v1285, 7
          %v1287 = vsub.s32 0, %v1286
          %v1288 = vrot.slane %v1283, %v1287
          %v1294 = vunpack.c.l.b16 %v1278
          %v1295 = vunpack.c.l.b16 %v1279
          %v1296 = vunpack.c.l.b16 %v1280
          %v1297 = vunpack.c.l.b16 %v1281
          %v1298 = vpack.c.b16 %v1295, %v1294
          %v1299 = vpack.c.b16 %v1297, %v1296
          %1302 = vmatprep.subr.bf16.mxu0 0
          %1303 = vmatpush1.bf16.msra.mxu0 %v1298
          %1304 = vmatprep.subr.bf16.mxu0 0
          %1305 = vmatpush1.bf16.msra.mxu0 %v1299
          %1306 = vmatprep.subr.bf16.mxu0 0
          %1307 = vmatpush1.bf16.msra.mxu0 0
          %1308 = vmatprep.subr.bf16.mxu0 0
          %1309 = vmatpush1.bf16.msra.mxu0 0
          %1310 = vmatprep.subr.bf16.mxu0 0
          %1311 = vmatpush1.bf16.msra.mxu0 0
          %1312 = vmatprep.subr.bf16.mxu0 0
          %1313 = vmatpush1.bf16.msra.mxu0 0
          %1314 = vmatprep.subr.bf16.mxu0 0
          %1315 = vmatpush1.bf16.msra.mxu0 0
          %1316 = vmatprep.subr.bf16.mxu0 0
          %1317 = vmatpush1.bf16.msra.mxu0 0
          %1318 = vmatprep.subr.bf16.mxu0 0
          %1319 = vmatpush1.bf16.msra.mxu0 0
          %1320 = vmatprep.subr.bf16.mxu0 0
          %1321 = vmatpush1.bf16.msra.mxu0 0
          %1322 = vmatprep.subr.bf16.mxu0 0
          %1323 = vmatpush1.bf16.msra.mxu0 0
          %1324 = vmatprep.subr.bf16.mxu0 0
          %1325 = vmatpush1.bf16.msra.mxu0 0
          %1326 = vmatprep.subr.bf16.mxu0 0
          %1327 = vmatpush1.bf16.msra.mxu0 0
          %1328 = vmatprep.subr.bf16.mxu0 0
          %1329 = vmatpush1.bf16.msra.mxu0 0
          %1330 = vmatprep.subr.bf16.mxu0 0
          %1331 = vmatpush1.bf16.msra.mxu0 0
          %1332 = vmatprep.subr.bf16.mxu0 0
          %1333 = vmatpush1.bf16.msra.mxu0 0
          %1334 = vmatprep.mubr.bf16.mxu0 0
          %1335 = vmatmul.mubr.bf16.gmra.mrb[0].mxu0 %v895
          %v1336 = vpop.f32.mrb[0].mxu0
          %v1337 = vadd.f32 %v1288, %v1336
          %v1338 = vpop.f32.mrb[0].mxu0
          %v1339 = vpop.f32.mrb[0].mxu0
          %v1340 = vpop.f32.mrb[0].mxu0
          %1341 = vdwg.mxu0
          %s1342 = scalar_lea.vmem [#allocation16], 48
          %v1343 = vld [vmem:[%s1342] sm:$0xf]
          %v1344 = vld [vmem:[%s1342 + $0x4] sm:$0xf]
          %v1345 = vld [vmem:[%s1342 + $0x8] sm:$0xf]
          %v1346 = vld [vmem:[%s1342 + $0xc] sm:$0xf]
          %s1347 = scalar_lea.vmem [#allocation17], 3
          %v1348 = vld [vmem:[%s1347] sm:$0x1]
          %v1350 = vlaneseq
          %v1351 = vshrl.u32 %v1350, 7
          %v1352 = vsub.s32 0, %v1351
          %v1353 = vrot.slane %v1348, %v1352
          %v1359 = vunpack.c.l.b16 %v1343
          %v1360 = vunpack.c.l.b16 %v1344
          %v1361 = vunpack.c.l.b16 %v1345
          %v1362 = vunpack.c.l.b16 %v1346
          %v1363 = vpack.c.b16 %v1360, %v1359
          %v1364 = vpack.c.b16 %v1362, %v1361
          %1367 = vmatprep.subr.bf16.mxu0 0
          %1368 = vmatpush1.bf16.msra.mxu0 %v1363
          %1369 = vmatprep.subr.bf16.mxu0 0
          %1370 = vmatpush1.bf16.msra.mxu0 %v1364
          %1371 = vmatprep.subr.bf16.mxu0 0
          %1372 = vmatpush1.bf16.msra.mxu0 0
          %1373 = vmatprep.subr.bf16.mxu0 0
          %1374 = vmatpush1.bf16.msra.mxu0 0
          %1375 = vmatprep.subr.bf16.mxu0 0
          %1376 = vmatpush1.bf16.msra.mxu0 0
          %1377 = vmatprep.subr.bf16.mxu0 0
          %1378 = vmatpush1.bf16.msra.mxu0 0
          %1379 = vmatprep.subr.bf16.mxu0 0
          %1380 = vmatpush1.bf16.msra.mxu0 0
          %1381 = vmatprep.subr.bf16.mxu0 0
          %1382 = vmatpush1.bf16.msra.mxu0 0
          %1383 = vmatprep.subr.bf16.mxu0 0
          %1384 = vmatpush1.bf16.msra.mxu0 0
          %1385 = vmatprep.subr.bf16.mxu0 0
          %1386 = vmatpush1.bf16.msra.mxu0 0
          %1387 = vmatprep.subr.bf16.mxu0 0
          %1388 = vmatpush1.bf16.msra.mxu0 0
          %1389 = vmatprep.subr.bf16.mxu0 0
          %1390 = vmatpush1.bf16.msra.mxu0 0
          %1391 = vmatprep.subr.bf16.mxu0 0
          %1392 = vmatpush1.bf16.msra.mxu0 0
          %1393 = vmatprep.subr.bf16.mxu0 0
          %1394 = vmatpush1.bf16.msra.mxu0 0
          %1395 = vmatprep.subr.bf16.mxu0 0
          %1396 = vmatpush1.bf16.msra.mxu0 0
          %1397 = vmatprep.subr.bf16.mxu0 0
          %1398 = vmatpush1.bf16.msra.mxu0 0
          %1399 = vmatprep.mubr.bf16.mxu0 0
          %1400 = vmatmul.mubr.bf16.gmra.mrb[0].mxu0 %v895
          %v1401 = vpop.f32.mrb[0].mxu0
          %v1402 = vadd.f32 %v1353, %v1401
          %v1403 = vpop.f32.mrb[0].mxu0
          %v1404 = vpop.f32.mrb[0].mxu0
          %v1405 = vpop.f32.mrb[0].mxu0
          %1406 = vdwg.mxu0
          %v1407 = vpack.c.bf16 %v1337, %v1337
          %s1408 = scalar_lea.vmem [#allocation3], 12
          %1409 = vst.msk [vmem:[%s1408] sm:$0xf] %vm1001, %v1407
          %v1410 = vpack.c.bf16 %v1402, %v1402
          %s1411 = scalar_lea.vmem [#allocation4], 12
          %1412 = vst.msk [vmem:[%s1411] sm:$0xf] %vm1001, %v1410
        $region168: #{transformer_encoder.2} parent=91 // pred_fallthru
          _
        %v1413 = vld [vmem:[%s732] sm:$0xff]
        %v1414 = vpack.c.bf16 %v1413, %v1413
        %v1415 = vld [vmem:[#allocation10] sm:$0xf]
        %v1416 = vld [vmem:[#allocation10 + $0x4] sm:$0xf]
        %v1417 = vld [vmem:[#allocation10 + $0x8] sm:$0xf]
        %v1418 = vld [vmem:[#allocation10 + $0xc] sm:$0xf]
        %v1419 = vld [vmem:[#allocation11] sm:$0x1]
        %v1421 = vlaneseq
        %v1422 = vshrl.u32 %v1421, 7
        %v1423 = vsub.s32 0, %v1422
        %v1424 = vrot.slane %v1419, %v1423
        %v1430 = vunpack.c.l.b16 %v1415
        %v1431 = vunpack.c.l.b16 %v1416
        %v1432 = vunpack.c.l.b16 %v1417
        %v1433 = vunpack.c.l.b16 %v1418
        %v1434 = vpack.c.b16 %v1431, %v1430
        %v1435 = vpack.c.b16 %v1433, %v1432
        %vm1438 = vcmask 261120
        %v1440 = vsel %vm1438, %v1414, 0
        %1442 = vmatprep.subr.bf16.mxu0 0
        %1443 = vmatpush1.bf16.msra.mxu0 %v1434
        %1444 = vmatprep.subr.bf16.mxu0 0
        %1445 = vmatpush1.bf16.msra.mxu0 %v1435
        %1446 = vmatprep.subr.bf16.mxu0 0
        %1447 = vmatpush1.bf16.msra.mxu0 0
        %1448 = vmatprep.subr.bf16.mxu0 0
        %1449 = vmatpush1.bf16.msra.mxu0 0
        %1450 = vmatprep.subr.bf16.mxu0 0
        %1451 = vmatpush1.bf16.msra.mxu0 0
        %1452 = vmatprep.subr.bf16.mxu0 0
        %1453 = vmatpush1.bf16.msra.mxu0 0
        %1454 = vmatprep.subr.bf16.mxu0 0
        %1455 = vmatpush1.bf16.msra.mxu0 0
        %1456 = vmatprep.subr.bf16.mxu0 0
        %1457 = vmatpush1.bf16.msra.mxu0 0
        %1458 = vmatprep.subr.bf16.mxu0 0
        %1459 = vmatpush1.bf16.msra.mxu0 0
        %1460 = vmatprep.subr.bf16.mxu0 0
        %1461 = vmatpush1.bf16.msra.mxu0 0
        %1462 = vmatprep.subr.bf16.mxu0 0
        %1463 = vmatpush1.bf16.msra.mxu0 0
        %1464 = vmatprep.subr.bf16.mxu0 0
        %1465 = vmatpush1.bf16.msra.mxu0 0
        %1466 = vmatprep.subr.bf16.mxu0 0
        %1467 = vmatpush1.bf16.msra.mxu0 0
        %1468 = vmatprep.subr.bf16.mxu0 0
        %1469 = vmatpush1.bf16.msra.mxu0 0
        %1470 = vmatprep.subr.bf16.mxu0 0
        %1471 = vmatpush1.bf16.msra.mxu0 0
        %1472 = vmatprep.subr.bf16.mxu0 0
        %1473 = vmatpush1.bf16.msra.mxu0 0
        %1474 = vmatprep.mubr.bf16.mxu0 0
        %1475 = vmatmul.mubr.bf16.gmra.mrb[0].mxu0 %v1440
        %v1476 = vpop.f32.mrb[0].mxu0
        %v1477 = vadd.f32 %v1424, %v1476
        %v1478 = vpop.f32.mrb[0].mxu0
        %v1479 = vpop.f32.mrb[0].mxu0
        %v1480 = vpop.f32.mrb[0].mxu0
        %1481 = vdwg.mxu0
        %v1482 = vpack.c.bf16 %v1477, %v1477
        %vm1483 = vcmask 60416
        %1484 = vst.msk [vmem:[#allocation2] sm:$0xf] %vm1483, %v1482
        %s1485 = scalar_lea.vmem [#allocation10], 16
        %v1486 = vld [vmem:[%s1485] sm:$0xf]
        %v1487 = vld [vmem:[%s1485 + $0x4] sm:$0xf]
        %v1488 = vld [vmem:[%s1485 + $0x8] sm:$0xf]
        %v1489 = vld [vmem:[%s1485 + $0xc] sm:$0xf]
        %s1490 = scalar_lea.vmem [#allocation11], 1
        %v1491 = vld [vmem:[%s1490] sm:$0x1]
        %v1493 = vlaneseq
        %v1494 = vshrl.u32 %v1493, 7
        %v1495 = vsub.s32 0, %v1494
        %v1496 = vrot.slane %v1491, %v1495
        %v1502 = vunpack.c.l.b16 %v1486
        %v1503 = vunpack.c.l.b16 %v1487
        %v1504 = vunpack.c.l.b16 %v1488
        %v1505 = vunpack.c.l.b16 %v1489
        %v1506 = vpack.c.b16 %v1503, %v1502
        %v1507 = vpack.c.b16 %v1505, %v1504
        %1510 = vmatprep.subr.bf16.mxu0 0
        %1511 = vmatpush1.bf16.msra.mxu0 %v1506
        %1512 = vmatprep.subr.bf16.mxu0 0
        %1513 = vmatpush1.bf16.msra.mxu0 %v1507
        %1514 = vmatprep.subr.bf16.mxu0 0
        %1515 = vmatpush1.bf16.msra.mxu0 0
        %1516 = vmatprep.subr.bf16.mxu0 0
        %1517 = vmatpush1.bf16.msra.mxu0 0
        %1518 = vmatprep.subr.bf16.mxu0 0
        %1519 = vmatpush1.bf16.msra.mxu0 0
        %1520 = vmatprep.subr.bf16.mxu0 0
        %1521 = vmatpush1.bf16.msra.mxu0 0
        %1522 = vmatprep.subr.bf16.mxu0 0
        %1523 = vmatpush1.bf16.msra.mxu0 0
        %1524 = vmatprep.subr.bf16.mxu0 0
        %1525 = vmatpush1.bf16.msra.mxu0 0
        %1526 = vmatprep.subr.bf16.mxu0 0
        %1527 = vmatpush1.bf16.msra.mxu0 0
        %1528 = vmatprep.subr.bf16.mxu0 0
        %1529 = vmatpush1.bf16.msra.mxu0 0
        %1530 = vmatprep.subr.bf16.mxu0 0
        %1531 = vmatpush1.bf16.msra.mxu0 0
        %1532 = vmatprep.subr.bf16.mxu0 0
        %1533 = vmatpush1.bf16.msra.mxu0 0
        %1534 = vmatprep.subr.bf16.mxu0 0
        %1535 = vmatpush1.bf16.msra.mxu0 0
        %1536 = vmatprep.subr.bf16.mxu0 0
        %1537 = vmatpush1.bf16.msra.mxu0 0
        %1538 = vmatprep.subr.bf16.mxu0 0
        %1539 = vmatpush1.bf16.msra.mxu0 0
        %1540 = vmatprep.subr.bf16.mxu0 0
        %1541 = vmatpush1.bf16.msra.mxu0 0
        %1542 = vmatprep.mubr.bf16.mxu0 0
        %1543 = vmatmul.mubr.bf16.gmra.mrb[0].mxu0 %v1440
        %v1544 = vpop.f32.mrb[0].mxu0
        %v1545 = vadd.f32 %v1496, %v1544
        %v1546 = vpop.f32.mrb[0].mxu0
        %v1547 = vpop.f32.mrb[0].mxu0
        %v1548 = vpop.f32.mrb[0].mxu0
        %1549 = vdwg.mxu0
        %v1550 = vpack.c.bf16 %v1545, %v1545
        %s1551 = scalar_lea.vmem [#allocation2], 4
        %1552 = vst.msk [vmem:[%s1551] sm:$0xf] %vm1483, %v1550
        %s1553 = scalar_lea.vmem [#allocation10], 32
        %v1554 = vld [vmem:[%s1553] sm:$0xf]
        %v1555 = vld [vmem:[%s1553 + $0x4] sm:$0xf]
        %v1556 = vld [vmem:[%s1553 + $0x8] sm:$0xf]
        %v1557 = vld [vmem:[%s1553 + $0xc] sm:$0xf]
        %s1558 = scalar_lea.vmem [#allocation11], 2
        %v1559 = vld [vmem:[%s1558] sm:$0x1]
        %v1561 = vlaneseq
        %v1562 = vshrl.u32 %v1561, 7
        %v1563 = vsub.s32 0, %v1562
        %v1564 = vrot.slane %v1559, %v1563
        %v1570 = vunpack.c.l.b16 %v1554
        %v1571 = vunpack.c.l.b16 %v1555
        %v1572 = vunpack.c.l.b16 %v1556
        %v1573 = vunpack.c.l.b16 %v1557
        %v1574 = vpack.c.b16 %v1571, %v1570
        %v1575 = vpack.c.b16 %v1573, %v1572
        %1578 = vmatprep.subr.bf16.mxu0 0
        %1579 = vmatpush1.bf16.msra.mxu0 %v1574
        %1580 = vmatprep.subr.bf16.mxu0 0
        %1581 = vmatpush1.bf16.msra.mxu0 %v1575
        %1582 = vmatprep.subr.bf16.mxu0 0
        %1583 = vmatpush1.bf16.msra.mxu0 0
        %1584 = vmatprep.subr.bf16.mxu0 0
        %1585 = vmatpush1.bf16.msra.mxu0 0
        %1586 = vmatprep.subr.bf16.mxu0 0
        %1587 = vmatpush1.bf16.msra.mxu0 0
        %1588 = vmatprep.subr.bf16.mxu0 0
        %1589 = vmatpush1.bf16.msra.mxu0 0
        %1590 = vmatprep.subr.bf16.mxu0 0
        %1591 = vmatpush1.bf16.msra.mxu0 0
        %1592 = vmatprep.subr.bf16.mxu0 0
        %1593 = vmatpush1.bf16.msra.mxu0 0
        %1594 = vmatprep.subr.bf16.mxu0 0
        %1595 = vmatpush1.bf16.msra.mxu0 0
        %1596 = vmatprep.subr.bf16.mxu0 0
        %1597 = vmatpush1.bf16.msra.mxu0 0
        %1598 = vmatprep.subr.bf16.mxu0 0
        %1599 = vmatpush1.bf16.msra.mxu0 0
        %1600 = vmatprep.subr.bf16.mxu0 0
        %1601 = vmatpush1.bf16.msra.mxu0 0
        %1602 = vmatprep.subr.bf16.mxu0 0
        %1603 = vmatpush1.bf16.msra.mxu0 0
        %1604 = vmatprep.subr.bf16.mxu0 0
        %1605 = vmatpush1.bf16.msra.mxu0 0
        %1606 = vmatprep.subr.bf16.mxu0 0
        %1607 = vmatpush1.bf16.msra.mxu0 0
        %1608 = vmatprep.subr.bf16.mxu0 0
        %1609 = vmatpush1.bf16.msra.mxu0 0
        %1610 = vmatprep.mubr.bf16.mxu0 0
        %1611 = vmatmul.mubr.bf16.gmra.mrb[0].mxu0 %v1440
        %v1612 = vpop.f32.mrb[0].mxu0
        %v1613 = vadd.f32 %v1564, %v1612
        %v1614 = vpop.f32.mrb[0].mxu0
        %v1615 = vpop.f32.mrb[0].mxu0
        %v1616 = vpop.f32.mrb[0].mxu0
        %1617 = vdwg.mxu0
        %v1618 = vpack.c.bf16 %v1613, %v1613
        %s1619 = scalar_lea.vmem [#allocation2], 8
        %1620 = vst.msk [vmem:[%s1619] sm:$0xf] %vm1483, %v1618
        %s1621 = scalar_lea.vmem [#allocation10], 48
        %v1622 = vld [vmem:[%s1621] sm:$0xf]
        %v1623 = vld [vmem:[%s1621 + $0x4] sm:$0xf]
        %v1624 = vld [vmem:[%s1621 + $0x8] sm:$0xf]
        %v1625 = vld [vmem:[%s1621 + $0xc] sm:$0xf]
        %s1626 = scalar_lea.vmem [#allocation11], 3
        %v1627 = vld [vmem:[%s1626] sm:$0x1]
        %v1629 = vlaneseq
        %v1630 = vshrl.u32 %v1629, 7
        %v1631 = vsub.s32 0, %v1630
        %v1632 = vrot.slane %v1627, %v1631
        %v1638 = vunpack.c.l.b16 %v1622
        %v1639 = vunpack.c.l.b16 %v1623
        %v1640 = vunpack.c.l.b16 %v1624
        %v1641 = vunpack.c.l.b16 %v1625
        %v1642 = vpack.c.b16 %v1639, %v1638
        %v1643 = vpack.c.b16 %v1641, %v1640
        %1646 = vmatprep.subr.bf16.mxu0 0
        %1647 = vmatpush1.bf16.msra.mxu0 %v1642
        %1648 = vmatprep.subr.bf16.mxu0 0
        %1649 = vmatpush1.bf16.msra.mxu0 %v1643
        %1650 = vmatprep.subr.bf16.mxu0 0
        %1651 = vmatpush1.bf16.msra.mxu0 0
        %1652 = vmatprep.subr.bf16.mxu0 0
        %1653 = vmatpush1.bf16.msra.mxu0 0
        %1654 = vmatprep.subr.bf16.mxu0 0
        %1655 = vmatpush1.bf16.msra.mxu0 0
        %1656 = vmatprep.subr.bf16.mxu0 0
        %1657 = vmatpush1.bf16.msra.mxu0 0
        %1658 = vmatprep.subr.bf16.mxu0 0
        %1659 = vmatpush1.bf16.msra.mxu0 0
        %1660 = vmatprep.subr.bf16.mxu0 0
        %1661 = vmatpush1.bf16.msra.mxu0 0
        %1662 = vmatprep.subr.bf16.mxu0 0
        %1663 = vmatpush1.bf16.msra.mxu0 0
        %1664 = vmatprep.subr.bf16.mxu0 0
        %1665 = vmatpush1.bf16.msra.mxu0 0
        %1666 = vmatprep.subr.bf16.mxu0 0
        %1667 = vmatpush1.bf16.msra.mxu0 0
        %1668 = vmatprep.subr.bf16.mxu0 0
        %1669 = vmatpush1.bf16.msra.mxu0 0
        %1670 = vmatprep.subr.bf16.mxu0 0
        %1671 = vmatpush1.bf16.msra.mxu0 0
        %1672 = vmatprep.subr.bf16.mxu0 0
        %1673 = vmatpush1.bf16.msra.mxu0 0
        %1674 = vmatprep.subr.bf16.mxu0 0
        %1675 = vmatpush1.bf16.msra.mxu0 0
        %1676 = vmatprep.subr.bf16.mxu0 0
        %1677 = vmatpush1.bf16.msra.mxu0 0
        %1678 = vmatprep.mubr.bf16.mxu0 0
        %1679 = vmatmul.mubr.bf16.gmra.mrb[0].mxu0 %v1440
        %v1680 = vpop.f32.mrb[0].mxu0
        %v1681 = vadd.f32 %v1632, %v1680
        %v1682 = vpop.f32.mrb[0].mxu0
        %v1683 = vpop.f32.mrb[0].mxu0
        %v1684 = vpop.f32.mrb[0].mxu0
        %1685 = vdwg.mxu0
        %v1686 = vpack.c.bf16 %v1681, %v1681
        %s1687 = scalar_lea.vmem [#allocation2], 12
        %1688 = vst.msk [vmem:[%s1687] sm:$0xf] %vm1483, %v1686
        %v1689 = vld [vmem:[#allocation2] sm:$0xf]
        %v1690 = vld [vmem:[#allocation2 + $0x4] sm:$0xf]
        %v1691 = vld [vmem:[#allocation2 + $0x8] sm:$0xf]
        %v1692 = vld [vmem:[#allocation2 + $0xc] sm:$0xf]
        %v1693 = vld [vmem:[#allocation3] sm:$0xf]
        %v1694 = vld [vmem:[#allocation3 + $0x4] sm:$0xf]
        %v1695 = vld [vmem:[#allocation3 + $0x8] sm:$0xf]
        %v1696 = vld [vmem:[#allocation3 + $0xc] sm:$0xf]
        %v1697 = vld [vmem:[#allocation4] sm:$0xf]
        %v1698 = vld [vmem:[#allocation4 + $0x4] sm:$0xf]
        %v1699 = vld [vmem:[#allocation4 + $0x8] sm:$0xf]
        %v1700 = vld [vmem:[#allocation4 + $0xc] sm:$0xf]
        %vm1701 = vcmask 64512
        %v1703 = vsel %vm1701, %v1689, 0
        %v1706 = vsel %vm1701, %v1693, 0
        %1708 = vmatprep.subr.bf16.mxu0 0
        %1709 = vmatpush1.bf16.xpose.msra.mxu0 %v1706
        %1710 = vmatprep.subr.bf16.mxu0 0
        %1711 = vmatpush1.bf16.xpose.msra.mxu0 0
        %1712 = vmatprep.subr.bf16.mxu0 0
        %1713 = vmatpush1.bf16.xpose.msra.mxu0 0
        %1714 = vmatprep.subr.bf16.mxu0 0
        %1715 = vmatpush1.bf16.xpose.msra.mxu0 0
        %1716 = vmatprep.subr.bf16.mxu0 0
        %1717 = vmatpush1.bf16.xpose.msra.mxu0 0
        %1718 = vmatprep.subr.bf16.mxu0 0
        %1719 = vmatpush1.bf16.xpose.msra.mxu0 0
        %1720 = vmatprep.subr.bf16.mxu0 0
        %1721 = vmatpush1.bf16.xpose.msra.mxu0 0
        %1722 = vmatprep.subr.bf16.mxu0 0
        %1723 = vmatpush1.bf16.xpose.msra.mxu0 0
        %1724 = vmatprep.subr.bf16.mxu0 0
        %1725 = vmatpush1.bf16.xpose.msra.mxu0 0
        %1726 = vmatprep.subr.bf16.mxu0 0
        %1727 = vmatpush1.bf16.xpose.msra.mxu0 0
        %1728 = vmatprep.subr.bf16.mxu0 0
        %1729 = vmatpush1.bf16.xpose.msra.mxu0 0
        %1730 = vmatprep.subr.bf16.mxu0 0
        %1731 = vmatpush1.bf16.xpose.msra.mxu0 0
        %1732 = vmatprep.subr.bf16.mxu0 0
        %1733 = vmatpush1.bf16.xpose.msra.mxu0 0
        %1734 = vmatprep.subr.bf16.mxu0 0
        %1735 = vmatpush1.bf16.xpose.msra.mxu0 0
        %1736 = vmatprep.subr.bf16.mxu0 0
        %1737 = vmatpush1.bf16.xpose.msra.mxu0 0
        %1738 = vmatprep.subr.bf16.mxu0 0
        %1739 = vmatpush1.bf16.xpose.msra.mxu0 0
        %1740 = vmatprep.mubr.bf16.mxu0 0
        %1741 = vmatmul.mubr.bf16.gmra.mrb[0].mxu0 %v1703
        %v1742 = vpop.f32.mrb[0].mxu0
        %v1743 = vadd.f32 0.0, %v1742
        %v1744 = vpop.f32.mrb[0].mxu0
        %v1745 = vpop.f32.mrb[0].mxu0
        %v1746 = vpop.f32.mrb[0].mxu0
        %1747 = vdwg.mxu0
        %v1749 = vsel %vm1701, %v1690, 0
        %v1752 = vsel %vm1701, %v1694, 0
        %1754 = vmatprep.subr.bf16.mxu0 0
        %1755 = vmatpush1.bf16.xpose.msra.mxu0 %v1752
        %1756 = vmatprep.subr.bf16.mxu0 0
        %1757 = vmatpush1.bf16.xpose.msra.mxu0 0
        %1758 = vmatprep.subr.bf16.mxu0 0
        %1759 = vmatpush1.bf16.xpose.msra.mxu0 0
        %1760 = vmatprep.subr.bf16.mxu0 0
        %1761 = vmatpush1.bf16.xpose.msra.mxu0 0
        %1762 = vmatprep.subr.bf16.mxu0 0
        %1763 = vmatpush1.bf16.xpose.msra.mxu0 0
        %1764 = vmatprep.subr.bf16.mxu0 0
        %1765 = vmatpush1.bf16.xpose.msra.mxu0 0
        %1766 = vmatprep.subr.bf16.mxu0 0
        %1767 = vmatpush1.bf16.xpose.msra.mxu0 0
        %1768 = vmatprep.subr.bf16.mxu0 0
        %1769 = vmatpush1.bf16.xpose.msra.mxu0 0
        %1770 = vmatprep.subr.bf16.mxu0 0
        %1771 = vmatpush1.bf16.xpose.msra.mxu0 0
        %1772 = vmatprep.subr.bf16.mxu0 0
        %1773 = vmatpush1.bf16.xpose.msra.mxu0 0
        %1774 = vmatprep.subr.bf16.mxu0 0
        %1775 = vmatpush1.bf16.xpose.msra.mxu0 0
        %1776 = vmatprep.subr.bf16.mxu0 0
        %1777 = vmatpush1.bf16.xpose.msra.mxu0 0
        %1778 = vmatprep.subr.bf16.mxu0 0
        %1779 = vmatpush1.bf16.xpose.msra.mxu0 0
        %1780 = vmatprep.subr.bf16.mxu0 0
        %1781 = vmatpush1.bf16.xpose.msra.mxu0 0
        %1782 = vmatprep.subr.bf16.mxu0 0
        %1783 = vmatpush1.bf16.xpose.msra.mxu0 0
        %1784 = vmatprep.subr.bf16.mxu0 0
        %1785 = vmatpush1.bf16.xpose.msra.mxu0 0
        %1786 = vmatprep.mubr.bf16.mxu0 0
        %1787 = vmatmul.mubr.bf16.gmra.mrb[0].mxu0 %v1749
        %v1788 = vpop.f32.mrb[0].mxu0
        %v1789 = vadd.f32 0.0, %v1788
        %v1790 = vpop.f32.mrb[0].mxu0
        %v1791 = vpop.f32.mrb[0].mxu0
        %v1792 = vpop.f32.mrb[0].mxu0
        %1793 = vdwg.mxu0
        %v1795 = vsel %vm1701, %v1691, 0
        %v1798 = vsel %vm1701, %v1695, 0
        %1800 = vmatprep.subr.bf16.mxu0 0
        %1801 = vmatpush1.bf16.xpose.msra.mxu0 %v1798
        %1802 = vmatprep.subr.bf16.mxu0 0
        %1803 = vmatpush1.bf16.xpose.msra.mxu0 0
        %1804 = vmatprep.subr.bf16.mxu0 0
        %1805 = vmatpush1.bf16.xpose.msra.mxu0 0
        %1806 = vmatprep.subr.bf16.mxu0 0
        %1807 = vmatpush1.bf16.xpose.msra.mxu0 0
        %1808 = vmatprep.subr.bf16.mxu0 0
        %1809 = vmatpush1.bf16.xpose.msra.mxu0 0
        %1810 = vmatprep.subr.bf16.mxu0 0
        %1811 = vmatpush1.bf16.xpose.msra.mxu0 0
        %1812 = vmatprep.subr.bf16.mxu0 0
        %1813 = vmatpush1.bf16.xpose.msra.mxu0 0
        %1814 = vmatprep.subr.bf16.mxu0 0
        %1815 = vmatpush1.bf16.xpose.msra.mxu0 0
        %1816 = vmatprep.subr.bf16.mxu0 0
        %1817 = vmatpush1.bf16.xpose.msra.mxu0 0
        %1818 = vmatprep.subr.bf16.mxu0 0
        %1819 = vmatpush1.bf16.xpose.msra.mxu0 0
        %1820 = vmatprep.subr.bf16.mxu0 0
        %1821 = vmatpush1.bf16.xpose.msra.mxu0 0
        %1822 = vmatprep.subr.bf16.mxu0 0
        %1823 = vmatpush1.bf16.xpose.msra.mxu0 0
        %1824 = vmatprep.subr.bf16.mxu0 0
        %1825 = vmatpush1.bf16.xpose.msra.mxu0 0
        %1826 = vmatprep.subr.bf16.mxu0 0
        %1827 = vmatpush1.bf16.xpose.msra.mxu0 0
        %1828 = vmatprep.subr.bf16.mxu0 0
        %1829 = vmatpush1.bf16.xpose.msra.mxu0 0
        %1830 = vmatprep.subr.bf16.mxu0 0
        %1831 = vmatpush1.bf16.xpose.msra.mxu0 0
        %1832 = vmatprep.mubr.bf16.mxu0 0
        %1833 = vmatmul.mubr.bf16.gmra.mrb[0].mxu0 %v1795
        %v1834 = vpop.f32.mrb[0].mxu0
        %v1835 = vadd.f32 0.0, %v1834
        %v1836 = vpop.f32.mrb[0].mxu0
        %v1837 = vpop.f32.mrb[0].mxu0
        %v1838 = vpop.f32.mrb[0].mxu0
        %1839 = vdwg.mxu0
        %v1841 = vsel %vm1701, %v1692, 0
        %v1844 = vsel %vm1701, %v1696, 0
        %1846 = vmatprep.subr.bf16.mxu0 0
        %1847 = vmatpush1.bf16.xpose.msra.mxu0 %v1844
        %1848 = vmatprep.subr.bf16.mxu0 0
        %1849 = vmatpush1.bf16.xpose.msra.mxu0 0
        %1850 = vmatprep.subr.bf16.mxu0 0
        %1851 = vmatpush1.bf16.xpose.msra.mxu0 0
        %1852 = vmatprep.subr.bf16.mxu0 0
        %1853 = vmatpush1.bf16.xpose.msra.mxu0 0
        %1854 = vmatprep.subr.bf16.mxu0 0
        %1855 = vmatpush1.bf16.xpose.msra.mxu0 0
        %1856 = vmatprep.subr.bf16.mxu0 0
        %1857 = vmatpush1.bf16.xpose.msra.mxu0 0
        %1858 = vmatprep.subr.bf16.mxu0 0
        %1859 = vmatpush1.bf16.xpose.msra.mxu0 0
        %1860 = vmatprep.subr.bf16.mxu0 0
        %1861 = vmatpush1.bf16.xpose.msra.mxu0 0
        %1862 = vmatprep.subr.bf16.mxu0 0
        %1863 = vmatpush1.bf16.xpose.msra.mxu0 0
        %1864 = vmatprep.subr.bf16.mxu0 0
        %1865 = vmatpush1.bf16.xpose.msra.mxu0 0
        %1866 = vmatprep.subr.bf16.mxu0 0
        %1867 = vmatpush1.bf16.xpose.msra.mxu0 0
        %1868 = vmatprep.subr.bf16.mxu0 0
        %1869 = vmatpush1.bf16.xpose.msra.mxu0 0
        %1870 = vmatprep.subr.bf16.mxu0 0
        %1871 = vmatpush1.bf16.xpose.msra.mxu0 0
        %1872 = vmatprep.subr.bf16.mxu0 0
        %1873 = vmatpush1.bf16.xpose.msra.mxu0 0
        %1874 = vmatprep.subr.bf16.mxu0 0
        %1875 = vmatpush1.bf16.xpose.msra.mxu0 0
        %1876 = vmatprep.subr.bf16.mxu0 0
        %1877 = vmatpush1.bf16.xpose.msra.mxu0 0
        %1878 = vmatprep.mubr.bf16.mxu0 0
        %1879 = vmatmul.mubr.bf16.gmra.mrb[0].mxu0 %v1841
        %v1880 = vpop.f32.mrb[0].mxu0
        %v1881 = vadd.f32 0.0, %v1880
        %v1882 = vpop.f32.mrb[0].mxu0
        %v1883 = vpop.f32.mrb[0].mxu0
        %v1884 = vpop.f32.mrb[0].mxu0
        %1885 = vdwg.mxu0
        %v1886 = vsel %vm1701, %v1743, -inf
        %1887 = vmax.xlane.f32.xlu0 %v1886
        %v1888 = vpop.xlane.xlu0 %1887
        %v1889 = vsel %vm1701, %v1789, -inf
        %1890 = vmax.xlane.f32.xlu0 %v1889
        %v1891 = vpop.xlane.xlu0 %1890
        %v1892 = vsel %vm1701, %v1835, -inf
        %1893 = vmax.xlane.f32.xlu0 %v1892
        %v1894 = vpop.xlane.xlu0 %1893
        %v1895 = vsel %vm1701, %v1881, -inf
        %1896 = vmax.xlane.f32.xlu0 %v1895
        %v1897 = vpop.xlane.xlu0 %1896
        %v1898 = vsub.f32 %v1743, %v1888
        %v1899 = vsub.f32 %v1789, %v1891
        %v1900 = vsub.f32 %v1835, %v1894
        %v1901 = vsub.f32 %v1881, %v1897
        %v1902 = vmul.f32 %v1898, 1.442695
        %v1903 = vpow.pop %v1902
        %v1904 = vmul.f32 %v1899, 1.442695
        %v1905 = vpow.pop %v1904
        %v1906 = vmul.f32 %v1900, 1.442695
        %v1907 = vpow.pop %v1906
        %v1908 = vmul.f32 %v1901, 1.442695
        %v1909 = vpow.pop %v1908
        %v1910 = vsel %vm1701, %v1903, 0.0
        %1911 = vadd.xlane.f32.xlu0 %v1910
        %v1912 = vpop.xlane.xlu0 %1911
        %v1913 = vsel %vm1701, %v1905, 0.0
        %1914 = vadd.xlane.f32.xlu0 %v1913
        %v1915 = vpop.xlane.xlu0 %1914
        %v1916 = vsel %vm1701, %v1907, 0.0
        %1917 = vadd.xlane.f32.xlu0 %v1916
        %v1918 = vpop.xlane.xlu0 %1917
        %v1919 = vsel %vm1701, %v1909, 0.0
        %1920 = vadd.xlane.f32.xlu0 %v1919
        %v1921 = vpop.xlane.xlu0 %1920
        %v1922 = vrcp.pop %v1912
        %v1923 = vrcp.pop %v1915
        %v1924 = vrcp.pop %v1918
        %v1925 = vrcp.pop %v1921
        %v1926 = vmul.f32 %v1903, %v1922
        %v1927 = vmul.f32 %v1905, %v1923
        %v1928 = vmul.f32 %v1907, %v1924
        %v1929 = vmul.f32 %v1909, %v1925
        %v1930 = vpack.c.bf16 %v1926, %v1926
        %v1931 = vpack.c.bf16 %v1927, %v1927
        %v1932 = vpack.c.bf16 %v1928, %v1928
        %v1933 = vpack.c.bf16 %v1929, %v1929
        %v1935 = vsel %vm1701, %v1930, 0
        %vm1937 = vcmask 1043456
        %v1939 = vsel %vm1937, %v1697, 0
        %1941 = vmatprep.subr.bf16.mxu0 0
        %1942 = vmatpush1.bf16.msra.mxu0 %v1939
        %1943 = vmatprep.subr.bf16.mxu0 0
        %1944 = vmatpush1.bf16.msra.mxu0 0
        %1945 = vmatprep.subr.bf16.mxu0 0
        %1946 = vmatpush1.bf16.msra.mxu0 0
        %1947 = vmatprep.subr.bf16.mxu0 0
        %1948 = vmatpush1.bf16.msra.mxu0 0
        %1949 = vmatprep.subr.bf16.mxu0 0
        %1950 = vmatpush1.bf16.msra.mxu0 0
        %1951 = vmatprep.subr.bf16.mxu0 0
        %1952 = vmatpush1.bf16.msra.mxu0 0
        %1953 = vmatprep.subr.bf16.mxu0 0
        %1954 = vmatpush1.bf16.msra.mxu0 0
        %1955 = vmatprep.subr.bf16.mxu0 0
        %1956 = vmatpush1.bf16.msra.mxu0 0
        %1957 = vmatprep.subr.bf16.mxu0 0
        %1958 = vmatpush1.bf16.msra.mxu0 0
        %1959 = vmatprep.subr.bf16.mxu0 0
        %1960 = vmatpush1.bf16.msra.mxu0 0
        %1961 = vmatprep.subr.bf16.mxu0 0
        %1962 = vmatpush1.bf16.msra.mxu0 0
        %1963 = vmatprep.subr.bf16.mxu0 0
        %1964 = vmatpush1.bf16.msra.mxu0 0
        %1965 = vmatprep.subr.bf16.mxu0 0
        %1966 = vmatpush1.bf16.msra.mxu0 0
        %1967 = vmatprep.subr.bf16.mxu0 0
        %1968 = vmatpush1.bf16.msra.mxu0 0
        %1969 = vmatprep.subr.bf16.mxu0 0
        %1970 = vmatpush1.bf16.msra.mxu0 0
        %1971 = vmatprep.subr.bf16.mxu0 0
        %1972 = vmatpush1.bf16.msra.mxu0 0
        %1973 = vmatprep.mubr.bf16.mxu0 0
        %1974 = vmatmul.mubr.bf16.gmra.mrb[0].mxu0 %v1935
        %v1975 = vpop.f32.mrb[0].mxu0
        %v1976 = vadd.f32 0.0, %v1975
        %v1977 = vpop.f32.mrb[0].mxu0
        %v1978 = vpop.f32.mrb[0].mxu0
        %v1979 = vpop.f32.mrb[0].mxu0
        %1980 = vdwg.mxu0
        %v1982 = vsel %vm1701, %v1931, 0
        %v1985 = vsel %vm1937, %v1698, 0
        %1987 = vmatprep.subr.bf16.mxu0 0
        %1988 = vmatpush1.bf16.msra.mxu0 %v1985
        %1989 = vmatprep.subr.bf16.mxu0 0
        %1990 = vmatpush1.bf16.msra.mxu0 0
        %1991 = vmatprep.subr.bf16.mxu0 0
        %1992 = vmatpush1.bf16.msra.mxu0 0
        %1993 = vmatprep.subr.bf16.mxu0 0
        %1994 = vmatpush1.bf16.msra.mxu0 0
        %1995 = vmatprep.subr.bf16.mxu0 0
        %1996 = vmatpush1.bf16.msra.mxu0 0
        %1997 = vmatprep.subr.bf16.mxu0 0
        %1998 = vmatpush1.bf16.msra.mxu0 0
        %1999 = vmatprep.subr.bf16.mxu0 0
        %2000 = vmatpush1.bf16.msra.mxu0 0
        %2001 = vmatprep.subr.bf16.mxu0 0
        %2002 = vmatpush1.bf16.msra.mxu0 0
        %2003 = vmatprep.subr.bf16.mxu0 0
        %2004 = vmatpush1.bf16.msra.mxu0 0
        %2005 = vmatprep.subr.bf16.mxu0 0
        %2006 = vmatpush1.bf16.msra.mxu0 0
        %2007 = vmatprep.subr.bf16.mxu0 0
        %2008 = vmatpush1.bf16.msra.mxu0 0
        %2009 = vmatprep.subr.bf16.mxu0 0
        %2010 = vmatpush1.bf16.msra.mxu0 0
        %2011 = vmatprep.subr.bf16.mxu0 0
        %2012 = vmatpush1.bf16.msra.mxu0 0
        %2013 = vmatprep.subr.bf16.mxu0 0
        %2014 = vmatpush1.bf16.msra.mxu0 0
        %2015 = vmatprep.subr.bf16.mxu0 0
        %2016 = vmatpush1.bf16.msra.mxu0 0
        %2017 = vmatprep.subr.bf16.mxu0 0
        %2018 = vmatpush1.bf16.msra.mxu0 0
        %2019 = vmatprep.mubr.bf16.mxu0 0
        %2020 = vmatmul.mubr.bf16.gmra.mrb[0].mxu0 %v1982
        %v2021 = vpop.f32.mrb[0].mxu0
        %v2022 = vadd.f32 0.0, %v2021
        %v2023 = vpop.f32.mrb[0].mxu0
        %v2024 = vpop.f32.mrb[0].mxu0
        %v2025 = vpop.f32.mrb[0].mxu0
        %2026 = vdwg.mxu0
        %v2028 = vsel %vm1701, %v1932, 0
        %v2031 = vsel %vm1937, %v1699, 0
        %2033 = vmatprep.subr.bf16.mxu0 0
        %2034 = vmatpush1.bf16.msra.mxu0 %v2031
        %2035 = vmatprep.subr.bf16.mxu0 0
        %2036 = vmatpush1.bf16.msra.mxu0 0
        %2037 = vmatprep.subr.bf16.mxu0 0
        %2038 = vmatpush1.bf16.msra.mxu0 0
        %2039 = vmatprep.subr.bf16.mxu0 0
        %2040 = vmatpush1.bf16.msra.mxu0 0
        %2041 = vmatprep.subr.bf16.mxu0 0
        %2042 = vmatpush1.bf16.msra.mxu0 0
        %2043 = vmatprep.subr.bf16.mxu0 0
        %2044 = vmatpush1.bf16.msra.mxu0 0
        %2045 = vmatprep.subr.bf16.mxu0 0
        %2046 = vmatpush1.bf16.msra.mxu0 0
        %2047 = vmatprep.subr.bf16.mxu0 0
        %2048 = vmatpush1.bf16.msra.mxu0 0
        %2049 = vmatprep.subr.bf16.mxu0 0
        %2050 = vmatpush1.bf16.msra.mxu0 0
        %2051 = vmatprep.subr.bf16.mxu0 0
        %2052 = vmatpush1.bf16.msra.mxu0 0
        %2053 = vmatprep.subr.bf16.mxu0 0
        %2054 = vmatpush1.bf16.msra.mxu0 0
        %2055 = vmatprep.subr.bf16.mxu0 0
        %2056 = vmatpush1.bf16.msra.mxu0 0
        %2057 = vmatprep.subr.bf16.mxu0 0
        %2058 = vmatpush1.bf16.msra.mxu0 0
        %2059 = vmatprep.subr.bf16.mxu0 0
        %2060 = vmatpush1.bf16.msra.mxu0 0
        %2061 = vmatprep.subr.bf16.mxu0 0
        %2062 = vmatpush1.bf16.msra.mxu0 0
        %2063 = vmatprep.subr.bf16.mxu0 0
        %2064 = vmatpush1.bf16.msra.mxu0 0
        %2065 = vmatprep.mubr.bf16.mxu0 0
        %2066 = vmatmul.mubr.bf16.gmra.mrb[0].mxu0 %v2028
        %v2067 = vpop.f32.mrb[0].mxu0
        %v2068 = vadd.f32 0.0, %v2067
        %v2069 = vpop.f32.mrb[0].mxu0
        %v2070 = vpop.f32.mrb[0].mxu0
        %v2071 = vpop.f32.mrb[0].mxu0
        %2072 = vdwg.mxu0
        %v2074 = vsel %vm1701, %v1933, 0
        %v2077 = vsel %vm1937, %v1700, 0
        %2079 = vmatprep.subr.bf16.mxu0 0
        %2080 = vmatpush1.bf16.msra.mxu0 %v2077
        %2081 = vmatprep.subr.bf16.mxu0 0
        %2082 = vmatpush1.bf16.msra.mxu0 0
        %2083 = vmatprep.subr.bf16.mxu0 0
        %2084 = vmatpush1.bf16.msra.mxu0 0
        %2085 = vmatprep.subr.bf16.mxu0 0
        %2086 = vmatpush1.bf16.msra.mxu0 0
        %2087 = vmatprep.subr.bf16.mxu0 0
        %2088 = vmatpush1.bf16.msra.mxu0 0
        %2089 = vmatprep.subr.bf16.mxu0 0
        %2090 = vmatpush1.bf16.msra.mxu0 0
        %2091 = vmatprep.subr.bf16.mxu0 0
        %2092 = vmatpush1.bf16.msra.mxu0 0
        %2093 = vmatprep.subr.bf16.mxu0 0
        %2094 = vmatpush1.bf16.msra.mxu0 0
        %2095 = vmatprep.subr.bf16.mxu0 0
        %2096 = vmatpush1.bf16.msra.mxu0 0
        %2097 = vmatprep.subr.bf16.mxu0 0
        %2098 = vmatpush1.bf16.msra.mxu0 0
        %2099 = vmatprep.subr.bf16.mxu0 0
        %2100 = vmatpush1.bf16.msra.mxu0 0
        %2101 = vmatprep.subr.bf16.mxu0 0
        %2102 = vmatpush1.bf16.msra.mxu0 0
        %2103 = vmatprep.subr.bf16.mxu0 0
        %2104 = vmatpush1.bf16.msra.mxu0 0
        %2105 = vmatprep.subr.bf16.mxu0 0
        %2106 = vmatpush1.bf16.msra.mxu0 0
        %2107 = vmatprep.subr.bf16.mxu0 0
        %2108 = vmatpush1.bf16.msra.mxu0 0
        %2109 = vmatprep.subr.bf16.mxu0 0
        %2110 = vmatpush1.bf16.msra.mxu0 0
        %2111 = vmatprep.mubr.bf16.mxu0 0
        %2112 = vmatmul.mubr.bf16.gmra.mrb[0].mxu0 %v2074
        %v2113 = vpop.f32.mrb[0].mxu0
        %v2114 = vadd.f32 0.0, %v2113
        %v2115 = vpop.f32.mrb[0].mxu0
        %v2116 = vpop.f32.mrb[0].mxu0
        %v2117 = vpop.f32.mrb[0].mxu0
        %2118 = vdwg.mxu0
        %v2119 = vpack.c.bf16 %v1976, %v1976
        %v2120 = vpack.c.bf16 %v2022, %v2022
        %v2121 = vpack.c.bf16 %v2068, %v2068
        %v2122 = vpack.c.bf16 %v2114, %v2114
        %v2123 = vld [vmem:[#allocation19] sm:$0xf]
        %v2124 = vld [vmem:[#allocation19 + $0x4] sm:$0xf]
        %v2125 = vld [vmem:[#allocation19 + $0x8] sm:$0xf]
        %v2126 = vld [vmem:[#allocation19 + $0xc] sm:$0xf]
        %v2128 = vsel %vm1701, %v2119, 0
        %v2131 = vsel %vm1937, %v2123, 0
        %2133 = vmatprep.subr.bf16.mxu0 0
        %2134 = vmatpush1.bf16.msra.mxu0 %v2131
        %2135 = vmatprep.subr.bf16.mxu0 0
        %2136 = vmatpush1.bf16.msra.mxu0 0
        %2137 = vmatprep.subr.bf16.mxu0 0
        %2138 = vmatpush1.bf16.msra.mxu0 0
        %2139 = vmatprep.subr.bf16.mxu0 0
        %2140 = vmatpush1.bf16.msra.mxu0 0
        %2141 = vmatprep.subr.bf16.mxu0 0
        %2142 = vmatpush1.bf16.msra.mxu0 0
        %2143 = vmatprep.subr.bf16.mxu0 0
        %2144 = vmatpush1.bf16.msra.mxu0 0
        %2145 = vmatprep.subr.bf16.mxu0 0
        %2146 = vmatpush1.bf16.msra.mxu0 0
        %2147 = vmatprep.subr.bf16.mxu0 0
        %2148 = vmatpush1.bf16.msra.mxu0 0
        %2149 = vmatprep.subr.bf16.mxu0 0
        %2150 = vmatpush1.bf16.msra.mxu0 0
        %2151 = vmatprep.subr.bf16.mxu0 0
        %2152 = vmatpush1.bf16.msra.mxu0 0
        %2153 = vmatprep.subr.bf16.mxu0 0
        %2154 = vmatpush1.bf16.msra.mxu0 0
        %2155 = vmatprep.subr.bf16.mxu0 0
        %2156 = vmatpush1.bf16.msra.mxu0 0
        %2157 = vmatprep.subr.bf16.mxu0 0
        %2158 = vmatpush1.bf16.msra.mxu0 0
        %2159 = vmatprep.subr.bf16.mxu0 0
        %2160 = vmatpush1.bf16.msra.mxu0 0
        %2161 = vmatprep.subr.bf16.mxu0 0
        %2162 = vmatpush1.bf16.msra.mxu0 0
        %2163 = vmatprep.subr.bf16.mxu0 0
        %2164 = vmatpush1.bf16.msra.mxu0 0
        %2165 = vmatprep.mubr.bf16.mxu0 0
        %2166 = vmatmul.mubr.bf16.gmra.mrb[0].mxu0 %v2128
        %v2167 = vpop.f32.mrb[0].mxu0
        %v2168 = vadd.f32 0.0, %v2167
        %v2169 = vpop.f32.mrb[0].mxu0
        %v2170 = vpop.f32.mrb[0].mxu0
        %v2171 = vpop.f32.mrb[0].mxu0
        %2172 = vdwg.mxu0
        %v2174 = vsel %vm1701, %v2120, 0
        %v2177 = vsel %vm1937, %v2124, 0
        %2179 = vmatprep.subr.bf16.mxu0 0
        %2180 = vmatpush1.bf16.msra.mxu0 %v2177
        %2181 = vmatprep.subr.bf16.mxu0 0
        %2182 = vmatpush1.bf16.msra.mxu0 0
        %2183 = vmatprep.subr.bf16.mxu0 0
        %2184 = vmatpush1.bf16.msra.mxu0 0
        %2185 = vmatprep.subr.bf16.mxu0 0
        %2186 = vmatpush1.bf16.msra.mxu0 0
        %2187 = vmatprep.subr.bf16.mxu0 0
        %2188 = vmatpush1.bf16.msra.mxu0 0
        %2189 = vmatprep.subr.bf16.mxu0 0
        %2190 = vmatpush1.bf16.msra.mxu0 0
        %2191 = vmatprep.subr.bf16.mxu0 0
        %2192 = vmatpush1.bf16.msra.mxu0 0
        %2193 = vmatprep.subr.bf16.mxu0 0
        %2194 = vmatpush1.bf16.msra.mxu0 0
        %2195 = vmatprep.subr.bf16.mxu0 0
        %2196 = vmatpush1.bf16.msra.mxu0 0
        %2197 = vmatprep.subr.bf16.mxu0 0
        %2198 = vmatpush1.bf16.msra.mxu0 0
        %2199 = vmatprep.subr.bf16.mxu0 0
        %2200 = vmatpush1.bf16.msra.mxu0 0
        %2201 = vmatprep.subr.bf16.mxu0 0
        %2202 = vmatpush1.bf16.msra.mxu0 0
        %2203 = vmatprep.subr.bf16.mxu0 0
        %2204 = vmatpush1.bf16.msra.mxu0 0
        %2205 = vmatprep.subr.bf16.mxu0 0
        %2206 = vmatpush1.bf16.msra.mxu0 0
        %2207 = vmatprep.subr.bf16.mxu0 0
        %2208 = vmatpush1.bf16.msra.mxu0 0
        %2209 = vmatprep.subr.bf16.mxu0 0
        %2210 = vmatpush1.bf16.msra.mxu0 0
        %2211 = vmatprep.mubr.bf16.mxu0 0
        %2212 = vmatmul.mubr.bf16.gmra.mrb[0].mxu0 %v2174
        %v2213 = vpop.f32.mrb[0].mxu0
        %v2214 = vadd.f32 0.0, %v2213
        %v2215 = vpop.f32.mrb[0].mxu0
        %v2216 = vpop.f32.mrb[0].mxu0
        %v2217 = vpop.f32.mrb[0].mxu0
        %2218 = vdwg.mxu0
        %v2220 = vsel %vm1701, %v2121, 0
        %v2223 = vsel %vm1937, %v2125, 0
        %2225 = vmatprep.subr.bf16.mxu0 0
        %2226 = vmatpush1.bf16.msra.mxu0 %v2223
        %2227 = vmatprep.subr.bf16.mxu0 0
        %2228 = vmatpush1.bf16.msra.mxu0 0
        %2229 = vmatprep.subr.bf16.mxu0 0
        %2230 = vmatpush1.bf16.msra.mxu0 0
        %2231 = vmatprep.subr.bf16.mxu0 0
        %2232 = vmatpush1.bf16.msra.mxu0 0
        %2233 = vmatprep.subr.bf16.mxu0 0
        %2234 = vmatpush1.bf16.msra.mxu0 0
        %2235 = vmatprep.subr.bf16.mxu0 0
        %2236 = vmatpush1.bf16.msra.mxu0 0
        %2237 = vmatprep.subr.bf16.mxu0 0
        %2238 = vmatpush1.bf16.msra.mxu0 0
        %2239 = vmatprep.subr.bf16.mxu0 0
        %2240 = vmatpush1.bf16.msra.mxu0 0
        %2241 = vmatprep.subr.bf16.mxu0 0
        %2242 = vmatpush1.bf16.msra.mxu0 0
        %2243 = vmatprep.subr.bf16.mxu0 0
        %2244 = vmatpush1.bf16.msra.mxu0 0
        %2245 = vmatprep.subr.bf16.mxu0 0
        %2246 = vmatpush1.bf16.msra.mxu0 0
        %2247 = vmatprep.subr.bf16.mxu0 0
        %2248 = vmatpush1.bf16.msra.mxu0 0
        %2249 = vmatprep.subr.bf16.mxu0 0
        %2250 = vmatpush1.bf16.msra.mxu0 0
        %2251 = vmatprep.subr.bf16.mxu0 0
        %2252 = vmatpush1.bf16.msra.mxu0 0
        %2253 = vmatprep.subr.bf16.mxu0 0
        %2254 = vmatpush1.bf16.msra.mxu0 0
        %2255 = vmatprep.subr.bf16.mxu0 0
        %2256 = vmatpush1.bf16.msra.mxu0 0
        %2257 = vmatprep.mubr.bf16.mxu0 0
        %2258 = vmatmul.mubr.bf16.gmra.mrb[0].mxu0 %v2220
        %v2259 = vpop.f32.mrb[0].mxu0
        %v2260 = vadd.f32 0.0, %v2259
        %v2261 = vpop.f32.mrb[0].mxu0
        %v2262 = vpop.f32.mrb[0].mxu0
        %v2263 = vpop.f32.mrb[0].mxu0
        %2264 = vdwg.mxu0
        %v2266 = vsel %vm1701, %v2122, 0
        %v2269 = vsel %vm1937, %v2126, 0
        %2271 = vmatprep.subr.bf16.mxu0 0
        %2272 = vmatpush1.bf16.msra.mxu0 %v2269
        %2273 = vmatprep.subr.bf16.mxu0 0
        %2274 = vmatpush1.bf16.msra.mxu0 0
        %2275 = vmatprep.subr.bf16.mxu0 0
        %2276 = vmatpush1.bf16.msra.mxu0 0
        %2277 = vmatprep.subr.bf16.mxu0 0
        %2278 = vmatpush1.bf16.msra.mxu0 0
        %2279 = vmatprep.subr.bf16.mxu0 0
        %2280 = vmatpush1.bf16.msra.mxu0 0
        %2281 = vmatprep.subr.bf16.mxu0 0
        %2282 = vmatpush1.bf16.msra.mxu0 0
        %2283 = vmatprep.subr.bf16.mxu0 0
        %2284 = vmatpush1.bf16.msra.mxu0 0
        %2285 = vmatprep.subr.bf16.mxu0 0
        %2286 = vmatpush1.bf16.msra.mxu0 0
        %2287 = vmatprep.subr.bf16.mxu0 0
        %2288 = vmatpush1.bf16.msra.mxu0 0
        %2289 = vmatprep.subr.bf16.mxu0 0
        %2290 = vmatpush1.bf16.msra.mxu0 0
        %2291 = vmatprep.subr.bf16.mxu0 0
        %2292 = vmatpush1.bf16.msra.mxu0 0
        %2293 = vmatprep.subr.bf16.mxu0 0
        %2294 = vmatpush1.bf16.msra.mxu0 0
        %2295 = vmatprep.subr.bf16.mxu0 0
        %2296 = vmatpush1.bf16.msra.mxu0 0
        %2297 = vmatprep.subr.bf16.mxu0 0
        %2298 = vmatpush1.bf16.msra.mxu0 0
        %2299 = vmatprep.subr.bf16.mxu0 0
        %2300 = vmatpush1.bf16.msra.mxu0 0
        %2301 = vmatprep.subr.bf16.mxu0 0
        %2302 = vmatpush1.bf16.msra.mxu0 0
        %2303 = vmatprep.mubr.bf16.mxu0 0
        %2304 = vmatmul.mubr.bf16.gmra.mrb[0].mxu0 %v2266
        %v2305 = vpop.f32.mrb[0].mxu0
        %v2306 = vadd.f32 0.0, %v2305
        %v2307 = vpop.f32.mrb[0].mxu0
        %v2308 = vpop.f32.mrb[0].mxu0
        %v2309 = vpop.f32.mrb[0].mxu0
        %2310 = vdwg.mxu0
        %v2311 = vsel %vm1438, %v2168, 0.0
        %v2312 = vsel %vm1438, %v2214, 0.0
        %v2313 = vadd.f32 %v2311, %v2312
        %v2314 = vsel %vm1438, %v2260, 0.0
        %v2315 = vadd.f32 %v2313, %v2314
        %v2316 = vsel %vm1438, %v2306, 0.0
        %v2317 = vadd.f32 %v2315, %v2316
        %v2318 = vld [vmem:[#allocation20] sm:$0x1]
        %v2320 = vlaneseq
        %v2321 = vshrl.u32 %v2320, 7
        %v2322 = vsub.s32 0, %v2321
        %v2323 = vrot.slane %v2318, %v2322
        %v2325 = vadd.f32 %v2317, %v2323
        %v2326 = vadd.f32 %v1413, %v2325
        %v2327 = vsel %vm1438, %v2326, 0.0
        %2328 = vadd.xlane.f32.xlu0 %v2327
        %v2329 = vpop.xlane.xlu0 %2328
        %v2330 = vrcp.pop 32.0
        %v2331 = vmul.f32 %v2329, %v2330
        %v2332 = vsub.f32 %v2326, %v2331
        %v2333 = vmul.f32 %v2332, %v2332
        %v2334 = vsel %vm1438, %v2333, 0.0
        %2335 = vadd.xlane.f32.xlu0 %v2334
        %v2336 = vpop.xlane.xlu0 %2335
        %v2337 = vmul.f32 %v2336, %v2330
        %v2338 = vadd.f32 %v2337, 1e-05
        %v2339 = vrsqrt.pop %v2338
        %v2340 = vmul.f32 %v2332, %v2339
        %v2341 = vld [vmem:[#allocation22] sm:$0x1]
        %v2343 = vlaneseq
        %v2344 = vshrl.u32 %v2343, 7
        %v2345 = vsub.s32 0, %v2344
        %v2346 = vrot.slane %v2341, %v2345
        %v2348 = vmul.f32 %v2340, %v2346
        %v2349 = vld [vmem:[#allocation23] sm:$0x1]
        %v2351 = vlaneseq
        %v2352 = vshrl.u32 %v2351, 7
        %v2353 = vsub.s32 0, %v2352
        %v2354 = vrot.slane %v2349, %v2353
        %v2356 = vadd.f32 %v2348, %v2354
        %v2357 = vpack.c.bf16 %v2356, %v2356
        %v2358 = vld [vmem:[#allocation25] sm:$0xf]
        %v2359 = vld [vmem:[#allocation25 + $0x4] sm:$0xf]
        %v2360 = vld [vmem:[#allocation25 + $0x8] sm:$0xf]
        %v2361 = vld [vmem:[#allocation25 + $0xc] sm:$0xf]
        %v2362 = vld [vmem:[#allocation26] sm:$0x1]
        %v2364 = vlaneseq
        %v2365 = vshrl.u32 %v2364, 7
        %v2366 = vsub.s32 0, %v2365
        %v2367 = vrot.slane %v2362, %v2366
        %v2373 = vunpack.c.l.b16 %v2358
        %v2374 = vunpack.c.l.b16 %v2359
        %v2375 = vunpack.c.l.b16 %v2360
        %v2376 = vunpack.c.l.b16 %v2361
        %v2377 = vpack.c.b16 %v2374, %v2373
        %v2378 = vpack.c.b16 %v2376, %v2375
        %v2382 = vsel %vm1438, %v2357, 0
        %2384 = vmatprep.subr.bf16.mxu0 0
        %2385 = vmatpush1.bf16.msra.mxu0 %v2377
        %2386 = vmatprep.subr.bf16.mxu0 0
        %2387 = vmatpush1.bf16.msra.mxu0 %v2378
        %2388 = vmatprep.subr.bf16.mxu0 0
        %2389 = vmatpush1.bf16.msra.mxu0 0
        %2390 = vmatprep.subr.bf16.mxu0 0
        %2391 = vmatpush1.bf16.msra.mxu0 0
        %2392 = vmatprep.subr.bf16.mxu0 0
        %2393 = vmatpush1.bf16.msra.mxu0 0
        %2394 = vmatprep.subr.bf16.mxu0 0
        %2395 = vmatpush1.bf16.msra.mxu0 0
        %2396 = vmatprep.subr.bf16.mxu0 0
        %2397 = vmatpush1.bf16.msra.mxu0 0
        %2398 = vmatprep.subr.bf16.mxu0 0
        %2399 = vmatpush1.bf16.msra.mxu0 0
        %2400 = vmatprep.subr.bf16.mxu0 0
        %2401 = vmatpush1.bf16.msra.mxu0 0
        %2402 = vmatprep.subr.bf16.mxu0 0
        %2403 = vmatpush1.bf16.msra.mxu0 0
        %2404 = vmatprep.subr.bf16.mxu0 0
        %2405 = vmatpush1.bf16.msra.mxu0 0
        %2406 = vmatprep.subr.bf16.mxu0 0
        %2407 = vmatpush1.bf16.msra.mxu0 0
        %2408 = vmatprep.subr.bf16.mxu0 0
        %2409 = vmatpush1.bf16.msra.mxu0 0
        %2410 = vmatprep.subr.bf16.mxu0 0
        %2411 = vmatpush1.bf16.msra.mxu0 0
        %2412 = vmatprep.subr.bf16.mxu0 0
        %2413 = vmatpush1.bf16.msra.mxu0 0
        %2414 = vmatprep.subr.bf16.mxu0 0
        %2415 = vmatpush1.bf16.msra.mxu0 0
        %2416 = vmatprep.mubr.bf16.mxu0 0
        %2417 = vmatmul.mubr.bf16.gmra.mrb[0].mxu0 %v2382
        %v2418 = vpop.f32.mrb[0].mxu0
        %v2419 = vadd.f32 %v2367, %v2418
        %v2420 = vpop.f32.mrb[0].mxu0
        %v2421 = vpop.f32.mrb[0].mxu0
        %v2422 = vpop.f32.mrb[0].mxu0
        %2423 = vdwg.mxu0
        %v2424 = vmax.f32 %v2419, 0.0
        %v2425 = vpack.c.bf16 %v2424, %v2424
        %v2426 = vld [vmem:[#allocation28] sm:$0xf]
        %v2427 = vld [vmem:[#allocation28 + $0x4] sm:$0xf]
        %v2428 = vld [vmem:[#allocation28 + $0x8] sm:$0xf]
        %v2429 = vld [vmem:[#allocation28 + $0xc] sm:$0xf]
        %v2430 = vld [vmem:[#allocation28 + $0x10] sm:$0xf]
        %v2431 = vld [vmem:[#allocation28 + $0x14] sm:$0xf]
        %v2432 = vld [vmem:[#allocation28 + $0x18] sm:$0xf]
        %v2433 = vld [vmem:[#allocation28 + $0x1c] sm:$0xf]
        %v2434 = vld [vmem:[#allocation29] sm:$0x1]
        %v2436 = vlaneseq
        %v2437 = vshrl.u32 %v2436, 7
        %v2438 = vsub.s32 0, %v2437
        %v2439 = vrot.slane %v2434, %v2438
        %v2449 = vunpack.c.l.b16 %v2426
        %v2450 = vunpack.c.l.b16 %v2427
        %v2451 = vunpack.c.l.b16 %v2428
        %v2452 = vunpack.c.l.b16 %v2429
        %v2453 = vunpack.c.l.b16 %v2430
        %v2454 = vunpack.c.l.b16 %v2431
        %v2455 = vunpack.c.l.b16 %v2432
        %v2456 = vunpack.c.l.b16 %v2433
        %v2457 = vpack.c.b16 %v2450, %v2449
        %v2458 = vpack.c.b16 %v2452, %v2451
        %v2459 = vpack.c.b16 %v2454, %v2453
        %v2460 = vpack.c.b16 %v2456, %v2455
        %vm2465 = vcmask 523264
        %v2467 = vsel %vm2465, %v2425, 0
        %2469 = vmatprep.subr.bf16.mxu0 0
        %2470 = vmatpush1.bf16.msra.mxu0 %v2457
        %2471 = vmatprep.subr.bf16.mxu0 0
        %2472 = vmatpush1.bf16.msra.mxu0 %v2458
        %2473 = vmatprep.subr.bf16.mxu0 0
        %2474 = vmatpush1.bf16.msra.mxu0 %v2459
        %2475 = vmatprep.subr.bf16.mxu0 0
        %2476 = vmatpush1.bf16.msra.mxu0 %v2460
        %2477 = vmatprep.subr.bf16.mxu0 0
        %2478 = vmatpush1.bf16.msra.mxu0 0
        %2479 = vmatprep.subr.bf16.mxu0 0
        %2480 = vmatpush1.bf16.msra.mxu0 0
        %2481 = vmatprep.subr.bf16.mxu0 0
        %2482 = vmatpush1.bf16.msra.mxu0 0
        %2483 = vmatprep.subr.bf16.mxu0 0
        %2484 = vmatpush1.bf16.msra.mxu0 0
        %2485 = vmatprep.subr.bf16.mxu0 0
        %2486 = vmatpush1.bf16.msra.mxu0 0
        %2487 = vmatprep.subr.bf16.mxu0 0
        %2488 = vmatpush1.bf16.msra.mxu0 0
        %2489 = vmatprep.subr.bf16.mxu0 0
        %2490 = vmatpush1.bf16.msra.mxu0 0
        %2491 = vmatprep.subr.bf16.mxu0 0
        %2492 = vmatpush1.bf16.msra.mxu0 0
        %2493 = vmatprep.subr.bf16.mxu0 0
        %2494 = vmatpush1.bf16.msra.mxu0 0
        %2495 = vmatprep.subr.bf16.mxu0 0
        %2496 = vmatpush1.bf16.msra.mxu0 0
        %2497 = vmatprep.subr.bf16.mxu0 0
        %2498 = vmatpush1.bf16.msra.mxu0 0
        %2499 = vmatprep.subr.bf16.mxu0 0
        %2500 = vmatpush1.bf16.msra.mxu0 0
        %2501 = vmatprep.mubr.bf16.mxu0 0
        %2502 = vmatmul.mubr.bf16.gmra.mrb[0].mxu0 %v2467
        %v2503 = vpop.f32.mrb[0].mxu0
        %v2504 = vadd.f32 %v2439, %v2503
        %v2505 = vpop.f32.mrb[0].mxu0
        %v2506 = vpop.f32.mrb[0].mxu0
        %v2507 = vpop.f32.mrb[0].mxu0
        %2508 = vdwg.mxu0
        %v2509 = vadd.f32 %v2356, %v2504
        %v2510 = vsel %vm1438, %v2509, 0.0
        %2511 = vadd.xlane.f32.xlu0 %v2510
        %v2512 = vpop.xlane.xlu0 %2511
        %v2513 = vmul.f32 %v2512, %v2330
        %v2514 = vsub.f32 %v2509, %v2513
        %v2515 = vmul.f32 %v2514, %v2514
        %v2516 = vsel %vm1438, %v2515, 0.0
        %2517 = vadd.xlane.f32.xlu0 %v2516
        %v2518 = vpop.xlane.xlu0 %2517
        %v2519 = vmul.f32 %v2518, %v2330
        %v2520 = vadd.f32 %v2519, 1e-05
        %v2521 = vrsqrt.pop %v2520
        %v2522 = vmul.f32 %v2514, %v2521
        %v2523 = vld [vmem:[#allocation31] sm:$0x1]
        %v2525 = vlaneseq
        %v2526 = vshrl.u32 %v2525, 7
        %v2527 = vsub.s32 0, %v2526
        %v2528 = vrot.slane %v2523, %v2527
        %v2530 = vmul.f32 %v2522, %v2528
        %v2531 = vld [vmem:[#allocation32] sm:$0x1]
        %v2533 = vlaneseq
        %v2534 = vshrl.u32 %v2533, 7
        %v2535 = vsub.s32 0, %v2534
        %v2536 = vrot.slane %v2531, %v2535
        %v2538 = vadd.f32 %v2530, %v2536
        %2539 = vst.msk [vmem:[%s862] sm:$0xff] %vm1438, %v2538
        %s2540 = sand.u32 %s458, 1
        %s2541 = scalar_lea.sflag [#allocation7], %s2540
        %s2542 = sand.u32 %s458, 1
        %s2543 = smul.addr %s2542, 8
        %s2544 = scalar_lea.vmem [#allocation34], %s2543
        // Predicated region
        $region169: #{transformer_encoder.2} parent=91 // pred_check
          %p2545 = pneg %p468
        $region170: #{transformer_encoder.2} parent=91 // pred_check_branch
          %2547 = sbr.rel (%p2545) target = $region172
        $region171: #{transformer_encoder.2} parent=91 // pred_region
          %s2549 = ssub.s32 128, 128
          %2550 = vsyncadd %s2541, %s2549
          %s2551 = sadd.s32 %s51, %s50
          %s2552 = smul.addr %s2551, 128
          %s2553 = scalar_lea.hbm %s18, %s2552
          %s2555 = sshll.u32 %s2544, 4
          %s2556 = int_to_ptr.vmem [resolvable:$true] %s2555
          %2558 = dma.vmem_to_hbm [thread:$0]  %s2556, 128, %s2553, %s2541
        $region172: #{transformer_encoder.2} parent=91 // pred_fallthru
          _
      $region92: #{transformer_encoder.2} parent=5 // pred_fallthru
        _
      %p2559 = scmp.le.s32.totalorder 2, %s41
      // Predicated region
      $region173: #{transformer_encoder.2} parent=5 // pred_check
        %p2560 = pneg %p2559
      $region174: #{transformer_encoder.2} parent=5 // pred_check_branch
        %2562 = sbr.rel (%p2560) target = $region176
      $region175: #{transformer_encoder.2} parent=5 // pred_region
        %s2563 = ssub.s32 %s41, 2
        // Predicated region
        $region177: #{transformer_encoder.2} parent=175 // pred_check
          %p2564 = pneg %p474
        $region178: #{transformer_encoder.2} parent=175 // pred_check_branch
          %2566 = sbr.rel (%p2564) target = $region180
        $region179: #{transformer_encoder.2} parent=175 // pred_region
          %s2567 = sand.u32 %s459, 1
          %s2568 = scalar_lea.sflag [#allocation7], %s2567
          %s2569 = sand.u32 %s459, 1
          %s2570 = smul.addr %s2569, 8
          %s2571 = scalar_lea.vmem [#allocation34], %s2570
          %2572 = dma.done %s2568, 128
        $region180: #{transformer_encoder.2} parent=175 // pred_fallthru
          _
      $region176: #{transformer_encoder.2} parent=5 // pred_fallthru
        _
    $region6: #{transformer_encoder.2} parent=1 // loop_footer
      %s45 = sadd.s32 1, %s41
    $region7: #{transformer_encoder.2} parent=1 // loop_footer_branch
      %40 = sbr.rel target = $region3
    $region8: #{transformer_encoder.2} parent=1 // loop_exit
      _
    %2573 = vsyncpa [#allocation6], 1
    %s2574 = scalar_lea.sflag [#allocation6], 1
    %2575 = vsyncpa %s2574, 1
    %2576 = vsyncpa [#allocation9], 1
    %s2577 = scalar_lea.sflag [#allocation9], 1
    %2578 = vsyncpa %s2577, 1
    %2579 = vsyncpa [#allocation12], 1
    %2580 = vsyncpa [#allocation15], 1
    %2581 = vsyncpa [#allocation18], 1
    %2582 = vsyncpa [#allocation21], 1
    %2583 = vsyncpa [#allocation24], 1
    %2584 = vsyncpa [#allocation27], 1
    %2585 = vsyncpa [#allocation30], 1
    %2586 = vsyncpa [#allocation33], 1
    %2587 = vsyncpa [#allocation7], 1
    %s2588 = scalar_lea.sflag [#allocation7], 1
    %2589 = vsyncpa %s2588, 1

</llo_original>
